<compile_context>
chip_gen: v7x
topology: tpu7x:2x2x1
jax: 0.10.0
libtpu: 0.0.40
codegen_flags: <defaults>
</compile_context>

<pallas_src>
import functools

import jax
import jax.numpy as jnp
from jax import lax
from jax.experimental import pallas as pl
from jax.experimental.pallas import tpu as pltpu


def _round_up(x, m):
    return ((x + m - 1) // m) * m


def _basic_block_kernel(TH, W, Cp,
                        x_ref, w1_ref, w2_ref, b1_ref, b2_ref,
                        o_ref, cat1_ref, cat2_ref):
    """One (batch element, H-tile) pair per grid step.

    x_ref    : (H+4, W, Cp)     bf16 input, H padded by 2 zero rows top/bottom,
                                channels zero-padded to Cp (batch dim squeezed)
    w1_ref   : (3, 3*Cp, Cp)    bf16 conv1 weights, BN1 scale folded, kh-major,
                                K ordered (kw, ci)
    w2_ref   : (3, 3*Cp, Cp)    bf16 conv2 weights, BN2 scale folded
    b1_ref   : (1, Cp)          f32 folded BN1 bias
    b2_ref   : (1, Cp)          f32 folded BN2 bias
    o_ref    : (TH, W, Cp)      bf16 output tile (NHWC, batch dim squeezed)
    cat1_ref : (TH+4, W, 3*Cp)  bf16 scratch: kw-shifted x rows for this tile
    cat2_ref : (TH+2, W, 3*Cp)  bf16 scratch: kw-shifted conv1 activation
    """
    f32 = jnp.float32
    cdt = x_ref.dtype
    h = pl.program_id(1)
    nH = pl.num_programs(1)

    # Padded-input rows for this tile: TH output rows + a 2-row halo each side
    # (conv2 needs a 1-row conv1 halo, which itself needs 1 more input row).
    r0 = pl.multiple_of(h * TH, TH)
    xt = x_ref[pl.ds(r0, TH + 4), :, :]                       # (TH+4, W, Cp)

    # ---- cat1: three kw-shifted copies of xt on lane-aligned segments ------
    # segment 0 holds x[w-1], segment 1 holds x[w], segment 2 holds x[w+1];
    # zeros at the W edges (SAME padding).  H halo rows are already zero via
    # the wrapper's 2-row pad.
    cat1_ref[:, :, Cp:2 * Cp] = xt
    cat1_ref[:, 1:, 0:Cp] = xt[:, :W - 1, :]
    cat1_ref[:, 0:1, 0:Cp] = jnp.zeros((TH + 4, 1, Cp), cdt)
    cat1_ref[:, :W - 1, 2 * Cp:3 * Cp] = xt[:, 1:, :]
    cat1_ref[:, W - 1:W, 2 * Cp:3 * Cp] = jnp.zeros((TH + 4, 1, Cp), cdt)

    # ---- conv1 (+ folded BN1 bias) + relu on TH+2 rows (1-row halo) --------
    acc1 = None
    for kh in range(3):               # kh taps = aligned leading-axis offsets
        lhs = cat1_ref[kh:kh + TH + 2, :, :].reshape((TH + 2) * W, 3 * Cp)
        d = jnp.dot(lhs, w1_ref[kh], preferred_element_type=f32)
        acc1 = d if acc1 is None else acc1 + d
    out1 = jnp.maximum(acc1 + b1_ref[...], 0.0)
    a = out1.reshape(TH + 2, W, Cp).astype(cdt)

    # ---- cat2: same kw-shift layout for the conv1 activation ---------------
    cat2_ref[:, :, Cp:2 * Cp] = a
    cat2_ref[:, 1:, 0:Cp] = a[:, :W - 1, :]
    cat2_ref[:, 0:1, 0:Cp] = jnp.zeros((TH + 2, 1, Cp), cdt)
    cat2_ref[:, :W - 1, 2 * Cp:3 * Cp] = a[:, 1:, :]
    cat2_ref[:, W - 1:W, 2 * Cp:3 * Cp] = jnp.zeros((TH + 2, 1, Cp), cdt)

    # conv2's SAME padding: rows outside the image must be zero, not conv1
    # applied to the zero halo (bias/relu make that nonzero).
    @pl.when(h == 0)
    def _():
        cat2_ref[0:1, :, :] = jnp.zeros((1, W, 3 * Cp), cdt)

    @pl.when(h == nH - 1)
    def _():
        cat2_ref[TH + 1:TH + 2, :, :] = jnp.zeros((1, W, 3 * Cp), cdt)

    # ---- conv2 (+ folded BN2 bias) + residual add + relu --------------------
    acc2 = None
    for kh in range(3):
        lhs = cat2_ref[kh:kh + TH, :, :].reshape(TH * W, 3 * Cp)
        d = jnp.dot(lhs, w2_ref[kh], preferred_element_type=f32)
        acc2 = d if acc2 is None else acc2 + d

    res = xt[2:TH + 2, :, :].reshape(TH * W, Cp).astype(f32)
    out = jnp.maximum(acc2 + b2_ref[...] + res, 0.0)
    o_ref[...] = out.reshape(TH, W, Cp).astype(o_ref.dtype)


def basic_block_pallas(x_nchw, w1_hwio, w2_hwio, scale1, bias1, scale2, bias2,
                       *, h_tile=8):
    """BasicBlock forward (stride=1, downsample=None). x is NCHW float32."""
    N, Cin, H, W = x_nchw.shape
    Cout = w1_hwio.shape[-1]
    assert Cin == Cout, "residual add requires inplanes == planes (no downsample)"
    assert W % 8 == 0, "W must be sublane-dense (multiple of 8)"

    Cp = _round_up(max(Cin, Cout, 128), 128)      # lane-dense channel padding
    TH = h_tile if (H % h_tile == 0) else H       # H tile rows
    assert H % TH == 0
    nH = H // TH

    # bf16 cast BEFORE the layout change (halves transpose HBM traffic), then
    # NCHW -> NHWC, pad H by the 2-row conv halo and channels to Cp lanes.
    x_nhwc = jnp.transpose(x_nchw.astype(jnp.bfloat16), (0, 2, 3, 1))
    x_pad = jnp.pad(x_nhwc, ((0, 0), (2, 2), (0, 0), (0, Cp - Cin)))

    # Fold BN scale into conv weights, pad channels, and reshape
    # (3, 3, Cp, Cp) -> (3, 3*Cp, Cp); K ordered (kw, ci) to match the
    # kernel's lane segments.
    def prep_w(w, scale):
        wf = w.astype(jnp.float32) * scale[None, None, None, :]
        wf = jnp.pad(wf, ((0, 0), (0, 0),
                          (0, Cp - w.shape[2]), (0, Cp - w.shape[3])))
        return wf.reshape(3, 3 * Cp, Cp).astype(jnp.bfloat16)

    w1f = prep_w(w1_hwio, scale1)
    w2f = prep_w(w2_hwio, scale2)
    b1 = jnp.pad(bias1, (0, Cp - Cout)).reshape(1, Cp).astype(jnp.float32)
    b2 = jnp.pad(bias2, (0, Cp - Cout)).reshape(1, Cp).astype(jnp.float32)

    kernel = functools.partial(_basic_block_kernel, TH, W, Cp)

    out_nhwc = pl.pallas_call(
        kernel,
        out_shape=jax.ShapeDtypeStruct((N, H, W, Cp), jnp.bfloat16),
        grid_spec=pltpu.PrefetchScalarGridSpec(
            num_scalar_prefetch=0,
            grid=(N, nH),
            in_specs=[
                # Full padded image resident per batch element (constant block
                # index over the H-tile axis -> fetched once per n).
                pl.BlockSpec((None, H + 4, W, Cp), lambda n, h: (n, 0, 0, 0)),
                pl.BlockSpec((3, 3 * Cp, Cp), lambda n, h: (0, 0, 0)),
                pl.BlockSpec((3, 3 * Cp, Cp), lambda n, h: (0, 0, 0)),
                pl.BlockSpec((1, Cp), lambda n, h: (0, 0)),
                pl.BlockSpec((1, Cp), lambda n, h: (0, 0)),
            ],
            out_specs=pl.BlockSpec((None, TH, W, Cp), lambda n, h: (n, h, 0, 0)),
            scratch_shapes=[
                pltpu.VMEM((TH + 4, W, 3 * Cp), jnp.bfloat16),
                pltpu.VMEM((TH + 2, W, 3 * Cp), jnp.bfloat16),
            ],
        ),
        compiler_params=pltpu.CompilerParams(
            dimension_semantics=("parallel", "parallel")),
    )(x_pad, w1f, w2f, b1, b2)

    # Strip channel padding, NHWC -> NCHW (in bf16), f32 to match PyTorch.
    return jnp.transpose(out_nhwc[..., :Cout], (0, 3, 1, 2)).astype(jnp.float32)


def basic_block_reference(x_nchw, w1_hwio, w2_hwio, s1, b1, s2, b2):
    """Pure-JAX reference (inference-mode BN), NCHW, f32."""
    w1_oihw = jnp.transpose(w1_hwio, (3, 2, 0, 1))
    w2_oihw = jnp.transpose(w2_hwio, (3, 2, 0, 1))
    dn = ("NCHW", "OIHW", "NCHW")
    prec = lax.Precision.HIGHEST

    out = lax.conv_general_dilated(x_nchw, w1_oihw, (1, 1), "SAME",
                                   dimension_numbers=dn, precision=prec)
    out = out * s1[None, :, None, None] + b1[None, :, None, None]
    out = jnp.maximum(out, 0.0)
    out = lax.conv_general_dilated(out, w2_oihw, (1, 1), "SAME",
                                   dimension_numbers=dn, precision=prec)
    out = out * s2[None, :, None, None] + b2[None, :, None, None]
    out = jnp.maximum(out + x_nchw, 0.0)
    return out


if __name__ == "__main__":
    key = jax.random.PRNGKey(0)
    N, C, H, W = 2, 4, 16, 16          # inplanes = planes = 4, stride = 1
    k_x, k_w1, k_w2, k_g1, k_b1, k_g2, k_b2, k_m1, k_v1, k_m2, k_v2 = \
        jax.random.split(key, 11)

    x = jax.random.normal(k_x, (N, C, H, W), dtype=jnp.float32)

    # conv weights (HWIO), Kaiming-ish scale.
    fan_in = 3 * 3 * C
    std = (2.0 / fan_in) ** 0.5
    w1 = jax.random.normal(k_w1, (3, 3, C, C), dtype=jnp.float32) * std
    w2 = jax.random.normal(k_w2, (3, 3, C, C), dtype=jnp.float32) * std

    # BatchNorm parameters + running stats (deterministic), folded to scale/bias.
    eps = 1e-5
    gamma1 = 1.0 + 0.1 * jax.random.normal(k_g1, (C,), dtype=jnp.float32)
    beta1 = 0.1 * jax.random.normal(k_b1, (C,), dtype=jnp.float32)
    gamma2 = 1.0 + 0.1 * jax.random.normal(k_g2, (C,), dtype=jnp.float32)
    beta2 = 0.1 * jax.random.normal(k_b2, (C,), dtype=jnp.float32)
    rmean1 = 0.1 * jax.random.normal(k_m1, (C,), dtype=jnp.float32)
    rvar1 = jax.random.uniform(k_v1, (C,), minval=0.5, maxval=1.5)
    rmean2 = 0.1 * jax.random.normal(k_m2, (C,), dtype=jnp.float32)
    rvar2 = jax.random.uniform(k_v2, (C,), minval=0.5, maxval=1.5)

    scale1 = gamma1 / jnp.sqrt(rvar1 + eps)
    bias1 = beta1 - rmean1 * scale1
    scale2 = gamma2 / jnp.sqrt(rvar2 + eps)
    bias2 = beta2 - rmean2 * scale2

    out = basic_block_pallas(x, w1, w2, scale1, bias1, scale2, bias2)
    out = jax.block_until_ready(out)

    ref = basic_block_reference(x, w1, w2, scale1, bias1, scale2, bias2)
    ref = jax.block_until_ready(ref)

    assert out.shape == (N, C, H, W)
    max_err = float(jnp.max(jnp.abs(out - ref)))
    assert jnp.allclose(out, ref, rtol=3e-2, atol=3e-2), \
        f"mismatch vs reference (max abs err {max_err:.4e})"

    print("KERNEL_OK")
</pallas_src>

<mosaic_0001>
module attributes {stable_mosaic.version = 11 : i64} {
  func.func @_basic_block_kernel(%arg0: i32, %arg1: i32, %arg2: memref<1x20x16x128xbf16, #tpu.memory_space<vmem>>, %arg3: memref<3x384x128xbf16, #tpu.memory_space<vmem>>, %arg4: memref<3x384x128xbf16, #tpu.memory_space<vmem>>, %arg5: memref<1x128xf32, #tpu.memory_space<vmem>>, %arg6: memref<1x128xf32, #tpu.memory_space<vmem>>, %arg7: memref<1x8x16x128xbf16, #tpu.memory_space<vmem>>, %arg8: memref<12x16x384xbf16, #tpu.memory_space<vmem>>, %arg9: memref<10x16x384xbf16, #tpu.memory_space<vmem>>) attributes {dimension_semantics = [#tpu.dimension_semantics<parallel>, #tpu.dimension_semantics<parallel>], iteration_bounds = array<i64: 2, 2>, scalar_prefetch = 0 : i64, scratch_operands = 2 : i64, tpu.core_type = #tpu.core_type<tc>, window_params = [{transform_indices = @transform_0, window_bounds = array<i64: 1, 20, 16, 128>}, {pipeline_mode = #tpu.pipeline_mode<synchronous>, transform_indices = @transform_1, window_bounds = array<i64: 3, 384, 128>}, {pipeline_mode = #tpu.pipeline_mode<synchronous>, transform_indices = @transform_2, window_bounds = array<i64: 3, 384, 128>}, {pipeline_mode = #tpu.pipeline_mode<synchronous>, transform_indices = @transform_3, window_bounds = array<i64: 1, 128>}, {pipeline_mode = #tpu.pipeline_mode<synchronous>, transform_indices = @transform_4, window_bounds = array<i64: 1, 128>}, {transform_indices = @transform_5, window_bounds = array<i64: 1, 8, 16, 128>}]} {
    %c8_i32 = arith.constant 8 : i32
    %0 = arith.muli %arg1, %c8_i32 : i32
    %1 = tpu.assume_multiple %0, 8 : i32
    %c0 = arith.constant 0 : index
    %2 = arith.index_cast %1 : i32 to index
    %c0_0 = arith.constant 0 : index
    %c0_1 = arith.constant 0 : index
    %3 = vector.load %arg2[%c0, %2, %c0_0, %c0_1] : memref<1x20x16x128xbf16, #tpu.memory_space<vmem>>, vector<1x12x16x128xbf16>
    %4 = vector.shape_cast %3 : vector<1x12x16x128xbf16> to vector<12x16x128xbf16>
    %c0_2 = arith.constant 0 : index
    %c0_3 = arith.constant 0 : index
    %c128 = arith.constant 128 : index
    %5 = vector.load %arg8[%c0_2, %c0_3, %c128] : memref<12x16x384xbf16, #tpu.memory_space<vmem>>, vector<12x16x128xbf16>
    tpu.vector_store %arg8[%c0_2, %c0_3, %c128], %4 {strides = array<i32>} : memref<12x16x384xbf16, #tpu.memory_space<vmem>>, vector<12x16x128xbf16>,
    %6 = vector.extract_strided_slice %4 {offsets = [0, 0, 0], sizes = [12, 15, 128], strides = [1, 1, 1]} : vector<12x16x128xbf16> to vector<12x15x128xbf16>
    %c0_4 = arith.constant 0 : index
    %c1 = arith.constant 1 : index
    %c0_5 = arith.constant 0 : index
    %7 = vector.load %arg8[%c0_4, %c1, %c0_5] : memref<12x16x384xbf16, #tpu.memory_space<vmem>>, vector<12x15x128xbf16>
    tpu.vector_store %arg8[%c0_4, %c1, %c0_5], %6 {strides = array<i32>} : memref<12x16x384xbf16, #tpu.memory_space<vmem>>, vector<12x15x128xbf16>,
    %cst = arith.constant 0.000000e+00 : bf16
    %8 = vector.broadcast %cst : bf16 to vector<12x1x128xbf16>
    %c0_6 = arith.constant 0 : index
    %c0_7 = arith.constant 0 : index
    %c0_8 = arith.constant 0 : index
    %9 = vector.load %arg8[%c0_6, %c0_7, %c0_8] : memref<12x16x384xbf16, #tpu.memory_space<vmem>>, vector<12x1x128xbf16>
    tpu.vector_store %arg8[%c0_6, %c0_7, %c0_8], %8 {strides = array<i32>} : memref<12x16x384xbf16, #tpu.memory_space<vmem>>, vector<12x1x128xbf16>,
    %10 = vector.extract_strided_slice %4 {offsets = [0, 1, 0], sizes = [12, 15, 128], strides = [1, 1, 1]} : vector<12x16x128xbf16> to vector<12x15x128xbf16>
    %c0_9 = arith.constant 0 : index
    %c0_10 = arith.constant 0 : index
    %c256 = arith.constant 256 : index
    %11 = vector.load %arg8[%c0_9, %c0_10, %c256] : memref<12x16x384xbf16, #tpu.memory_space<vmem>>, vector<12x15x128xbf16>
    tpu.vector_store %arg8[%c0_9, %c0_10, %c256], %10 {strides = array<i32>} : memref<12x16x384xbf16, #tpu.memory_space<vmem>>, vector<12x15x128xbf16>,
    %cst_11 = arith.constant 0.000000e+00 : bf16
    %12 = vector.broadcast %cst_11 : bf16 to vector<12x1x128xbf16>
    %c0_12 = arith.constant 0 : index
    %c15 = arith.constant 15 : index
    %c256_13 = arith.constant 256 : index
    %13 = vector.load %arg8[%c0_12, %c15, %c256_13] : memref<12x16x384xbf16, #tpu.memory_space<vmem>>, vector<12x1x128xbf16>
    tpu.vector_store %arg8[%c0_12, %c15, %c256_13], %12 {strides = array<i32>} : memref<12x16x384xbf16, #tpu.memory_space<vmem>>, vector<12x1x128xbf16>,
    %c0_14 = arith.constant 0 : index
    %c0_15 = arith.constant 0 : index
    %c0_16 = arith.constant 0 : index
    %14 = vector.load %arg8[%c0_14, %c0_15, %c0_16] : memref<12x16x384xbf16, #tpu.memory_space<vmem>>, vector<10x16x384xbf16>
    %15 = vector.shape_cast %14 : vector<10x16x384xbf16> to vector<160x384xbf16>
    %c0_17 = arith.constant 0 : index
    %c0_18 = arith.constant 0 : index
    %c0_19 = arith.constant 0 : index
    %16 = vector.load %arg3[%c0_17, %c0_18, %c0_19] : memref<3x384x128xbf16, #tpu.memory_space<vmem>>, vector<1x384x128xbf16>
    %17 = vector.shape_cast %16 : vector<1x384x128xbf16> to vector<384x128xbf16>
    %cst_20 = arith.constant dense<0.000000e+00> : vector<160x128xf32>
    %18 = tpu.matmul %15, %17, %cst_20 {dimension_numbers = #tpu.dot_dimension_numbers<[1], [0], [0], [1], [0, 0, 1, 1], [], []>} : vector<160x384xbf16>, vector<384x128xbf16>, vector<160x128xf32> -> vector<160x128xf32>
    %c1_21 = arith.constant 1 : index
    %c0_22 = arith.constant 0 : index
    %c0_23 = arith.constant 0 : index
    %19 = vector.load %arg8[%c1_21, %c0_22, %c0_23] : memref<12x16x384xbf16, #tpu.memory_space<vmem>>, vector<10x16x384xbf16>
    %20 = vector.shape_cast %19 : vector<10x16x384xbf16> to vector<160x384xbf16>
    %c1_24 = arith.constant 1 : index
    %c0_25 = arith.constant 0 : index
    %c0_26 = arith.constant 0 : index
    %21 = vector.load %arg3[%c1_24, %c0_25, %c0_26] : memref<3x384x128xbf16, #tpu.memory_space<vmem>>, vector<1x384x128xbf16>
    %22 = vector.shape_cast %21 : vector<1x384x128xbf16> to vector<384x128xbf16>
    %cst_27 = arith.constant dense<0.000000e+00> : vector<160x128xf32>
    %23 = tpu.matmul %20, %22, %cst_27 {dimension_numbers = #tpu.dot_dimension_numbers<[1], [0], [0], [1], [0, 0, 1, 1], [], []>} : vector<160x384xbf16>, vector<384x128xbf16>, vector<160x128xf32> -> vector<160x128xf32>
    %24 = arith.addf %18, %23 : vector<160x128xf32>
    %c2 = arith.constant 2 : index
    %c0_28 = arith.constant 0 : index
    %c0_29 = arith.constant 0 : index
    %25 = vector.load %arg8[%c2, %c0_28, %c0_29] : memref<12x16x384xbf16, #tpu.memory_space<vmem>>, vector<10x16x384xbf16>
    %26 = vector.shape_cast %25 : vector<10x16x384xbf16> to vector<160x384xbf16>
    %c2_30 = arith.constant 2 : index
    %c0_31 = arith.constant 0 : index
    %c0_32 = arith.constant 0 : index
    %27 = vector.load %arg3[%c2_30, %c0_31, %c0_32] : memref<3x384x128xbf16, #tpu.memory_space<vmem>>, vector<1x384x128xbf16>
    %28 = vector.shape_cast %27 : vector<1x384x128xbf16> to vector<384x128xbf16>
    %cst_33 = arith.constant dense<0.000000e+00> : vector<160x128xf32>
    %29 = tpu.matmul %26, %28, %cst_33 {dimension_numbers = #tpu.dot_dimension_numbers<[1], [0], [0], [1], [0, 0, 1, 1], [], []>} : vector<160x384xbf16>, vector<384x128xbf16>, vector<160x128xf32> -> vector<160x128xf32>
    %30 = arith.addf %24, %29 : vector<160x128xf32>
    %c0_34 = arith.constant 0 : index
    %c0_35 = arith.constant 0 : index
    %31 = vector.load %arg5[%c0_34, %c0_35] : memref<1x128xf32, #tpu.memory_space<vmem>>, vector<1x128xf32>
    %32 = vector.broadcast %31 : vector<1x128xf32> to vector<160x128xf32>
    %33 = arith.addf %30, %32 : vector<160x128xf32>
    %cst_36 = arith.constant 0.000000e+00 : f32
    %34 = vector.broadcast %cst_36 : f32 to vector<160x128xf32>
    %35 = arith.maximumf %33, %34 : vector<160x128xf32>
    %36 = vector.shape_cast %35 : vector<160x128xf32> to vector<10x16x128xf32>
    %37 = arith.truncf %36 : vector<10x16x128xf32> to vector<10x16x128xbf16>
    %c0_37 = arith.constant 0 : index
    %c0_38 = arith.constant 0 : index
    %c128_39 = arith.constant 128 : index
    %38 = vector.load %arg9[%c0_37, %c0_38, %c128_39] : memref<10x16x384xbf16, #tpu.memory_space<vmem>>, vector<10x16x128xbf16>
    tpu.vector_store %arg9[%c0_37, %c0_38, %c128_39], %37 {strides = array<i32>} : memref<10x16x384xbf16, #tpu.memory_space<vmem>>, vector<10x16x128xbf16>,
    %39 = vector.extract_strided_slice %37 {offsets = [0, 0, 0], sizes = [10, 15, 128], strides = [1, 1, 1]} : vector<10x16x128xbf16> to vector<10x15x128xbf16>
    %c0_40 = arith.constant 0 : index
    %c1_41 = arith.constant 1 : index
    %c0_42 = arith.constant 0 : index
    %40 = vector.load %arg9[%c0_40, %c1_41, %c0_42] : memref<10x16x384xbf16, #tpu.memory_space<vmem>>, vector<10x15x128xbf16>
    tpu.vector_store %arg9[%c0_40, %c1_41, %c0_42], %39 {strides = array<i32>} : memref<10x16x384xbf16, #tpu.memory_space<vmem>>, vector<10x15x128xbf16>,
    %cst_43 = arith.constant 0.000000e+00 : bf16
    %41 = vector.broadcast %cst_43 : bf16 to vector<10x1x128xbf16>
    %c0_44 = arith.constant 0 : index
    %c0_45 = arith.constant 0 : index
    %c0_46 = arith.constant 0 : index
    %42 = vector.load %arg9[%c0_44, %c0_45, %c0_46] : memref<10x16x384xbf16, #tpu.memory_space<vmem>>, vector<10x1x128xbf16>
    tpu.vector_store %arg9[%c0_44, %c0_45, %c0_46], %41 {strides = array<i32>} : memref<10x16x384xbf16, #tpu.memory_space<vmem>>, vector<10x1x128xbf16>,
    %43 = vector.extract_strided_slice %37 {offsets = [0, 1, 0], sizes = [10, 15, 128], strides = [1, 1, 1]} : vector<10x16x128xbf16> to vector<10x15x128xbf16>
    %c0_47 = arith.constant 0 : index
    %c0_48 = arith.constant 0 : index
    %c256_49 = arith.constant 256 : index
    %44 = vector.load %arg9[%c0_47, %c0_48, %c256_49] : memref<10x16x384xbf16, #tpu.memory_space<vmem>>, vector<10x15x128xbf16>
    tpu.vector_store %arg9[%c0_47, %c0_48, %c256_49], %43 {strides = array<i32>} : memref<10x16x384xbf16, #tpu.memory_space<vmem>>, vector<10x15x128xbf16>,
    %cst_50 = arith.constant 0.000000e+00 : bf16
    %45 = vector.broadcast %cst_50 : bf16 to vector<10x1x128xbf16>
    %c0_51 = arith.constant 0 : index
    %c15_52 = arith.constant 15 : index
    %c256_53 = arith.constant 256 : index
    %46 = vector.load %arg9[%c0_51, %c15_52, %c256_53] : memref<10x16x384xbf16, #tpu.memory_space<vmem>>, vector<10x1x128xbf16>
    tpu.vector_store %arg9[%c0_51, %c15_52, %c256_53], %45 {strides = array<i32>} : memref<10x16x384xbf16, #tpu.memory_space<vmem>>, vector<10x1x128xbf16>,
    %c0_i32 = arith.constant 0 : i32
    %47 = arith.cmpi eq, %arg1, %c0_i32 : i32
    %48 = arith.extui %47 : i1 to i32
    %c0_i32_54 = arith.constant 0 : i32
    %49 = arith.cmpi ne, %48, %c0_i32_54 : i32
    scf.if %49 {
      %cst_84 = arith.constant 0.000000e+00 : bf16
      %84 = vector.broadcast %cst_84 : bf16 to vector<1x16x384xbf16>
      %c0_85 = arith.constant 0 : index
      %c0_86 = arith.constant 0 : index
      %c0_87 = arith.constant 0 : index
      %85 = vector.load %arg9[%c0_85, %c0_86, %c0_87] : memref<10x16x384xbf16, #tpu.memory_space<vmem>>, vector<1x16x384xbf16>
      tpu.vector_store %arg9[%c0_85, %c0_86, %c0_87], %84 {strides = array<i32>} : memref<10x16x384xbf16, #tpu.memory_space<vmem>>, vector<1x16x384xbf16>,
    } else {
    }
    %c1_i32 = arith.constant 1 : i32
    %50 = arith.cmpi eq, %arg1, %c1_i32 : i32
    %51 = arith.extui %50 : i1 to i32
    %c0_i32_55 = arith.constant 0 : i32
    %52 = arith.cmpi ne, %51, %c0_i32_55 : i32
    scf.if %52 {
      %cst_84 = arith.constant 0.000000e+00 : bf16
      %84 = vector.broadcast %cst_84 : bf16 to vector<1x16x384xbf16>
      %c9 = arith.constant 9 : index
      %c0_85 = arith.constant 0 : index
      %c0_86 = arith.constant 0 : index
      %85 = vector.load %arg9[%c9, %c0_85, %c0_86] : memref<10x16x384xbf16, #tpu.memory_space<vmem>>, vector<1x16x384xbf16>
      tpu.vector_store %arg9[%c9, %c0_85, %c0_86], %84 {strides = array<i32>} : memref<10x16x384xbf16, #tpu.memory_space<vmem>>, vector<1x16x384xbf16>,
    } else {
    }
    %c0_56 = arith.constant 0 : index
    %c0_57 = arith.constant 0 : index
    %c0_58 = arith.constant 0 : index
    %53 = vector.load %arg9[%c0_56, %c0_57, %c0_58] : memref<10x16x384xbf16, #tpu.memory_space<vmem>>, vector<8x16x384xbf16>
    %54 = vector.shape_cast %53 : vector<8x16x384xbf16> to vector<128x384xbf16>
    %c0_59 = arith.constant 0 : index
    %c0_60 = arith.constant 0 : index
    %c0_61 = arith.constant 0 : index
    %55 = vector.load %arg4[%c0_59, %c0_60, %c0_61] : memref<3x384x128xbf16, #tpu.memory_space<vmem>>, vector<1x384x128xbf16>
    %56 = vector.shape_cast %55 : vector<1x384x128xbf16> to vector<384x128xbf16>
    %cst_62 = arith.constant dense<0.000000e+00> : vector<128x128xf32>
    %57 = tpu.matmul %54, %56, %cst_62 {dimension_numbers = #tpu.dot_dimension_numbers<[1], [0], [0], [1], [0, 0, 1, 1], [], []>} : vector<128x384xbf16>, vector<384x128xbf16>, vector<128x128xf32> -> vector<128x128xf32>
    %c1_63 = arith.constant 1 : index
    %c0_64 = arith.constant 0 : index
    %c0_65 = arith.constant 0 : index
    %58 = vector.load %arg9[%c1_63, %c0_64, %c0_65] : memref<10x16x384xbf16, #tpu.memory_space<vmem>>, vector<8x16x384xbf16>
    %59 = vector.shape_cast %58 : vector<8x16x384xbf16> to vector<128x384xbf16>
    %c1_66 = arith.constant 1 : index
    %c0_67 = arith.constant 0 : index
    %c0_68 = arith.constant 0 : index
    %60 = vector.load %arg4[%c1_66, %c0_67, %c0_68] : memref<3x384x128xbf16, #tpu.memory_space<vmem>>, vector<1x384x128xbf16>
    %61 = vector.shape_cast %60 : vector<1x384x128xbf16> to vector<384x128xbf16>
    %cst_69 = arith.constant dense<0.000000e+00> : vector<128x128xf32>
    %62 = tpu.matmul %59, %61, %cst_69 {dimension_numbers = #tpu.dot_dimension_numbers<[1], [0], [0], [1], [0, 0, 1, 1], [], []>} : vector<128x384xbf16>, vector<384x128xbf16>, vector<128x128xf32> -> vector<128x128xf32>
    %63 = arith.addf %57, %62 : vector<128x128xf32>
    %c2_70 = arith.constant 2 : index
    %c0_71 = arith.constant 0 : index
    %c0_72 = arith.constant 0 : index
    %64 = vector.load %arg9[%c2_70, %c0_71, %c0_72] : memref<10x16x384xbf16, #tpu.memory_space<vmem>>, vector<8x16x384xbf16>
    %65 = vector.shape_cast %64 : vector<8x16x384xbf16> to vector<128x384xbf16>
    %c2_73 = arith.constant 2 : index
    %c0_74 = arith.constant 0 : index
    %c0_75 = arith.constant 0 : index
    %66 = vector.load %arg4[%c2_73, %c0_74, %c0_75] : memref<3x384x128xbf16, #tpu.memory_space<vmem>>, vector<1x384x128xbf16>
    %67 = vector.shape_cast %66 : vector<1x384x128xbf16> to vector<384x128xbf16>
    %cst_76 = arith.constant dense<0.000000e+00> : vector<128x128xf32>
    %68 = tpu.matmul %65, %67, %cst_76 {dimension_numbers = #tpu.dot_dimension_numbers<[1], [0], [0], [1], [0, 0, 1, 1], [], []>} : vector<128x384xbf16>, vector<384x128xbf16>, vector<128x128xf32> -> vector<128x128xf32>
    %69 = arith.addf %63, %68 : vector<128x128xf32>
    %70 = vector.extract_strided_slice %4 {offsets = [2, 0, 0], sizes = [8, 16, 128], strides = [1, 1, 1]} : vector<12x16x128xbf16> to vector<8x16x128xbf16>
    %71 = vector.shape_cast %70 : vector<8x16x128xbf16> to vector<128x128xbf16>
    %72 = arith.extf %71 : vector<128x128xbf16> to vector<128x128xf32>
    %c0_77 = arith.constant 0 : index
    %c0_78 = arith.constant 0 : index
    %73 = vector.load %arg6[%c0_77, %c0_78] : memref<1x128xf32, #tpu.memory_space<vmem>>, vector<1x128xf32>
    %74 = vector.broadcast %73 : vector<1x128xf32> to vector<128x128xf32>
    %75 = arith.addf %69, %74 : vector<128x128xf32>
    %76 = arith.addf %75, %72 : vector<128x128xf32>
    %cst_79 = arith.constant 0.000000e+00 : f32
    %77 = vector.broadcast %cst_79 : f32 to vector<128x128xf32>
    %78 = arith.maximumf %76, %77 : vector<128x128xf32>
    %79 = vector.shape_cast %78 : vector<128x128xf32> to vector<8x16x128xf32>
    %80 = arith.truncf %79 : vector<8x16x128xf32> to vector<8x16x128xbf16>
    %c0_80 = arith.constant 0 : index
    %c0_81 = arith.constant 0 : index
    %c0_82 = arith.constant 0 : index
    %c0_83 = arith.constant 0 : index
    %81 = vector.load %arg7[%c0_80, %c0_81, %c0_82, %c0_83] : memref<1x8x16x128xbf16, #tpu.memory_space<vmem>>, vector<1x8x16x128xbf16>
    %82 = vector.shape_cast %81 : vector<1x8x16x128xbf16> to vector<8x16x128xbf16>
    %83 = vector.shape_cast %80 : vector<8x16x128xbf16> to vector<1x8x16x128xbf16>
    tpu.vector_store %arg7[%c0_80, %c0_81, %c0_82, %c0_83], %83 {strides = array<i32>} : memref<1x8x16x128xbf16, #tpu.memory_space<vmem>>, vector<1x8x16x128xbf16>,
    return
  }
  func.func @transform_0(%arg0: i32, %arg1: i32) -> (i32, i32, i32, i32) {
    %c0_i32 = arith.constant 0 : i32
    %c0_i32_0 = arith.constant 0 : i32
    %c0_i32_1 = arith.constant 0 : i32
    %c0_i32_2 = arith.constant 0 : i32
    return %arg0, %c0_i32, %c0_i32_0, %c0_i32_1 : i32, i32, i32, i32
  }
  func.func @transform_1(%arg0: i32, %arg1: i32) -> (i32, i32, i32) {
    %c0_i32 = arith.constant 0 : i32
    %c0_i32_0 = arith.constant 0 : i32
    %c0_i32_1 = arith.constant 0 : i32
    %c0_i32_2 = arith.constant 0 : i32
    return %c0_i32, %c0_i32_0, %c0_i32_1 : i32, i32, i32
  }
  func.func @transform_2(%arg0: i32, %arg1: i32) -> (i32, i32, i32) {
    %c0_i32 = arith.constant 0 : i32
    %c0_i32_0 = arith.constant 0 : i32
    %c0_i32_1 = arith.constant 0 : i32
    %c0_i32_2 = arith.constant 0 : i32
    return %c0_i32, %c0_i32_0, %c0_i32_1 : i32, i32, i32
  }
  func.func @transform_3(%arg0: i32, %arg1: i32) -> (i32, i32) {
    %c0_i32 = arith.constant 0 : i32
    %c0_i32_0 = arith.constant 0 : i32
    %c0_i32_1 = arith.constant 0 : i32
    return %c0_i32, %c0_i32_0 : i32, i32
  }
  func.func @transform_4(%arg0: i32, %arg1: i32) -> (i32, i32) {
    %c0_i32 = arith.constant 0 : i32
    %c0_i32_0 = arith.constant 0 : i32
    %c0_i32_1 = arith.constant 0 : i32
    return %c0_i32, %c0_i32_0 : i32, i32
  }
  func.func @transform_5(%arg0: i32, %arg1: i32) -> (i32, i32, i32, i32) {
    %c0_i32 = arith.constant 0 : i32
    %c0_i32_0 = arith.constant 0 : i32
    %c0_i32_1 = arith.constant 0 : i32
    return %arg0, %arg1, %c0_i32, %c0_i32_0 : i32, i32, i32, i32
  }
}

</mosaic_0001>

<llo_original>
// kernel: tpu_custom_call.1
$region0: #{tpu_custom_call.1}
  #allocation0 [shape = 'u32[]', space=smem, size = 0x4, offset = 0x4, fixed_abs, tag = 'smem constant byte address 0x4 - core index']
  #allocation1 [shape = 'u32[144,128]{1,0:T(1,128)}', space=vmem, size = 0x12000, scoped, tag = 'internal scratch']
  #allocation2 [shape = 'bf16[12,16,384]{2,1,0:T(16,128)(2,1)}', space=vmem, size = 0x24000, scoped, tag = 'scratch operand']
  #allocation3 [shape = 'bf16[10,16,384]{2,1,0:T(16,128)(2,1)}', space=vmem, size = 0x1e000, scoped, tag = 'scratch operand']
  %s0 = inlined_call_operand.hbm [shape: bf16[2,20,16,128], index: 0, kind: input, shape index: {}]
  %s1 = inlined_call_operand.hbm [shape: bf16[3,384,128], index: 1, kind: input, shape index: {}]
  %s2 = inlined_call_operand.hbm [shape: bf16[3,384,128], index: 2, kind: input, shape index: {}]
  %s3 = inlined_call_operand.vmem [shape: f32[1,128], index: 3, kind: input, shape index: {}]
  %s4 = inlined_call_operand.vmem [shape: f32[1,128], index: 4, kind: input, shape index: {}]
  %s5 = inlined_call_operand.hbm [shape: bf16[2,16,16,128], index: 5, kind: output, shape index: {}]
  %s6 = sld [smem:[#allocation0]]
  $region73: #{tpu_custom_call.1} parent=0
    _
  %s8 = ssub.s32 1, %s6
  %s9 = scalar_select 0, %s8, %s6
  $region1: #{tpu_custom_call.1} parent=0
    #allocation4 [shape = 'u8[163840]{0}', space=vmem, size = 0x28000, scoped, tag = 'input window, operand 0']
    #allocation5 [shape = 's32[2]{0}', space=sflag, size = 0x8, scoped, tag = 'scoped memory for tpu_custom_call.1']
    #allocation6 [shape = 's32[2]{0}', space=sflag, size = 0x8, scoped, tag = 'scoped memory for tpu_custom_call.1']
    #allocation7 [shape = 'u8[294912]{0}', space=vmem, size = 0x48000, scoped, tag = 'input window, operand 1, single buffered']
    #allocation8 [shape = 's32[1]{0}', space=sflag, size = 0x4, scoped, tag = 'scoped memory for tpu_custom_call.1']
    #allocation9 [shape = 'u8[294912]{0}', space=vmem, size = 0x48000, scoped, tag = 'input window, operand 2, single buffered']
    #allocation10 [shape = 'u8[65536]{0}', space=vmem, size = 0x10000, scoped, tag = 'output window, operand 0']
    %10 = vsyncpa [#allocation5], 0
    %s11 = scalar_lea.sflag [#allocation5], 1
    %12 = vsyncpa %s11, 0
    %13 = vsyncpa [#allocation8], 0
    %14 = vsyncpa [#allocation6], 0
    %s15 = scalar_lea.sflag [#allocation6], 1
    %16 = vsyncpa %s15, 0
    loop: start=0, step=1, limit=6
    $region2: #{tpu_custom_call.1} parent=1 // loop_pre_header
      _
    $region3: #{tpu_custom_call.1} parent=1 // loop_header
      %s18 = sphi 0, %s22
      %p19 = scmp.ge.s32.totalorder %s18, 6
      %s25 = sphi 0, %s37
      %s26 = sphi 0, %s33
      %s27 = sphi 0, %s25
      %s28 = sphi 0, %s26
      %s29 = sphi 0, %s27
      %s30 = sphi 0, %s28
      %s40 = sphi 0, %s42
      %s43 = sphi 0, %s40
      %s44 = sphi 0, %s43
      %s60 = sphi 0, %s44
      %s64 = sphi 0, %s64
      %s66 = sphi 0, %s64
      %s67 = sphi 0, %s66
      %s81 = sphi 0, %s67
      %s85 = sphi 0, %s85
      %s87 = sphi 0, %s85
      %s88 = sphi 0, %s87
      %s102 = sphi 0, %s88
      %s106 = sphi 0, %s106
      %s108 = sphi 0, %s106
      %s109 = sphi 0, %s108
      %s123 = sphi 0, %s109
      %s127 = sphi 0, %s127
      %s129 = sphi 0, %s127
      %s130 = sphi 0, %s129
      %s144 = sphi 0, %s130
      %s152 = sphi 0, %s154
      %s155 = sphi 0, %s152
      %s156 = sphi 0, %s155
      %s172 = sphi 0, %s156
    $region4: #{tpu_custom_call.1} parent=1 // loop_header_branch
      %21 = sbr.rel (%p19) target = $region8
    $region5: #{tpu_custom_call.1} parent=1 // loop_body
      %s23 = ssub.s32 %s18, 1
      %s24 = ssub.s32 %s18, 2
      %s31 = sadd.s32 1, %s26
      %p32 = scmp.ge.s32.totalorder %s31, 2
      %s33 = scalar_select %p32, 0, %s31
      %s34 = sadd.s32 1, %s25
      %s35 = scalar_select %p32, %s34, %s25
      %p36 = scmp.ge.s32.totalorder %s35, 2
      %s37 = scalar_select %p36, 0, %s35
      %s38 = ssub.s32 %s25, %s37
      %p39 = scmp.eq.s32.totalorder %s38, 0
      %s41 = sadd.s32 %s40, 1
      %s42 = scalar_select %p39, %s40, %s41
      %p45 = pneg %p39
      %p46 = scmp.eq.s32.totalorder %s18, 3
      %p47 = por %p45, %p46
      %p48 = scmp.ne.s32.totalorder %s40, %s43
      %p49 = scmp.eq.s32.totalorder %s18, 0
      %p50 = por %p48, %p49
      %p51 = scmp.ne.s32.totalorder %s40, %s43
      %p52 = scmp.eq.s32.totalorder %s23, 3
      %p53 = por %p51, %p52
      %p54 = scmp.ne.s32.totalorder %s43, %s44
      %p55 = scmp.eq.s32.totalorder %s23, 0
      %p56 = por %p54, %p55
      %p57 = scmp.ne.s32.totalorder %s43, %s44
      %p58 = scmp.eq.s32.totalorder %s24, 3
      %p59 = por %p57, %p58
      %p61 = scmp.ne.s32.totalorder %s44, %s60
      %p62 = scmp.eq.s32.totalorder %s24, 0
      %p63 = por %p61, %p62
      %s65 = sadd.s32 %s64, 1
      %p68 = scmp.eq.s32.totalorder %s18, 3
      %p69 = scmp.ne.s32.totalorder %s64, %s66
      %p70 = scmp.eq.s32.totalorder %s18, 0
      %p71 = por %p69, %p70
      %p72 = scmp.ne.s32.totalorder %s64, %s66
      %p73 = scmp.eq.s32.totalorder %s23, 3
      %p74 = por %p72, %p73
      %p75 = scmp.ne.s32.totalorder %s66, %s67
      %p76 = scmp.eq.s32.totalorder %s23, 0
      %p77 = por %p75, %p76
      %p78 = scmp.ne.s32.totalorder %s66, %s67
      %p79 = scmp.eq.s32.totalorder %s24, 3
      %p80 = por %p78, %p79
      %p82 = scmp.ne.s32.totalorder %s67, %s81
      %p83 = scmp.eq.s32.totalorder %s24, 0
      %p84 = por %p82, %p83
      %s86 = sadd.s32 %s85, 1
      %p89 = scmp.eq.s32.totalorder %s18, 3
      %p90 = scmp.ne.s32.totalorder %s85, %s87
      %p91 = scmp.eq.s32.totalorder %s18, 0
      %p92 = por %p90, %p91
      %p93 = scmp.ne.s32.totalorder %s85, %s87
      %p94 = scmp.eq.s32.totalorder %s23, 3
      %p95 = por %p93, %p94
      %p96 = scmp.ne.s32.totalorder %s87, %s88
      %p97 = scmp.eq.s32.totalorder %s23, 0
      %p98 = por %p96, %p97
      %p99 = scmp.ne.s32.totalorder %s87, %s88
      %p100 = scmp.eq.s32.totalorder %s24, 3
      %p101 = por %p99, %p100
      %p103 = scmp.ne.s32.totalorder %s88, %s102
      %p104 = scmp.eq.s32.totalorder %s24, 0
      %p105 = por %p103, %p104
      %s107 = sadd.s32 %s106, 1
      %p110 = scmp.eq.s32.totalorder %s18, 3
      %p111 = scmp.ne.s32.totalorder %s106, %s108
      %p112 = scmp.eq.s32.totalorder %s18, 0
      %p113 = por %p111, %p112
      %p114 = scmp.ne.s32.totalorder %s106, %s108
      %p115 = scmp.eq.s32.totalorder %s23, 3
      %p116 = por %p114, %p115
      %p117 = scmp.ne.s32.totalorder %s108, %s109
      %p118 = scmp.eq.s32.totalorder %s23, 0
      %p119 = por %p117, %p118
      %p120 = scmp.ne.s32.totalorder %s108, %s109
      %p121 = scmp.eq.s32.totalorder %s24, 3
      %p122 = por %p120, %p121
      %p124 = scmp.ne.s32.totalorder %s109, %s123
      %p125 = scmp.eq.s32.totalorder %s24, 0
      %p126 = por %p124, %p125
      %s128 = sadd.s32 %s127, 1
      %p131 = scmp.eq.s32.totalorder %s18, 3
      %p132 = scmp.ne.s32.totalorder %s127, %s129
      %p133 = scmp.eq.s32.totalorder %s18, 0
      %p134 = por %p132, %p133
      %p135 = scmp.ne.s32.totalorder %s127, %s129
      %p136 = scmp.eq.s32.totalorder %s23, 3
      %p137 = por %p135, %p136
      %p138 = scmp.ne.s32.totalorder %s129, %s130
      %p139 = scmp.eq.s32.totalorder %s23, 0
      %p140 = por %p138, %p139
      %p141 = scmp.ne.s32.totalorder %s129, %s130
      %p142 = scmp.eq.s32.totalorder %s24, 3
      %p143 = por %p141, %p142
      %p145 = scmp.ne.s32.totalorder %s130, %s144
      %p146 = scmp.eq.s32.totalorder %s24, 0
      %p147 = por %p145, %p146
      %s148 = ssub.s32 %s25, %s37
      %s149 = ssub.s32 %s26, %s33
      %s150 = sor.u32 %s148, %s149
      %p151 = scmp.eq.s32.totalorder %s150, 0
      %s153 = sadd.s32 %s152, 1
      %s154 = scalar_select %p151, %s152, %s153
      %p157 = pneg %p151
      %p158 = scmp.eq.s32.totalorder %s18, 3
      %p159 = por %p157, %p158
      %p160 = scmp.ne.s32.totalorder %s152, %s155
      %p161 = scmp.eq.s32.totalorder %s18, 0
      %p162 = por %p160, %p161
      %p163 = scmp.ne.s32.totalorder %s152, %s155
      %p164 = scmp.eq.s32.totalorder %s23, 3
      %p165 = por %p163, %p164
      %p166 = scmp.ne.s32.totalorder %s155, %s156
      %p167 = scmp.eq.s32.totalorder %s23, 0
      %p168 = por %p166, %p167
      %p169 = scmp.ne.s32.totalorder %s155, %s156
      %p170 = scmp.eq.s32.totalorder %s24, 3
      %p171 = por %p169, %p170
      %p173 = scmp.ne.s32.totalorder %s156, %s172
      %p174 = scmp.eq.s32.totalorder %s24, 0
      %p175 = por %p173, %p174
      %p176 = scmp.le.s32.totalorder 1, %s18
      %p177 = scmp.lt.s32.totalorder %s18, 5
      %p178 = pnand %p176, %p177
      %p179 = pneg %p178
      // Predicated region
      $region9: #{tpu_custom_call.1} parent=5 // pred_check
        _
      $region10: #{tpu_custom_call.1} parent=5 // pred_check_branch
        %181 = sbr.rel (%p178) target = $region12
      $region11: #{tpu_custom_call.1} parent=5 // pred_region
        %s182 = ssub.s32 %s18, 1
        // Predicated region
        $region13: #{tpu_custom_call.1} parent=11 // pred_check
          %p183 = pneg %p77
        $region14: #{tpu_custom_call.1} parent=11 // pred_check_branch
          %185 = sbr.rel (%p183) target = $region16
        $region15: #{tpu_custom_call.1} parent=11 // pred_region
          %s187 = ssub.s32 9216, 9216
          %188 = vsyncadd [#allocation8], %s187
          %s189 = sshll.u32 [#allocation7], 4
          %s190 = int_to_ptr.vmem [resolvable:$true] %s189
          %195 = dma.hbm_to_vmem [thread:$0]  %s1, 9216, %s190, [#allocation8], 64, 64, 4
        $region16: #{tpu_custom_call.1} parent=11 // pred_fallthru
          _
        // Predicated region
        $region17: #{tpu_custom_call.1} parent=11 // pred_check
          %p196 = pneg %p98
        $region18: #{tpu_custom_call.1} parent=11 // pred_check_branch
          %198 = sbr.rel (%p196) target = $region20
        $region19: #{tpu_custom_call.1} parent=11 // pred_region
          %s200 = ssub.s32 9216, 9216
          %201 = vsyncadd [#allocation8], %s200
          %s202 = sshll.u32 [#allocation9], 4
          %s203 = int_to_ptr.vmem [resolvable:$true] %s202
          %208 = dma.hbm_to_vmem [thread:$0]  %s2, 9216, %s203, [#allocation8], 64, 64, 4
        $region20: #{tpu_custom_call.1} parent=11 // pred_fallthru
          _
        // Predicated region
        $region21: #{tpu_custom_call.1} parent=11 // pred_check
          %p209 = pneg %p119
        $region22: #{tpu_custom_call.1} parent=11 // pred_check_branch
          %211 = sbr.rel (%p209) target = $region24
        $region23: #{tpu_custom_call.1} parent=11 // pred_region
          _
        $region24: #{tpu_custom_call.1} parent=11 // pred_fallthru
          _
        // Predicated region
        $region25: #{tpu_custom_call.1} parent=11 // pred_check
          %p212 = pneg %p140
        $region26: #{tpu_custom_call.1} parent=11 // pred_check_branch
          %214 = sbr.rel (%p212) target = $region28
        $region27: #{tpu_custom_call.1} parent=11 // pred_region
          _
        $region28: #{tpu_custom_call.1} parent=11 // pred_fallthru
          _
      $region12: #{tpu_custom_call.1} parent=5 // pred_fallthru
        _
      %p215 = scmp.lt.s32.totalorder %s18, 4
      // Predicated region
      $region29: #{tpu_custom_call.1} parent=5 // pred_check
        %p216 = pneg %p215
      $region30: #{tpu_custom_call.1} parent=5 // pred_check_branch
        %218 = sbr.rel (%p216) target = $region32
      $region31: #{tpu_custom_call.1} parent=5 // pred_region
        // Predicated region
        $region33: #{tpu_custom_call.1} parent=31 // pred_check
          %p219 = pneg %p50
        $region34: #{tpu_custom_call.1} parent=31 // pred_check_branch
          %221 = sbr.rel (%p219) target = $region36
        $region35: #{tpu_custom_call.1} parent=31 // pred_region
          %s222 = sand.u32 %s40, 1
          %s223 = scalar_lea.sflag [#allocation5], %s222
          %s224 = sand.u32 %s40, 1
          %s225 = smul.addr %s224, 160
          %s226 = scalar_lea.vmem [#allocation4], %s225
          %s228 = ssub.s32 2560, 2560
          %229 = vsyncadd %s223, %s228
          %s230 = smul.addr %s25, 40
          %s231 = smul.addr %s230, 64
          %s232 = scalar_lea.hbm %s0, %s231
          %s233 = sshll.u32 %s226, 4
          %s234 = int_to_ptr.vmem [resolvable:$true] %s233
          %239 = dma.hbm_to_vmem [thread:$0]  %s232, 2560, %s234, %s223, 64, 64, 4
        $region36: #{tpu_custom_call.1} parent=31 // pred_fallthru
          _
      $region32: #{tpu_custom_call.1} parent=5 // pred_fallthru
        _
      %p240 = scmp.le.s32.totalorder 1, %s18
      %p241 = scmp.lt.s32.totalorder %s18, 5
      %p242 = pnand %p240, %p241
      %p243 = pneg %p242
      // Predicated region
      $region37: #{tpu_custom_call.1} parent=5 // pred_check
        _
      $region38: #{tpu_custom_call.1} parent=5 // pred_check_branch
        %245 = sbr.rel (%p242) target = $region40
      $region39: #{tpu_custom_call.1} parent=5 // pred_region
        %s246 = ssub.s32 %s18, 1
        %s247 = sand.u32 %s43, 1
        %s248 = scalar_lea.sflag [#allocation5], %s247
        %s249 = sand.u32 %s43, 1
        %s250 = smul.addr %s249, 160
        %s251 = scalar_lea.vmem [#allocation4], %s250
        // Predicated region
        $region41: #{tpu_custom_call.1} parent=39 // pred_check
          %p252 = pneg %p56
        $region42: #{tpu_custom_call.1} parent=39 // pred_check_branch
          %254 = sbr.rel (%p252) target = $region44
        $region43: #{tpu_custom_call.1} parent=39 // pred_region
          %255 = dma.done %s248, 2560
        $region44: #{tpu_custom_call.1} parent=39 // pred_fallthru
          _
        // Predicated region
        $region45: #{tpu_custom_call.1} parent=39 // pred_check
          %p256 = pneg %p77
        $region46: #{tpu_custom_call.1} parent=39 // pred_check_branch
          %258 = sbr.rel (%p256) target = $region48
        $region47: #{tpu_custom_call.1} parent=39 // pred_region
          %259 = dma.done [#allocation8], 9216
        $region48: #{tpu_custom_call.1} parent=39 // pred_fallthru
          _
        // Predicated region
        $region49: #{tpu_custom_call.1} parent=39 // pred_check
          %p260 = pneg %p98
        $region50: #{tpu_custom_call.1} parent=39 // pred_check_branch
          %262 = sbr.rel (%p260) target = $region52
        $region51: #{tpu_custom_call.1} parent=39 // pred_region
          %263 = dma.done [#allocation8], 9216
        $region52: #{tpu_custom_call.1} parent=39 // pred_fallthru
          _
        %s264 = sand.u32 %s43, 1
        %s265 = scalar_lea.sflag [#allocation5], %s264
        %s266 = sand.u32 %s43, 1
        %s267 = smul.addr %s266, 160
        %s268 = scalar_lea.vmem [#allocation4], %s267
        %p269 = pneg %p56
        %p270 = pneg %p53
        %p271 = pneg %p77
        %p272 = pneg %p74
        %p273 = pneg %p98
        %p274 = pneg %p95
        %p275 = pneg %p119
        %p276 = pneg %p116
        %p277 = pneg %p140
        %p278 = pneg %p137
        %p279 = pneg %p168
        %p280 = pneg %p165
        %s281 = sand.u32 %s155, 1
        %s282 = scalar_lea.sflag [#allocation6], %s281
        %s283 = sand.u32 %s155, 1
        %s284 = smul.addr %s283, 64
        %s285 = scalar_lea.vmem [#allocation10], %s284
        %s286 = smul.u32 8, %s28
        %s288 = smul.u32 %s28, 8
        %s289 = smul.u32 %s288, 2
        %s290 = smul.addr %s289, 4
        %s291 = scalar_lea.vmem %s251, %s290 [#allocation4]
        %v292 = vld [vmem:[%s291] sm:$0xf]
        %v293 = vld [vmem:[%s291 + $0x4] sm:$0xf]
        %v294 = vld [vmem:[%s291 + $0x8] sm:$0xf]
        %v295 = vld [vmem:[%s291 + $0xc] sm:$0xf]
        %v296 = vld [vmem:[%s291 + $0x10] sm:$0xf]
        %v297 = vld [vmem:[%s291 + $0x14] sm:$0xf]
        %v298 = vld [vmem:[%s291 + $0x18] sm:$0xf]
        %v299 = vld [vmem:[%s291 + $0x1c] sm:$0xf]
        %v300 = vld [vmem:[%s291 + $0x20] sm:$0xf]
        %v301 = vld [vmem:[%s291 + $0x24] sm:$0xf]
        %v302 = vld [vmem:[%s291 + $0x28] sm:$0xf]
        %v303 = vld [vmem:[%s291 + $0x2c] sm:$0xf]
        %v304 = vld [vmem:[%s291 + $0x30] sm:$0xf]
        %v305 = vld [vmem:[%s291 + $0x34] sm:$0xf]
        %v306 = vld [vmem:[%s291 + $0x38] sm:$0xf]
        %v307 = vld [vmem:[%s291 + $0x3c] sm:$0xf]
        %v308 = vld [vmem:[%s291 + $0x40] sm:$0xf]
        %v309 = vld [vmem:[%s291 + $0x44] sm:$0xf]
        %v310 = vld [vmem:[%s291 + $0x48] sm:$0xf]
        %v311 = vld [vmem:[%s291 + $0x4c] sm:$0xf]
        %v312 = vld [vmem:[%s291 + $0x50] sm:$0xf]
        %v313 = vld [vmem:[%s291 + $0x54] sm:$0xf]
        %v314 = vld [vmem:[%s291 + $0x58] sm:$0xf]
        %v315 = vld [vmem:[%s291 + $0x5c] sm:$0xf]
        %v340 = vunpack.c.l.b16 %v292
        %v341 = vunpack.c.l.b16 %v293
        %v342 = vunpack.c.l.b16 %v294
        %v343 = vunpack.c.l.b16 %v295
        %v344 = vunpack.c.l.b16 %v296
        %v345 = vunpack.c.l.b16 %v297
        %v346 = vunpack.c.l.b16 %v298
        %v347 = vunpack.c.l.b16 %v299
        %v348 = vunpack.c.l.b16 %v300
        %v349 = vunpack.c.l.b16 %v301
        %v350 = vunpack.c.l.b16 %v302
        %v351 = vunpack.c.l.b16 %v303
        %v352 = vunpack.c.l.b16 %v304
        %v353 = vunpack.c.l.b16 %v305
        %v354 = vunpack.c.l.b16 %v306
        %v355 = vunpack.c.l.b16 %v307
        %v356 = vunpack.c.l.b16 %v308
        %v357 = vunpack.c.l.b16 %v309
        %v358 = vunpack.c.l.b16 %v310
        %v359 = vunpack.c.l.b16 %v311
        %v360 = vunpack.c.l.b16 %v312
        %v361 = vunpack.c.l.b16 %v313
        %v362 = vunpack.c.l.b16 %v314
        %v363 = vunpack.c.l.b16 %v315
        %v364 = vpack.c.b16 %v341, %v340
        %v365 = vpack.c.b16 %v343, %v342
        %v366 = vpack.c.b16 %v345, %v344
        %v367 = vpack.c.b16 %v347, %v346
        %v368 = vpack.c.b16 %v349, %v348
        %v369 = vpack.c.b16 %v351, %v350
        %v370 = vpack.c.b16 %v353, %v352
        %v371 = vpack.c.b16 %v355, %v354
        %v372 = vpack.c.b16 %v357, %v356
        %v373 = vpack.c.b16 %v359, %v358
        %v374 = vpack.c.b16 %v361, %v360
        %v375 = vpack.c.b16 %v363, %v362
        %388 = vst [vmem:[#allocation2 + $0x8] sm:$0xff] %v364
        %389 = vst [vmem:[#allocation2 + $0x20] sm:$0xff] %v365
        %390 = vst [vmem:[#allocation2 + $0x38] sm:$0xff] %v366
        %391 = vst [vmem:[#allocation2 + $0x50] sm:$0xff] %v367
        %392 = vst [vmem:[#allocation2 + $0x68] sm:$0xff] %v368
        %393 = vst [vmem:[#allocation2 + $0x80] sm:$0xff] %v369
        %394 = vst [vmem:[#allocation2 + $0x98] sm:$0xff] %v370
        %395 = vst [vmem:[#allocation2 + $0xb0] sm:$0xff] %v371
        %396 = vst [vmem:[#allocation2 + $0xc8] sm:$0xff] %v372
        %397 = vst [vmem:[#allocation2 + $0xe0] sm:$0xff] %v373
        %398 = vst [vmem:[#allocation2 + $0xf8] sm:$0xff] %v374
        %399 = vst [vmem:[#allocation2 + $0x110] sm:$0xff] %v375
        %v401 = vshrl.u32 %v364, 16
        %v403 = vrot.slane %v401, 7
        %v404 = vshll.u32 %v364, 16
        %v406 = vor.u32 %v403, %v404
        %v408 = vshrl.u32 %v365, 16
        %v410 = vrot.slane %v408, 7
        %v411 = vshll.u32 %v365, 16
        %v413 = vor.u32 %v410, %v411
        %v415 = vshrl.u32 %v366, 16
        %v417 = vrot.slane %v415, 7
        %v418 = vshll.u32 %v366, 16
        %v420 = vor.u32 %v417, %v418
        %v422 = vshrl.u32 %v367, 16
        %v424 = vrot.slane %v422, 7
        %v425 = vshll.u32 %v367, 16
        %v427 = vor.u32 %v424, %v425
        %v429 = vshrl.u32 %v368, 16
        %v431 = vrot.slane %v429, 7
        %v432 = vshll.u32 %v368, 16
        %v434 = vor.u32 %v431, %v432
        %v436 = vshrl.u32 %v369, 16
        %v438 = vrot.slane %v436, 7
        %v439 = vshll.u32 %v369, 16
        %v441 = vor.u32 %v438, %v439
        %v443 = vshrl.u32 %v370, 16
        %v445 = vrot.slane %v443, 7
        %v446 = vshll.u32 %v370, 16
        %v448 = vor.u32 %v445, %v446
        %v450 = vshrl.u32 %v371, 16
        %v452 = vrot.slane %v450, 7
        %v453 = vshll.u32 %v371, 16
        %v455 = vor.u32 %v452, %v453
        %v457 = vshrl.u32 %v372, 16
        %v459 = vrot.slane %v457, 7
        %v460 = vshll.u32 %v372, 16
        %v462 = vor.u32 %v459, %v460
        %v464 = vshrl.u32 %v373, 16
        %v466 = vrot.slane %v464, 7
        %v467 = vshll.u32 %v373, 16
        %v469 = vor.u32 %v466, %v467
        %v471 = vshrl.u32 %v374, 16
        %v473 = vrot.slane %v471, 7
        %v474 = vshll.u32 %v374, 16
        %v476 = vor.u32 %v473, %v474
        %v478 = vshrl.u32 %v375, 16
        %v480 = vrot.slane %v478, 7
        %v481 = vshll.u32 %v375, 16
        %v483 = vor.u32 %v480, %v481
        %vm496 = vcmask 1047552
        %vm497 = vsmask.f32 7938
        %vm498 = vmand %vm496, %vm497
        %v499 = vld [vmem:[#allocation2] sm:$0xff]
        %v500 = vsel %vm498, %v406, %v499
        %501 = vst [vmem:[#allocation2] sm:$0xff] %v500
        %v502 = vld [vmem:[#allocation2 + $0x18] sm:$0xff]
        %v503 = vsel %vm498, %v413, %v502
        %504 = vst [vmem:[#allocation2 + $0x18] sm:$0xff] %v503
        %v505 = vld [vmem:[#allocation2 + $0x30] sm:$0xff]
        %v506 = vsel %vm498, %v420, %v505
        %507 = vst [vmem:[#allocation2 + $0x30] sm:$0xff] %v506
        %v508 = vld [vmem:[#allocation2 + $0x48] sm:$0xff]
        %v509 = vsel %vm498, %v427, %v508
        %510 = vst [vmem:[#allocation2 + $0x48] sm:$0xff] %v509
        %v511 = vld [vmem:[#allocation2 + $0x60] sm:$0xff]
        %v512 = vsel %vm498, %v434, %v511
        %513 = vst [vmem:[#allocation2 + $0x60] sm:$0xff] %v512
        %v514 = vld [vmem:[#allocation2 + $0x78] sm:$0xff]
        %v515 = vsel %vm498, %v441, %v514
        %516 = vst [vmem:[#allocation2 + $0x78] sm:$0xff] %v515
        %v517 = vld [vmem:[#allocation2 + $0x90] sm:$0xff]
        %v518 = vsel %vm498, %v448, %v517
        %519 = vst [vmem:[#allocation2 + $0x90] sm:$0xff] %v518
        %v520 = vld [vmem:[#allocation2 + $0xa8] sm:$0xff]
        %v521 = vsel %vm498, %v455, %v520
        %522 = vst [vmem:[#allocation2 + $0xa8] sm:$0xff] %v521
        %v523 = vld [vmem:[#allocation2 + $0xc0] sm:$0xff]
        %v524 = vsel %vm498, %v462, %v523
        %525 = vst [vmem:[#allocation2 + $0xc0] sm:$0xff] %v524
        %v526 = vld [vmem:[#allocation2 + $0xd8] sm:$0xff]
        %v527 = vsel %vm498, %v469, %v526
        %528 = vst [vmem:[#allocation2 + $0xd8] sm:$0xff] %v527
        %v529 = vld [vmem:[#allocation2 + $0xf0] sm:$0xff]
        %v530 = vsel %vm498, %v476, %v529
        %531 = vst [vmem:[#allocation2 + $0xf0] sm:$0xff] %v530
        %v532 = vld [vmem:[#allocation2 + $0x108] sm:$0xff]
        %v533 = vsel %vm498, %v483, %v532
        %534 = vst [vmem:[#allocation2 + $0x108] sm:$0xff] %v533
        %vm535 = vcmask 1040384
        %vm536 = vsmask.f32 256
        %vm537 = vmand %vm535, %vm536
        %v538 = vld [vmem:[#allocation2] sm:$0x1]
        %v539 = vsel %vm537, 0, %v538
        %540 = vst [vmem:[#allocation2] sm:$0x1] %v539
        %v541 = vld [vmem:[#allocation2 + $0x18] sm:$0x1]
        %v542 = vsel %vm537, 0, %v541
        %543 = vst [vmem:[#allocation2 + $0x18] sm:$0x1] %v542
        %v544 = vld [vmem:[#allocation2 + $0x30] sm:$0x1]
        %v545 = vsel %vm537, 0, %v544
        %546 = vst [vmem:[#allocation2 + $0x30] sm:$0x1] %v545
        %v547 = vld [vmem:[#allocation2 + $0x48] sm:$0x1]
        %v548 = vsel %vm537, 0, %v547
        %549 = vst [vmem:[#allocation2 + $0x48] sm:$0x1] %v548
        %v550 = vld [vmem:[#allocation2 + $0x60] sm:$0x1]
        %v551 = vsel %vm537, 0, %v550
        %552 = vst [vmem:[#allocation2 + $0x60] sm:$0x1] %v551
        %v553 = vld [vmem:[#allocation2 + $0x78] sm:$0x1]
        %v554 = vsel %vm537, 0, %v553
        %555 = vst [vmem:[#allocation2 + $0x78] sm:$0x1] %v554
        %v556 = vld [vmem:[#allocation2 + $0x90] sm:$0x1]
        %v557 = vsel %vm537, 0, %v556
        %558 = vst [vmem:[#allocation2 + $0x90] sm:$0x1] %v557
        %v559 = vld [vmem:[#allocation2 + $0xa8] sm:$0x1]
        %v560 = vsel %vm537, 0, %v559
        %561 = vst [vmem:[#allocation2 + $0xa8] sm:$0x1] %v560
        %v562 = vld [vmem:[#allocation2 + $0xc0] sm:$0x1]
        %v563 = vsel %vm537, 0, %v562
        %564 = vst [vmem:[#allocation2 + $0xc0] sm:$0x1] %v563
        %v565 = vld [vmem:[#allocation2 + $0xd8] sm:$0x1]
        %v566 = vsel %vm537, 0, %v565
        %567 = vst [vmem:[#allocation2 + $0xd8] sm:$0x1] %v566
        %v568 = vld [vmem:[#allocation2 + $0xf0] sm:$0x1]
        %v569 = vsel %vm537, 0, %v568
        %570 = vst [vmem:[#allocation2 + $0xf0] sm:$0x1] %v569
        %v571 = vld [vmem:[#allocation2 + $0x108] sm:$0x1]
        %v572 = vsel %vm537, 0, %v571
        %573 = vst [vmem:[#allocation2 + $0x108] sm:$0x1] %v572
        %v574 = vrot.slane %v404, 1
        %v575 = vor.u32 %v401, %v574
        %v576 = vrot.slane %v411, 1
        %v577 = vor.u32 %v408, %v576
        %v578 = vrot.slane %v418, 1
        %v579 = vor.u32 %v415, %v578
        %v580 = vrot.slane %v425, 1
        %v581 = vor.u32 %v422, %v580
        %v582 = vrot.slane %v432, 1
        %v583 = vor.u32 %v429, %v582
        %v584 = vrot.slane %v439, 1
        %v585 = vor.u32 %v436, %v584
        %v586 = vrot.slane %v446, 1
        %v587 = vor.u32 %v443, %v586
        %v588 = vrot.slane %v453, 1
        %v589 = vor.u32 %v450, %v588
        %v590 = vrot.slane %v460, 1
        %v591 = vor.u32 %v457, %v590
        %v592 = vrot.slane %v467, 1
        %v593 = vor.u32 %v464, %v592
        %v594 = vrot.slane %v474, 1
        %v595 = vor.u32 %v471, %v594
        %v596 = vrot.slane %v481, 1
        %v597 = vor.u32 %v478, %v596
        %vm610 = vsmask.f32 7424
        %vm611 = vmand %vm496, %vm610
        %v612 = vld [vmem:[#allocation2 + $0x10] sm:$0xff]
        %v613 = vsel %vm611, %v575, %v612
        %614 = vst [vmem:[#allocation2 + $0x10] sm:$0xff] %v613
        %v615 = vld [vmem:[#allocation2 + $0x28] sm:$0xff]
        %v616 = vsel %vm611, %v577, %v615
        %617 = vst [vmem:[#allocation2 + $0x28] sm:$0xff] %v616
        %v618 = vld [vmem:[#allocation2 + $0x40] sm:$0xff]
        %v619 = vsel %vm611, %v579, %v618
        %620 = vst [vmem:[#allocation2 + $0x40] sm:$0xff] %v619
        %v621 = vld [vmem:[#allocation2 + $0x58] sm:$0xff]
        %v622 = vsel %vm611, %v581, %v621
        %623 = vst [vmem:[#allocation2 + $0x58] sm:$0xff] %v622
        %v624 = vld [vmem:[#allocation2 + $0x70] sm:$0xff]
        %v625 = vsel %vm611, %v583, %v624
        %626 = vst [vmem:[#allocation2 + $0x70] sm:$0xff] %v625
        %v627 = vld [vmem:[#allocation2 + $0x88] sm:$0xff]
        %v628 = vsel %vm611, %v585, %v627
        %629 = vst [vmem:[#allocation2 + $0x88] sm:$0xff] %v628
        %v630 = vld [vmem:[#allocation2 + $0xa0] sm:$0xff]
        %v631 = vsel %vm611, %v587, %v630
        %632 = vst [vmem:[#allocation2 + $0xa0] sm:$0xff] %v631
        %v633 = vld [vmem:[#allocation2 + $0xb8] sm:$0xff]
        %v634 = vsel %vm611, %v589, %v633
        %635 = vst [vmem:[#allocation2 + $0xb8] sm:$0xff] %v634
        %v636 = vld [vmem:[#allocation2 + $0xd0] sm:$0xff]
        %v637 = vsel %vm611, %v591, %v636
        %638 = vst [vmem:[#allocation2 + $0xd0] sm:$0xff] %v637
        %v639 = vld [vmem:[#allocation2 + $0xe8] sm:$0xff]
        %v640 = vsel %vm611, %v593, %v639
        %641 = vst [vmem:[#allocation2 + $0xe8] sm:$0xff] %v640
        %v642 = vld [vmem:[#allocation2 + $0x100] sm:$0xff]
        %v643 = vsel %vm611, %v595, %v642
        %644 = vst [vmem:[#allocation2 + $0x100] sm:$0xff] %v643
        %v645 = vld [vmem:[#allocation2 + $0x118] sm:$0xff]
        %v646 = vsel %vm611, %v597, %v645
        %647 = vst [vmem:[#allocation2 + $0x118] sm:$0xff] %v646
        %vm648 = vcmask 1047559
        %vm649 = vsmask.f32 7966
        %vm650 = vmand %vm648, %vm649
        %v651 = vld [vmem:[#allocation2 + $0x10] sm:$0x80]
        %v652 = vsel %vm650, 0, %v651
        %653 = vst [vmem:[#allocation2 + $0x10] sm:$0x80] %v652
        %v654 = vld [vmem:[#allocation2 + $0x28] sm:$0x80]
        %v655 = vsel %vm650, 0, %v654
        %656 = vst [vmem:[#allocation2 + $0x28] sm:$0x80] %v655
        %v657 = vld [vmem:[#allocation2 + $0x40] sm:$0x80]
        %v658 = vsel %vm650, 0, %v657
        %659 = vst [vmem:[#allocation2 + $0x40] sm:$0x80] %v658
        %v660 = vld [vmem:[#allocation2 + $0x58] sm:$0x80]
        %v661 = vsel %vm650, 0, %v660
        %662 = vst [vmem:[#allocation2 + $0x58] sm:$0x80] %v661
        %v663 = vld [vmem:[#allocation2 + $0x70] sm:$0x80]
        %v664 = vsel %vm650, 0, %v663
        %665 = vst [vmem:[#allocation2 + $0x70] sm:$0x80] %v664
        %v666 = vld [vmem:[#allocation2 + $0x88] sm:$0x80]
        %v667 = vsel %vm650, 0, %v666
        %668 = vst [vmem:[#allocation2 + $0x88] sm:$0x80] %v667
        %v669 = vld [vmem:[#allocation2 + $0xa0] sm:$0x80]
        %v670 = vsel %vm650, 0, %v669
        %671 = vst [vmem:[#allocation2 + $0xa0] sm:$0x80] %v670
        %v672 = vld [vmem:[#allocation2 + $0xb8] sm:$0x80]
        %v673 = vsel %vm650, 0, %v672
        %674 = vst [vmem:[#allocation2 + $0xb8] sm:$0x80] %v673
        %v675 = vld [vmem:[#allocation2 + $0xd0] sm:$0x80]
        %v676 = vsel %vm650, 0, %v675
        %677 = vst [vmem:[#allocation2 + $0xd0] sm:$0x80] %v676
        %v678 = vld [vmem:[#allocation2 + $0xe8] sm:$0x80]
        %v679 = vsel %vm650, 0, %v678
        %680 = vst [vmem:[#allocation2 + $0xe8] sm:$0x80] %v679
        %v681 = vld [vmem:[#allocation2 + $0x100] sm:$0x80]
        %v682 = vsel %vm650, 0, %v681
        %683 = vst [vmem:[#allocation2 + $0x100] sm:$0x80] %v682
        %v684 = vld [vmem:[#allocation2 + $0x118] sm:$0x80]
        %v685 = vsel %vm650, 0, %v684
        %686 = vst [vmem:[#allocation2 + $0x118] sm:$0x80] %v685
        %v687 = vld [vmem:[#allocation2] sm:$0xff]
        %v688 = vld [vmem:[#allocation2 + $0x8] sm:$0xff]
        %v689 = vld [vmem:[#allocation2 + $0x10] sm:$0xff]
        %v690 = vld [vmem:[#allocation2 + $0x18] sm:$0xff]
        %v691 = vld [vmem:[#allocation2 + $0x20] sm:$0xff]
        %v692 = vld [vmem:[#allocation2 + $0x28] sm:$0xff]
        %v693 = vld [vmem:[#allocation2 + $0x30] sm:$0xff]
        %v694 = vld [vmem:[#allocation2 + $0x38] sm:$0xff]
        %v695 = vld [vmem:[#allocation2 + $0x40] sm:$0xff]
        %v696 = vld [vmem:[#allocation2 + $0x48] sm:$0xff]
        %v697 = vld [vmem:[#allocation2 + $0x50] sm:$0xff]
        %v698 = vld [vmem:[#allocation2 + $0x58] sm:$0xff]
        %v699 = vld [vmem:[#allocation2 + $0x60] sm:$0xff]
        %v700 = vld [vmem:[#allocation2 + $0x68] sm:$0xff]
        %v701 = vld [vmem:[#allocation2 + $0x70] sm:$0xff]
        %v702 = vld [vmem:[#allocation2 + $0x78] sm:$0xff]
        %v703 = vld [vmem:[#allocation2 + $0x80] sm:$0xff]
        %v704 = vld [vmem:[#allocation2 + $0x88] sm:$0xff]
        %v705 = vld [vmem:[#allocation2 + $0x90] sm:$0xff]
        %v706 = vld [vmem:[#allocation2 + $0x98] sm:$0xff]
        %v707 = vld [vmem:[#allocation2 + $0xa0] sm:$0xff]
        %v708 = vld [vmem:[#allocation2 + $0xa8] sm:$0xff]
        %v709 = vld [vmem:[#allocation2 + $0xb0] sm:$0xff]
        %v710 = vld [vmem:[#allocation2 + $0xb8] sm:$0xff]
        %v711 = vld [vmem:[#allocation2 + $0xc0] sm:$0xff]
        %v712 = vld [vmem:[#allocation2 + $0xc8] sm:$0xff]
        %v713 = vld [vmem:[#allocation2 + $0xd0] sm:$0xff]
        %v714 = vld [vmem:[#allocation2 + $0xd8] sm:$0xff]
        %v715 = vld [vmem:[#allocation2 + $0xe0] sm:$0xff]
        %v716 = vld [vmem:[#allocation2 + $0xe8] sm:$0xff]
        %v717 = vld [vmem:[#allocation7] sm:$0xf]
        %v718 = vld [vmem:[#allocation7 + $0x4] sm:$0xf]
        %v719 = vld [vmem:[#allocation7 + $0x8] sm:$0xf]
        %v720 = vld [vmem:[#allocation7 + $0xc] sm:$0xf]
        %v721 = vld [vmem:[#allocation7 + $0x10] sm:$0xf]
        %v722 = vld [vmem:[#allocation7 + $0x14] sm:$0xf]
        %v723 = vld [vmem:[#allocation7 + $0x18] sm:$0xf]
        %v724 = vld [vmem:[#allocation7 + $0x1c] sm:$0xf]
        %v725 = vld [vmem:[#allocation7 + $0x20] sm:$0xf]
        %v726 = vld [vmem:[#allocation7 + $0x24] sm:$0xf]
        %v727 = vld [vmem:[#allocation7 + $0x28] sm:$0xf]
        %v728 = vld [vmem:[#allocation7 + $0x2c] sm:$0xf]
        %v729 = vld [vmem:[#allocation7 + $0x30] sm:$0xf]
        %v730 = vld [vmem:[#allocation7 + $0x34] sm:$0xf]
        %v731 = vld [vmem:[#allocation7 + $0x38] sm:$0xf]
        %v732 = vld [vmem:[#allocation7 + $0x3c] sm:$0xf]
        %v733 = vld [vmem:[#allocation7 + $0x40] sm:$0xf]
        %v734 = vld [vmem:[#allocation7 + $0x44] sm:$0xf]
        %v735 = vld [vmem:[#allocation7 + $0x48] sm:$0xf]
        %v736 = vld [vmem:[#allocation7 + $0x4c] sm:$0xf]
        %v737 = vld [vmem:[#allocation7 + $0x50] sm:$0xf]
        %v738 = vld [vmem:[#allocation7 + $0x54] sm:$0xf]
        %v739 = vld [vmem:[#allocation7 + $0x58] sm:$0xf]
        %v740 = vld [vmem:[#allocation7 + $0x5c] sm:$0xf]
        %v741 = vld [vmem:[#allocation7 + $0x60] sm:$0xf]
        %v742 = vld [vmem:[#allocation7 + $0x64] sm:$0xf]
        %v743 = vld [vmem:[#allocation7 + $0x68] sm:$0xf]
        %v744 = vld [vmem:[#allocation7 + $0x6c] sm:$0xf]
        %v745 = vld [vmem:[#allocation7 + $0x70] sm:$0xf]
        %v746 = vld [vmem:[#allocation7 + $0x74] sm:$0xf]
        %v747 = vld [vmem:[#allocation7 + $0x78] sm:$0xf]
        %v748 = vld [vmem:[#allocation7 + $0x7c] sm:$0xf]
        %v749 = vld [vmem:[#allocation7 + $0x80] sm:$0xf]
        %v750 = vld [vmem:[#allocation7 + $0x84] sm:$0xf]
        %v751 = vld [vmem:[#allocation7 + $0x88] sm:$0xf]
        %v752 = vld [vmem:[#allocation7 + $0x8c] sm:$0xf]
        %v753 = vld [vmem:[#allocation7 + $0x90] sm:$0xf]
        %v754 = vld [vmem:[#allocation7 + $0x94] sm:$0xf]
        %v755 = vld [vmem:[#allocation7 + $0x98] sm:$0xf]
        %v756 = vld [vmem:[#allocation7 + $0x9c] sm:$0xf]
        %v757 = vld [vmem:[#allocation7 + $0xa0] sm:$0xf]
        %v758 = vld [vmem:[#allocation7 + $0xa4] sm:$0xf]
        %v759 = vld [vmem:[#allocation7 + $0xa8] sm:$0xf]
        %v760 = vld [vmem:[#allocation7 + $0xac] sm:$0xf]
        %v761 = vld [vmem:[#allocation7 + $0xb0] sm:$0xf]
        %v762 = vld [vmem:[#allocation7 + $0xb4] sm:$0xf]
        %v763 = vld [vmem:[#allocation7 + $0xb8] sm:$0xf]
        %v764 = vld [vmem:[#allocation7 + $0xbc] sm:$0xf]
        %s765 = scalar_lea.vmem [#allocation2], 24
        %v766 = vld [vmem:[%s765] sm:$0xff]
        %v767 = vld [vmem:[%s765 + $0x8] sm:$0xff]
        %v768 = vld [vmem:[%s765 + $0x10] sm:$0xff]
        %v769 = vld [vmem:[%s765 + $0x18] sm:$0xff]
        %v770 = vld [vmem:[%s765 + $0x20] sm:$0xff]
        %v771 = vld [vmem:[%s765 + $0x28] sm:$0xff]
        %v772 = vld [vmem:[%s765 + $0x30] sm:$0xff]
        %v773 = vld [vmem:[%s765 + $0x38] sm:$0xff]
        %v774 = vld [vmem:[%s765 + $0x40] sm:$0xff]
        %v775 = vld [vmem:[%s765 + $0x48] sm:$0xff]
        %v776 = vld [vmem:[%s765 + $0x50] sm:$0xff]
        %v777 = vld [vmem:[%s765 + $0x58] sm:$0xff]
        %v778 = vld [vmem:[%s765 + $0x60] sm:$0xff]
        %v779 = vld [vmem:[%s765 + $0x68] sm:$0xff]
        %v780 = vld [vmem:[%s765 + $0x70] sm:$0xff]
        %v781 = vld [vmem:[%s765 + $0x78] sm:$0xff]
        %v782 = vld [vmem:[%s765 + $0x80] sm:$0xff]
        %v783 = vld [vmem:[%s765 + $0x88] sm:$0xff]
        %v784 = vld [vmem:[%s765 + $0x90] sm:$0xff]
        %v785 = vld [vmem:[%s765 + $0x98] sm:$0xff]
        %v786 = vld [vmem:[%s765 + $0xa0] sm:$0xff]
        %v787 = vld [vmem:[%s765 + $0xa8] sm:$0xff]
        %v788 = vld [vmem:[%s765 + $0xb0] sm:$0xff]
        %v789 = vld [vmem:[%s765 + $0xb8] sm:$0xff]
        %v790 = vld [vmem:[%s765 + $0xc0] sm:$0xff]
        %v791 = vld [vmem:[%s765 + $0xc8] sm:$0xff]
        %v792 = vld [vmem:[%s765 + $0xd0] sm:$0xff]
        %v793 = vld [vmem:[%s765 + $0xd8] sm:$0xff]
        %v794 = vld [vmem:[%s765 + $0xe0] sm:$0xff]
        %v795 = vld [vmem:[%s765 + $0xe8] sm:$0xff]
        %s796 = scalar_lea.vmem [#allocation7], 192
        %v797 = vld [vmem:[%s796] sm:$0xf]
        %v798 = vld [vmem:[%s796 + $0x4] sm:$0xf]
        %v799 = vld [vmem:[%s796 + $0x8] sm:$0xf]
        %v800 = vld [vmem:[%s796 + $0xc] sm:$0xf]
        %v801 = vld [vmem:[%s796 + $0x10] sm:$0xf]
        %v802 = vld [vmem:[%s796 + $0x14] sm:$0xf]
        %v803 = vld [vmem:[%s796 + $0x18] sm:$0xf]
        %v804 = vld [vmem:[%s796 + $0x1c] sm:$0xf]
        %v805 = vld [vmem:[%s796 + $0x20] sm:$0xf]
        %v806 = vld [vmem:[%s796 + $0x24] sm:$0xf]
        %v807 = vld [vmem:[%s796 + $0x28] sm:$0xf]
        %v808 = vld [vmem:[%s796 + $0x2c] sm:$0xf]
        %v809 = vld [vmem:[%s796 + $0x30] sm:$0xf]
        %v810 = vld [vmem:[%s796 + $0x34] sm:$0xf]
        %v811 = vld [vmem:[%s796 + $0x38] sm:$0xf]
        %v812 = vld [vmem:[%s796 + $0x3c] sm:$0xf]
        %v813 = vld [vmem:[%s796 + $0x40] sm:$0xf]
        %v814 = vld [vmem:[%s796 + $0x44] sm:$0xf]
        %v815 = vld [vmem:[%s796 + $0x48] sm:$0xf]
        %v816 = vld [vmem:[%s796 + $0x4c] sm:$0xf]
        %v817 = vld [vmem:[%s796 + $0x50] sm:$0xf]
        %v818 = vld [vmem:[%s796 + $0x54] sm:$0xf]
        %v819 = vld [vmem:[%s796 + $0x58] sm:$0xf]
        %v820 = vld [vmem:[%s796 + $0x5c] sm:$0xf]
        %v821 = vld [vmem:[%s796 + $0x60] sm:$0xf]
        %v822 = vld [vmem:[%s796 + $0x64] sm:$0xf]
        %v823 = vld [vmem:[%s796 + $0x68] sm:$0xf]
        %v824 = vld [vmem:[%s796 + $0x6c] sm:$0xf]
        %v825 = vld [vmem:[%s796 + $0x70] sm:$0xf]
        %v826 = vld [vmem:[%s796 + $0x74] sm:$0xf]
        %v827 = vld [vmem:[%s796 + $0x78] sm:$0xf]
        %v828 = vld [vmem:[%s796 + $0x7c] sm:$0xf]
        %v829 = vld [vmem:[%s796 + $0x80] sm:$0xf]
        %v830 = vld [vmem:[%s796 + $0x84] sm:$0xf]
        %v831 = vld [vmem:[%s796 + $0x88] sm:$0xf]
        %v832 = vld [vmem:[%s796 + $0x8c] sm:$0xf]
        %v833 = vld [vmem:[%s796 + $0x90] sm:$0xf]
        %v834 = vld [vmem:[%s796 + $0x94] sm:$0xf]
        %v835 = vld [vmem:[%s796 + $0x98] sm:$0xf]
        %v836 = vld [vmem:[%s796 + $0x9c] sm:$0xf]
        %v837 = vld [vmem:[%s796 + $0xa0] sm:$0xf]
        %v838 = vld [vmem:[%s796 + $0xa4] sm:$0xf]
        %v839 = vld [vmem:[%s796 + $0xa8] sm:$0xf]
        %v840 = vld [vmem:[%s796 + $0xac] sm:$0xf]
        %v841 = vld [vmem:[%s796 + $0xb0] sm:$0xf]
        %v842 = vld [vmem:[%s796 + $0xb4] sm:$0xf]
        %v843 = vld [vmem:[%s796 + $0xb8] sm:$0xf]
        %v844 = vld [vmem:[%s796 + $0xbc] sm:$0xf]
        %v893 = vunpack.c.l.b16 %v797
        %v894 = vunpack.c.l.b16 %v798
        %v895 = vunpack.c.l.b16 %v799
        %v896 = vunpack.c.l.b16 %v800
        %v897 = vunpack.c.l.b16 %v801
        %v898 = vunpack.c.l.b16 %v802
        %v899 = vunpack.c.l.b16 %v803
        %v900 = vunpack.c.l.b16 %v804
        %v901 = vunpack.c.l.b16 %v805
        %v902 = vunpack.c.l.b16 %v806
        %v903 = vunpack.c.l.b16 %v807
        %v904 = vunpack.c.l.b16 %v808
        %v905 = vunpack.c.l.b16 %v809
        %v906 = vunpack.c.l.b16 %v810
        %v907 = vunpack.c.l.b16 %v811
        %v908 = vunpack.c.l.b16 %v812
        %v909 = vunpack.c.l.b16 %v813
        %v910 = vunpack.c.l.b16 %v814
        %v911 = vunpack.c.l.b16 %v815
        %v912 = vunpack.c.l.b16 %v816
        %v913 = vunpack.c.l.b16 %v817
        %v914 = vunpack.c.l.b16 %v818
        %v915 = vunpack.c.l.b16 %v819
        %v916 = vunpack.c.l.b16 %v820
        %v917 = vunpack.c.l.b16 %v821
        %v918 = vunpack.c.l.b16 %v822
        %v919 = vunpack.c.l.b16 %v823
        %v920 = vunpack.c.l.b16 %v824
        %v921 = vunpack.c.l.b16 %v825
        %v922 = vunpack.c.l.b16 %v826
        %v923 = vunpack.c.l.b16 %v827
        %v924 = vunpack.c.l.b16 %v828
        %v925 = vunpack.c.l.b16 %v829
        %v926 = vunpack.c.l.b16 %v830
        %v927 = vunpack.c.l.b16 %v831
        %v928 = vunpack.c.l.b16 %v832
        %v929 = vunpack.c.l.b16 %v833
        %v930 = vunpack.c.l.b16 %v834
        %v931 = vunpack.c.l.b16 %v835
        %v932 = vunpack.c.l.b16 %v836
        %v933 = vunpack.c.l.b16 %v837
        %v934 = vunpack.c.l.b16 %v838
        %v935 = vunpack.c.l.b16 %v839
        %v936 = vunpack.c.l.b16 %v840
        %v937 = vunpack.c.l.b16 %v841
        %v938 = vunpack.c.l.b16 %v842
        %v939 = vunpack.c.l.b16 %v843
        %v940 = vunpack.c.l.b16 %v844
        %v941 = vpack.c.b16 %v894, %v893
        %v942 = vpack.c.b16 %v896, %v895
        %v943 = vpack.c.b16 %v898, %v897
        %v944 = vpack.c.b16 %v900, %v899
        %v945 = vpack.c.b16 %v902, %v901
        %v946 = vpack.c.b16 %v904, %v903
        %v947 = vpack.c.b16 %v906, %v905
        %v948 = vpack.c.b16 %v908, %v907
        %v949 = vpack.c.b16 %v910, %v909
        %v950 = vpack.c.b16 %v912, %v911
        %v951 = vpack.c.b16 %v914, %v913
        %v952 = vpack.c.b16 %v916, %v915
        %v953 = vpack.c.b16 %v918, %v917
        %v954 = vpack.c.b16 %v920, %v919
        %v955 = vpack.c.b16 %v922, %v921
        %v956 = vpack.c.b16 %v924, %v923
        %v957 = vpack.c.b16 %v926, %v925
        %v958 = vpack.c.b16 %v928, %v927
        %v959 = vpack.c.b16 %v930, %v929
        %v960 = vpack.c.b16 %v932, %v931
        %v961 = vpack.c.b16 %v934, %v933
        %v962 = vpack.c.b16 %v936, %v935
        %v963 = vpack.c.b16 %v938, %v937
        %v964 = vpack.c.b16 %v940, %v939
        %989 = vmatprep.subr.bf16.mxu0 0
        %990 = vmatpush1.bf16.msra.mxu0 %v941
        %991 = vmatprep.subr.bf16.mxu0 0
        %992 = vmatpush1.bf16.msra.mxu0 %v942
        %993 = vmatprep.subr.bf16.mxu0 0
        %994 = vmatpush1.bf16.msra.mxu0 %v943
        %995 = vmatprep.subr.bf16.mxu0 0
        %996 = vmatpush1.bf16.msra.mxu0 %v944
        %997 = vmatprep.subr.bf16.mxu0 0
        %998 = vmatpush1.bf16.msra.mxu0 %v945
        %999 = vmatprep.subr.bf16.mxu0 0
        %1000 = vmatpush1.bf16.msra.mxu0 %v946
        %1001 = vmatprep.subr.bf16.mxu0 0
        %1002 = vmatpush1.bf16.msra.mxu0 %v947
        %1003 = vmatprep.subr.bf16.mxu0 0
        %1004 = vmatpush1.bf16.msra.mxu0 %v948
        %1005 = vmatprep.subr.bf16.mxu0 0
        %1006 = vmatpush1.bf16.msra.mxu0 %v949
        %1007 = vmatprep.subr.bf16.mxu0 0
        %1008 = vmatpush1.bf16.msra.mxu0 %v950
        %1009 = vmatprep.subr.bf16.mxu0 0
        %1010 = vmatpush1.bf16.msra.mxu0 %v951
        %1011 = vmatprep.subr.bf16.mxu0 0
        %1012 = vmatpush1.bf16.msra.mxu0 %v952
        %1013 = vmatprep.subr.bf16.mxu0 0
        %1014 = vmatpush1.bf16.msra.mxu0 %v953
        %1015 = vmatprep.subr.bf16.mxu0 0
        %1016 = vmatpush1.bf16.msra.mxu0 %v954
        %1017 = vmatprep.subr.bf16.mxu0 0
        %1018 = vmatpush1.bf16.msra.mxu0 %v955
        %1019 = vmatprep.subr.bf16.mxu0 0
        %1020 = vmatpush1.bf16.msra.mxu0 %v956
        %1021 = vmatprep.mubr.bf16.mxu0 %v767
        %1022 = vmatmul.mubr.bf16.gmra.mrb[0].mxu0 %v766
        %v1023 = vpop.f32.mrb[0].mxu0
        %v1024 = vadd.f32 0.0, %v1023
        %v1025 = vpop.f32.mrb[0].mxu0
        %v1026 = vpop.f32.mrb[0].mxu0
        %v1027 = vadd.f32 0.0, %v1026
        %v1028 = vpop.f32.mrb[0].mxu0
        %1029 = vmatprep.mubr.bf16.mxu0 %v770
        %1030 = vmatmul.mubr.bf16.gmra.mrb[0].mxu0 %v769
        %v1031 = vpop.f32.mrb[0].mxu0
        %v1032 = vadd.f32 0.0, %v1031
        %v1033 = vpop.f32.mrb[0].mxu0
        %v1034 = vpop.f32.mrb[0].mxu0
        %v1035 = vadd.f32 0.0, %v1034
        %v1036 = vpop.f32.mrb[0].mxu0
        %1037 = vmatprep.mubr.bf16.mxu0 %v773
        %1038 = vmatmul.mubr.bf16.gmra.mrb[0].mxu0 %v772
        %v1039 = vpop.f32.mrb[0].mxu0
        %v1040 = vadd.f32 0.0, %v1039
        %v1041 = vpop.f32.mrb[0].mxu0
        %v1042 = vpop.f32.mrb[0].mxu0
        %v1043 = vadd.f32 0.0, %v1042
        %v1044 = vpop.f32.mrb[0].mxu0
        %1045 = vmatprep.mubr.bf16.mxu0 %v776
        %1046 = vmatmul.mubr.bf16.gmra.mrb[0].mxu0 %v775
        %v1047 = vpop.f32.mrb[0].mxu0
        %v1048 = vadd.f32 0.0, %v1047
        %v1049 = vpop.f32.mrb[0].mxu0
        %v1050 = vpop.f32.mrb[0].mxu0
        %v1051 = vadd.f32 0.0, %v1050
        %v1052 = vpop.f32.mrb[0].mxu0
        %1053 = vmatprep.mubr.bf16.mxu0 %v779
        %1054 = vmatmul.mubr.bf16.gmra.mrb[0].mxu0 %v778
        %v1055 = vpop.f32.mrb[0].mxu0
        %v1056 = vadd.f32 0.0, %v1055
        %v1057 = vpop.f32.mrb[0].mxu0
        %v1058 = vpop.f32.mrb[0].mxu0
        %v1059 = vadd.f32 0.0, %v1058
        %v1060 = vpop.f32.mrb[0].mxu0
        %1061 = vmatprep.mubr.bf16.mxu0 %v782
        %1062 = vmatmul.mubr.bf16.gmra.mrb[0].mxu0 %v781
        %v1063 = vpop.f32.mrb[0].mxu0
        %v1064 = vadd.f32 0.0, %v1063
        %v1065 = vpop.f32.mrb[0].mxu0
        %v1066 = vpop.f32.mrb[0].mxu0
        %v1067 = vadd.f32 0.0, %v1066
        %v1068 = vpop.f32.mrb[0].mxu0
        %1069 = vmatprep.mubr.bf16.mxu0 %v785
        %1070 = vmatmul.mubr.bf16.gmra.mrb[0].mxu0 %v784
        %v1071 = vpop.f32.mrb[0].mxu0
        %v1072 = vadd.f32 0.0, %v1071
        %v1073 = vpop.f32.mrb[0].mxu0
        %v1074 = vpop.f32.mrb[0].mxu0
        %v1075 = vadd.f32 0.0, %v1074
        %v1076 = vpop.f32.mrb[0].mxu0
        %1077 = vmatprep.mubr.bf16.mxu0 %v788
        %1078 = vmatmul.mubr.bf16.gmra.mrb[0].mxu0 %v787
        %v1079 = vpop.f32.mrb[0].mxu0
        %v1080 = vadd.f32 0.0, %v1079
        %v1081 = vpop.f32.mrb[0].mxu0
        %v1082 = vpop.f32.mrb[0].mxu0
        %v1083 = vadd.f32 0.0, %v1082
        %v1084 = vpop.f32.mrb[0].mxu0
        %1085 = vmatprep.mubr.bf16.mxu0 %v791
        %1086 = vmatmul.mubr.bf16.gmra.mrb[0].mxu0 %v790
        %v1087 = vpop.f32.mrb[0].mxu0
        %v1088 = vadd.f32 0.0, %v1087
        %v1089 = vpop.f32.mrb[0].mxu0
        %v1090 = vpop.f32.mrb[0].mxu0
        %v1091 = vadd.f32 0.0, %v1090
        %v1092 = vpop.f32.mrb[0].mxu0
        %1093 = vmatprep.mubr.bf16.mxu0 %v794
        %1094 = vmatmul.mubr.bf16.gmra.mrb[0].mxu0 %v793
        %v1095 = vpop.f32.mrb[0].mxu0
        %v1096 = vadd.f32 0.0, %v1095
        %v1097 = vpop.f32.mrb[0].mxu0
        %v1098 = vpop.f32.mrb[0].mxu0
        %v1099 = vadd.f32 0.0, %v1098
        %v1100 = vpop.f32.mrb[0].mxu0
        %1101 = vdwg.mxu0
        %1102 = vmatprep.subr.bf16.mxu0 0
        %1103 = vmatpush1.bf16.msra.mxu0 %v957
        %1104 = vmatprep.subr.bf16.mxu0 0
        %1105 = vmatpush1.bf16.msra.mxu0 %v958
        %1106 = vmatprep.subr.bf16.mxu0 0
        %1107 = vmatpush1.bf16.msra.mxu0 %v959
        %1108 = vmatprep.subr.bf16.mxu0 0
        %1109 = vmatpush1.bf16.msra.mxu0 %v960
        %1110 = vmatprep.subr.bf16.mxu0 0
        %1111 = vmatpush1.bf16.msra.mxu0 %v961
        %1112 = vmatprep.subr.bf16.mxu0 0
        %1113 = vmatpush1.bf16.msra.mxu0 %v962
        %1114 = vmatprep.subr.bf16.mxu0 0
        %1115 = vmatpush1.bf16.msra.mxu0 %v963
        %1116 = vmatprep.subr.bf16.mxu0 0
        %1117 = vmatpush1.bf16.msra.mxu0 %v964
        %1118 = vmatprep.subr.bf16.mxu0 0
        %1119 = vmatpush1.bf16.msra.mxu0 0
        %1120 = vmatprep.subr.bf16.mxu0 0
        %1121 = vmatpush1.bf16.msra.mxu0 0
        %1122 = vmatprep.subr.bf16.mxu0 0
        %1123 = vmatpush1.bf16.msra.mxu0 0
        %1124 = vmatprep.subr.bf16.mxu0 0
        %1125 = vmatpush1.bf16.msra.mxu0 0
        %1126 = vmatprep.subr.bf16.mxu0 0
        %1127 = vmatpush1.bf16.msra.mxu0 0
        %1128 = vmatprep.subr.bf16.mxu0 0
        %1129 = vmatpush1.bf16.msra.mxu0 0
        %1130 = vmatprep.subr.bf16.mxu0 0
        %1131 = vmatpush1.bf16.msra.mxu0 0
        %1132 = vmatprep.subr.bf16.mxu0 0
        %1133 = vmatpush1.bf16.msra.mxu0 0
        %1134 = vmatprep.mubr.bf16.mxu0 0
        %1135 = vmatmul.mubr.bf16.gmra.mrb[0].mxu0 %v768
        %v1136 = vpop.f32.mrb[0].mxu0
        %v1137 = vadd.f32 %v1024, %v1136
        %v1138 = vpop.f32.mrb[0].mxu0
        %v1139 = vpop.f32.mrb[0].mxu0
        %v1140 = vadd.f32 %v1027, %v1139
        %v1141 = vpop.f32.mrb[0].mxu0
        %1142 = vmatprep.mubr.bf16.mxu0 0
        %1143 = vmatmul.mubr.bf16.gmra.mrb[0].mxu0 %v771
        %v1144 = vpop.f32.mrb[0].mxu0
        %v1145 = vadd.f32 %v1032, %v1144
        %v1146 = vpop.f32.mrb[0].mxu0
        %v1147 = vpop.f32.mrb[0].mxu0
        %v1148 = vadd.f32 %v1035, %v1147
        %v1149 = vpop.f32.mrb[0].mxu0
        %1150 = vmatprep.mubr.bf16.mxu0 0
        %1151 = vmatmul.mubr.bf16.gmra.mrb[0].mxu0 %v774
        %v1152 = vpop.f32.mrb[0].mxu0
        %v1153 = vadd.f32 %v1040, %v1152
        %v1154 = vpop.f32.mrb[0].mxu0
        %v1155 = vpop.f32.mrb[0].mxu0
        %v1156 = vadd.f32 %v1043, %v1155
        %v1157 = vpop.f32.mrb[0].mxu0
        %1158 = vmatprep.mubr.bf16.mxu0 0
        %1159 = vmatmul.mubr.bf16.gmra.mrb[0].mxu0 %v777
        %v1160 = vpop.f32.mrb[0].mxu0
        %v1161 = vadd.f32 %v1048, %v1160
        %v1162 = vpop.f32.mrb[0].mxu0
        %v1163 = vpop.f32.mrb[0].mxu0
        %v1164 = vadd.f32 %v1051, %v1163
        %v1165 = vpop.f32.mrb[0].mxu0
        %1166 = vmatprep.mubr.bf16.mxu0 0
        %1167 = vmatmul.mubr.bf16.gmra.mrb[0].mxu0 %v780
        %v1168 = vpop.f32.mrb[0].mxu0
        %v1169 = vadd.f32 %v1056, %v1168
        %v1170 = vpop.f32.mrb[0].mxu0
        %v1171 = vpop.f32.mrb[0].mxu0
        %v1172 = vadd.f32 %v1059, %v1171
        %v1173 = vpop.f32.mrb[0].mxu0
        %1174 = vmatprep.mubr.bf16.mxu0 0
        %1175 = vmatmul.mubr.bf16.gmra.mrb[0].mxu0 %v783
        %v1176 = vpop.f32.mrb[0].mxu0
        %v1177 = vadd.f32 %v1064, %v1176
        %v1178 = vpop.f32.mrb[0].mxu0
        %v1179 = vpop.f32.mrb[0].mxu0
        %v1180 = vadd.f32 %v1067, %v1179
        %v1181 = vpop.f32.mrb[0].mxu0
        %1182 = vmatprep.mubr.bf16.mxu0 0
        %1183 = vmatmul.mubr.bf16.gmra.mrb[0].mxu0 %v786
        %v1184 = vpop.f32.mrb[0].mxu0
        %v1185 = vadd.f32 %v1072, %v1184
        %v1186 = vpop.f32.mrb[0].mxu0
        %v1187 = vpop.f32.mrb[0].mxu0
        %v1188 = vadd.f32 %v1075, %v1187
        %v1189 = vpop.f32.mrb[0].mxu0
        %1190 = vmatprep.mubr.bf16.mxu0 0
        %1191 = vmatmul.mubr.bf16.gmra.mrb[0].mxu0 %v789
        %v1192 = vpop.f32.mrb[0].mxu0
        %v1193 = vadd.f32 %v1080, %v1192
        %v1194 = vpop.f32.mrb[0].mxu0
        %v1195 = vpop.f32.mrb[0].mxu0
        %v1196 = vadd.f32 %v1083, %v1195
        %v1197 = vpop.f32.mrb[0].mxu0
        %1198 = vmatprep.mubr.bf16.mxu0 0
        %1199 = vmatmul.mubr.bf16.gmra.mrb[0].mxu0 %v792
        %v1200 = vpop.f32.mrb[0].mxu0
        %v1201 = vadd.f32 %v1088, %v1200
        %v1202 = vpop.f32.mrb[0].mxu0
        %v1203 = vpop.f32.mrb[0].mxu0
        %v1204 = vadd.f32 %v1091, %v1203
        %v1205 = vpop.f32.mrb[0].mxu0
        %1206 = vmatprep.mubr.bf16.mxu0 0
        %1207 = vmatmul.mubr.bf16.gmra.mrb[0].mxu0 %v795
        %v1208 = vpop.f32.mrb[0].mxu0
        %v1209 = vadd.f32 %v1096, %v1208
        %v1210 = vpop.f32.mrb[0].mxu0
        %v1211 = vpop.f32.mrb[0].mxu0
        %v1212 = vadd.f32 %v1099, %v1211
        %v1213 = vpop.f32.mrb[0].mxu0
        %1214 = vdwg.mxu0
        %v1263 = vunpack.c.l.b16 %v717
        %v1264 = vunpack.c.l.b16 %v718
        %v1265 = vunpack.c.l.b16 %v719
        %v1266 = vunpack.c.l.b16 %v720
        %v1267 = vunpack.c.l.b16 %v721
        %v1268 = vunpack.c.l.b16 %v722
        %v1269 = vunpack.c.l.b16 %v723
        %v1270 = vunpack.c.l.b16 %v724
        %v1271 = vunpack.c.l.b16 %v725
        %v1272 = vunpack.c.l.b16 %v726
        %v1273 = vunpack.c.l.b16 %v727
        %v1274 = vunpack.c.l.b16 %v728
        %v1275 = vunpack.c.l.b16 %v729
        %v1276 = vunpack.c.l.b16 %v730
        %v1277 = vunpack.c.l.b16 %v731
        %v1278 = vunpack.c.l.b16 %v732
        %v1279 = vunpack.c.l.b16 %v733
        %v1280 = vunpack.c.l.b16 %v734
        %v1281 = vunpack.c.l.b16 %v735
        %v1282 = vunpack.c.l.b16 %v736
        %v1283 = vunpack.c.l.b16 %v737
        %v1284 = vunpack.c.l.b16 %v738
        %v1285 = vunpack.c.l.b16 %v739
        %v1286 = vunpack.c.l.b16 %v740
        %v1287 = vunpack.c.l.b16 %v741
        %v1288 = vunpack.c.l.b16 %v742
        %v1289 = vunpack.c.l.b16 %v743
        %v1290 = vunpack.c.l.b16 %v744
        %v1291 = vunpack.c.l.b16 %v745
        %v1292 = vunpack.c.l.b16 %v746
        %v1293 = vunpack.c.l.b16 %v747
        %v1294 = vunpack.c.l.b16 %v748
        %v1295 = vunpack.c.l.b16 %v749
        %v1296 = vunpack.c.l.b16 %v750
        %v1297 = vunpack.c.l.b16 %v751
        %v1298 = vunpack.c.l.b16 %v752
        %v1299 = vunpack.c.l.b16 %v753
        %v1300 = vunpack.c.l.b16 %v754
        %v1301 = vunpack.c.l.b16 %v755
        %v1302 = vunpack.c.l.b16 %v756
        %v1303 = vunpack.c.l.b16 %v757
        %v1304 = vunpack.c.l.b16 %v758
        %v1305 = vunpack.c.l.b16 %v759
        %v1306 = vunpack.c.l.b16 %v760
        %v1307 = vunpack.c.l.b16 %v761
        %v1308 = vunpack.c.l.b16 %v762
        %v1309 = vunpack.c.l.b16 %v763
        %v1310 = vunpack.c.l.b16 %v764
        %v1311 = vpack.c.b16 %v1264, %v1263
        %v1312 = vpack.c.b16 %v1266, %v1265
        %v1313 = vpack.c.b16 %v1268, %v1267
        %v1314 = vpack.c.b16 %v1270, %v1269
        %v1315 = vpack.c.b16 %v1272, %v1271
        %v1316 = vpack.c.b16 %v1274, %v1273
        %v1317 = vpack.c.b16 %v1276, %v1275
        %v1318 = vpack.c.b16 %v1278, %v1277
        %v1319 = vpack.c.b16 %v1280, %v1279
        %v1320 = vpack.c.b16 %v1282, %v1281
        %v1321 = vpack.c.b16 %v1284, %v1283
        %v1322 = vpack.c.b16 %v1286, %v1285
        %v1323 = vpack.c.b16 %v1288, %v1287
        %v1324 = vpack.c.b16 %v1290, %v1289
        %v1325 = vpack.c.b16 %v1292, %v1291
        %v1326 = vpack.c.b16 %v1294, %v1293
        %v1327 = vpack.c.b16 %v1296, %v1295
        %v1328 = vpack.c.b16 %v1298, %v1297
        %v1329 = vpack.c.b16 %v1300, %v1299
        %v1330 = vpack.c.b16 %v1302, %v1301
        %v1331 = vpack.c.b16 %v1304, %v1303
        %v1332 = vpack.c.b16 %v1306, %v1305
        %v1333 = vpack.c.b16 %v1308, %v1307
        %v1334 = vpack.c.b16 %v1310, %v1309
        %1359 = vmatprep.subr.bf16.mxu0 0
        %1360 = vmatpush1.bf16.msra.mxu0 %v1311
        %1361 = vmatprep.subr.bf16.mxu0 0
        %1362 = vmatpush1.bf16.msra.mxu0 %v1312
        %1363 = vmatprep.subr.bf16.mxu0 0
        %1364 = vmatpush1.bf16.msra.mxu0 %v1313
        %1365 = vmatprep.subr.bf16.mxu0 0
        %1366 = vmatpush1.bf16.msra.mxu0 %v1314
        %1367 = vmatprep.subr.bf16.mxu0 0
        %1368 = vmatpush1.bf16.msra.mxu0 %v1315
        %1369 = vmatprep.subr.bf16.mxu0 0
        %1370 = vmatpush1.bf16.msra.mxu0 %v1316
        %1371 = vmatprep.subr.bf16.mxu0 0
        %1372 = vmatpush1.bf16.msra.mxu0 %v1317
        %1373 = vmatprep.subr.bf16.mxu0 0
        %1374 = vmatpush1.bf16.msra.mxu0 %v1318
        %1375 = vmatprep.subr.bf16.mxu0 0
        %1376 = vmatpush1.bf16.msra.mxu0 %v1319
        %1377 = vmatprep.subr.bf16.mxu0 0
        %1378 = vmatpush1.bf16.msra.mxu0 %v1320
        %1379 = vmatprep.subr.bf16.mxu0 0
        %1380 = vmatpush1.bf16.msra.mxu0 %v1321
        %1381 = vmatprep.subr.bf16.mxu0 0
        %1382 = vmatpush1.bf16.msra.mxu0 %v1322
        %1383 = vmatprep.subr.bf16.mxu0 0
        %1384 = vmatpush1.bf16.msra.mxu0 %v1323
        %1385 = vmatprep.subr.bf16.mxu0 0
        %1386 = vmatpush1.bf16.msra.mxu0 %v1324
        %1387 = vmatprep.subr.bf16.mxu0 0
        %1388 = vmatpush1.bf16.msra.mxu0 %v1325
        %1389 = vmatprep.subr.bf16.mxu0 0
        %1390 = vmatpush1.bf16.msra.mxu0 %v1326
        %1391 = vmatprep.mubr.bf16.mxu0 %v688
        %1392 = vmatmul.mubr.bf16.gmra.mrb[0].mxu0 %v687
        %v1393 = vpop.f32.mrb[0].mxu0
        %v1394 = vadd.f32 %v1137, %v1393
        %v1395 = vpop.f32.mrb[0].mxu0
        %v1396 = vpop.f32.mrb[0].mxu0
        %v1397 = vadd.f32 %v1140, %v1396
        %v1398 = vpop.f32.mrb[0].mxu0
        %1399 = vmatprep.mubr.bf16.mxu0 %v691
        %1400 = vmatmul.mubr.bf16.gmra.mrb[0].mxu0 %v690
        %v1401 = vpop.f32.mrb[0].mxu0
        %v1402 = vadd.f32 %v1145, %v1401
        %v1403 = vpop.f32.mrb[0].mxu0
        %v1404 = vpop.f32.mrb[0].mxu0
        %v1405 = vadd.f32 %v1148, %v1404
        %v1406 = vpop.f32.mrb[0].mxu0
        %1407 = vmatprep.mubr.bf16.mxu0 %v694
        %1408 = vmatmul.mubr.bf16.gmra.mrb[0].mxu0 %v693
        %v1409 = vpop.f32.mrb[0].mxu0
        %v1410 = vadd.f32 %v1153, %v1409
        %v1411 = vpop.f32.mrb[0].mxu0
        %v1412 = vpop.f32.mrb[0].mxu0
        %v1413 = vadd.f32 %v1156, %v1412
        %v1414 = vpop.f32.mrb[0].mxu0
        %1415 = vmatprep.mubr.bf16.mxu0 %v697
        %1416 = vmatmul.mubr.bf16.gmra.mrb[0].mxu0 %v696
        %v1417 = vpop.f32.mrb[0].mxu0
        %v1418 = vadd.f32 %v1161, %v1417
        %v1419 = vpop.f32.mrb[0].mxu0
        %v1420 = vpop.f32.mrb[0].mxu0
        %v1421 = vadd.f32 %v1164, %v1420
        %v1422 = vpop.f32.mrb[0].mxu0
        %1423 = vmatprep.mubr.bf16.mxu0 %v700
        %1424 = vmatmul.mubr.bf16.gmra.mrb[0].mxu0 %v699
        %v1425 = vpop.f32.mrb[0].mxu0
        %v1426 = vadd.f32 %v1169, %v1425
        %v1427 = vpop.f32.mrb[0].mxu0
        %v1428 = vpop.f32.mrb[0].mxu0
        %v1429 = vadd.f32 %v1172, %v1428
        %v1430 = vpop.f32.mrb[0].mxu0
        %1431 = vmatprep.mubr.bf16.mxu0 %v703
        %1432 = vmatmul.mubr.bf16.gmra.mrb[0].mxu0 %v702
        %v1433 = vpop.f32.mrb[0].mxu0
        %v1434 = vadd.f32 %v1177, %v1433
        %v1435 = vpop.f32.mrb[0].mxu0
        %v1436 = vpop.f32.mrb[0].mxu0
        %v1437 = vadd.f32 %v1180, %v1436
        %v1438 = vpop.f32.mrb[0].mxu0
        %1439 = vmatprep.mubr.bf16.mxu0 %v706
        %1440 = vmatmul.mubr.bf16.gmra.mrb[0].mxu0 %v705
        %v1441 = vpop.f32.mrb[0].mxu0
        %v1442 = vadd.f32 %v1185, %v1441
        %v1443 = vpop.f32.mrb[0].mxu0
        %v1444 = vpop.f32.mrb[0].mxu0
        %v1445 = vadd.f32 %v1188, %v1444
        %v1446 = vpop.f32.mrb[0].mxu0
        %1447 = vmatprep.mubr.bf16.mxu0 %v709
        %1448 = vmatmul.mubr.bf16.gmra.mrb[0].mxu0 %v708
        %v1449 = vpop.f32.mrb[0].mxu0
        %v1450 = vadd.f32 %v1193, %v1449
        %v1451 = vpop.f32.mrb[0].mxu0
        %v1452 = vpop.f32.mrb[0].mxu0
        %v1453 = vadd.f32 %v1196, %v1452
        %v1454 = vpop.f32.mrb[0].mxu0
        %1455 = vmatprep.mubr.bf16.mxu0 %v712
        %1456 = vmatmul.mubr.bf16.gmra.mrb[0].mxu0 %v711
        %v1457 = vpop.f32.mrb[0].mxu0
        %v1458 = vadd.f32 %v1201, %v1457
        %v1459 = vpop.f32.mrb[0].mxu0
        %v1460 = vpop.f32.mrb[0].mxu0
        %v1461 = vadd.f32 %v1204, %v1460
        %v1462 = vpop.f32.mrb[0].mxu0
        %1463 = vmatprep.mubr.bf16.mxu0 %v715
        %1464 = vmatmul.mubr.bf16.gmra.mrb[0].mxu0 %v714
        %v1465 = vpop.f32.mrb[0].mxu0
        %v1466 = vadd.f32 %v1209, %v1465
        %v1467 = vpop.f32.mrb[0].mxu0
        %v1468 = vpop.f32.mrb[0].mxu0
        %v1469 = vadd.f32 %v1212, %v1468
        %v1470 = vpop.f32.mrb[0].mxu0
        %1471 = vdwg.mxu0
        %1472 = vmatprep.subr.bf16.mxu0 0
        %1473 = vmatpush1.bf16.msra.mxu0 %v1327
        %1474 = vmatprep.subr.bf16.mxu0 0
        %1475 = vmatpush1.bf16.msra.mxu0 %v1328
        %1476 = vmatprep.subr.bf16.mxu0 0
        %1477 = vmatpush1.bf16.msra.mxu0 %v1329
        %1478 = vmatprep.subr.bf16.mxu0 0
        %1479 = vmatpush1.bf16.msra.mxu0 %v1330
        %1480 = vmatprep.subr.bf16.mxu0 0
        %1481 = vmatpush1.bf16.msra.mxu0 %v1331
        %1482 = vmatprep.subr.bf16.mxu0 0
        %1483 = vmatpush1.bf16.msra.mxu0 %v1332
        %1484 = vmatprep.subr.bf16.mxu0 0
        %1485 = vmatpush1.bf16.msra.mxu0 %v1333
        %1486 = vmatprep.subr.bf16.mxu0 0
        %1487 = vmatpush1.bf16.msra.mxu0 %v1334
        %1488 = vmatprep.subr.bf16.mxu0 0
        %1489 = vmatpush1.bf16.msra.mxu0 0
        %1490 = vmatprep.subr.bf16.mxu0 0
        %1491 = vmatpush1.bf16.msra.mxu0 0
        %1492 = vmatprep.subr.bf16.mxu0 0
        %1493 = vmatpush1.bf16.msra.mxu0 0
        %1494 = vmatprep.subr.bf16.mxu0 0
        %1495 = vmatpush1.bf16.msra.mxu0 0
        %1496 = vmatprep.subr.bf16.mxu0 0
        %1497 = vmatpush1.bf16.msra.mxu0 0
        %1498 = vmatprep.subr.bf16.mxu0 0
        %1499 = vmatpush1.bf16.msra.mxu0 0
        %1500 = vmatprep.subr.bf16.mxu0 0
        %1501 = vmatpush1.bf16.msra.mxu0 0
        %1502 = vmatprep.subr.bf16.mxu0 0
        %1503 = vmatpush1.bf16.msra.mxu0 0
        %1504 = vmatprep.mubr.bf16.mxu0 0
        %1505 = vmatmul.mubr.bf16.gmra.mrb[0].mxu0 %v689
        %v1506 = vpop.f32.mrb[0].mxu0
        %v1507 = vadd.f32 %v1394, %v1506
        %v1508 = vpop.f32.mrb[0].mxu0
        %v1509 = vpop.f32.mrb[0].mxu0
        %v1510 = vadd.f32 %v1397, %v1509
        %v1511 = vpop.f32.mrb[0].mxu0
        %1512 = vmatprep.mubr.bf16.mxu0 0
        %1513 = vmatmul.mubr.bf16.gmra.mrb[0].mxu0 %v692
        %v1514 = vpop.f32.mrb[0].mxu0
        %v1515 = vadd.f32 %v1402, %v1514
        %v1516 = vpop.f32.mrb[0].mxu0
        %v1517 = vpop.f32.mrb[0].mxu0
        %v1518 = vadd.f32 %v1405, %v1517
        %v1519 = vpop.f32.mrb[0].mxu0
        %1520 = vmatprep.mubr.bf16.mxu0 0
        %1521 = vmatmul.mubr.bf16.gmra.mrb[0].mxu0 %v695
        %v1522 = vpop.f32.mrb[0].mxu0
        %v1523 = vadd.f32 %v1410, %v1522
        %v1524 = vpop.f32.mrb[0].mxu0
        %v1525 = vpop.f32.mrb[0].mxu0
        %v1526 = vadd.f32 %v1413, %v1525
        %v1527 = vpop.f32.mrb[0].mxu0
        %1528 = vmatprep.mubr.bf16.mxu0 0
        %1529 = vmatmul.mubr.bf16.gmra.mrb[0].mxu0 %v698
        %v1530 = vpop.f32.mrb[0].mxu0
        %v1531 = vadd.f32 %v1418, %v1530
        %v1532 = vpop.f32.mrb[0].mxu0
        %v1533 = vpop.f32.mrb[0].mxu0
        %v1534 = vadd.f32 %v1421, %v1533
        %v1535 = vpop.f32.mrb[0].mxu0
        %1536 = vmatprep.mubr.bf16.mxu0 0
        %1537 = vmatmul.mubr.bf16.gmra.mrb[0].mxu0 %v701
        %v1538 = vpop.f32.mrb[0].mxu0
        %v1539 = vadd.f32 %v1426, %v1538
        %v1540 = vpop.f32.mrb[0].mxu0
        %v1541 = vpop.f32.mrb[0].mxu0
        %v1542 = vadd.f32 %v1429, %v1541
        %v1543 = vpop.f32.mrb[0].mxu0
        %1544 = vmatprep.mubr.bf16.mxu0 0
        %1545 = vmatmul.mubr.bf16.gmra.mrb[0].mxu0 %v704
        %v1546 = vpop.f32.mrb[0].mxu0
        %v1547 = vadd.f32 %v1434, %v1546
        %v1548 = vpop.f32.mrb[0].mxu0
        %v1549 = vpop.f32.mrb[0].mxu0
        %v1550 = vadd.f32 %v1437, %v1549
        %v1551 = vpop.f32.mrb[0].mxu0
        %1552 = vmatprep.mubr.bf16.mxu0 0
        %1553 = vmatmul.mubr.bf16.gmra.mrb[0].mxu0 %v707
        %v1554 = vpop.f32.mrb[0].mxu0
        %v1555 = vadd.f32 %v1442, %v1554
        %v1556 = vpop.f32.mrb[0].mxu0
        %v1557 = vpop.f32.mrb[0].mxu0
        %v1558 = vadd.f32 %v1445, %v1557
        %v1559 = vpop.f32.mrb[0].mxu0
        %1560 = vmatprep.mubr.bf16.mxu0 0
        %1561 = vmatmul.mubr.bf16.gmra.mrb[0].mxu0 %v710
        %v1562 = vpop.f32.mrb[0].mxu0
        %v1563 = vadd.f32 %v1450, %v1562
        %v1564 = vpop.f32.mrb[0].mxu0
        %v1565 = vpop.f32.mrb[0].mxu0
        %v1566 = vadd.f32 %v1453, %v1565
        %v1567 = vpop.f32.mrb[0].mxu0
        %1568 = vmatprep.mubr.bf16.mxu0 0
        %1569 = vmatmul.mubr.bf16.gmra.mrb[0].mxu0 %v713
        %v1570 = vpop.f32.mrb[0].mxu0
        %v1571 = vadd.f32 %v1458, %v1570
        %v1572 = vpop.f32.mrb[0].mxu0
        %v1573 = vpop.f32.mrb[0].mxu0
        %v1574 = vadd.f32 %v1461, %v1573
        %v1575 = vpop.f32.mrb[0].mxu0
        %1576 = vmatprep.mubr.bf16.mxu0 0
        %1577 = vmatmul.mubr.bf16.gmra.mrb[0].mxu0 %v716
        %v1578 = vpop.f32.mrb[0].mxu0
        %v1579 = vadd.f32 %v1466, %v1578
        %v1580 = vpop.f32.mrb[0].mxu0
        %v1581 = vpop.f32.mrb[0].mxu0
        %v1582 = vadd.f32 %v1469, %v1581
        %v1583 = vpop.f32.mrb[0].mxu0
        %1584 = vdwg.mxu0
        %s1585 = scalar_lea.vmem [#allocation2], 48
        %v1586 = vld [vmem:[%s1585] sm:$0xff]
        %v1587 = vld [vmem:[%s1585 + $0x8] sm:$0xff]
        %v1588 = vld [vmem:[%s1585 + $0x10] sm:$0xff]
        %v1589 = vld [vmem:[%s1585 + $0x18] sm:$0xff]
        %v1590 = vld [vmem:[%s1585 + $0x20] sm:$0xff]
        %v1591 = vld [vmem:[%s1585 + $0x28] sm:$0xff]
        %v1592 = vld [vmem:[%s1585 + $0x30] sm:$0xff]
        %v1593 = vld [vmem:[%s1585 + $0x38] sm:$0xff]
        %v1594 = vld [vmem:[%s1585 + $0x40] sm:$0xff]
        %v1595 = vld [vmem:[%s1585 + $0x48] sm:$0xff]
        %v1596 = vld [vmem:[%s1585 + $0x50] sm:$0xff]
        %v1597 = vld [vmem:[%s1585 + $0x58] sm:$0xff]
        %v1598 = vld [vmem:[%s1585 + $0x60] sm:$0xff]
        %v1599 = vld [vmem:[%s1585 + $0x68] sm:$0xff]
        %v1600 = vld [vmem:[%s1585 + $0x70] sm:$0xff]
        %v1601 = vld [vmem:[%s1585 + $0x78] sm:$0xff]
        %v1602 = vld [vmem:[%s1585 + $0x80] sm:$0xff]
        %v1603 = vld [vmem:[%s1585 + $0x88] sm:$0xff]
        %v1604 = vld [vmem:[%s1585 + $0x90] sm:$0xff]
        %v1605 = vld [vmem:[%s1585 + $0x98] sm:$0xff]
        %v1606 = vld [vmem:[%s1585 + $0xa0] sm:$0xff]
        %v1607 = vld [vmem:[%s1585 + $0xa8] sm:$0xff]
        %v1608 = vld [vmem:[%s1585 + $0xb0] sm:$0xff]
        %v1609 = vld [vmem:[%s1585 + $0xb8] sm:$0xff]
        %v1610 = vld [vmem:[%s1585 + $0xc0] sm:$0xff]
        %v1611 = vld [vmem:[%s1585 + $0xc8] sm:$0xff]
        %v1612 = vld [vmem:[%s1585 + $0xd0] sm:$0xff]
        %v1613 = vld [vmem:[%s1585 + $0xd8] sm:$0xff]
        %v1614 = vld [vmem:[%s1585 + $0xe0] sm:$0xff]
        %v1615 = vld [vmem:[%s1585 + $0xe8] sm:$0xff]
        %s1616 = scalar_lea.vmem [#allocation7], 384
        %v1617 = vld [vmem:[%s1616] sm:$0xf]
        %v1618 = vld [vmem:[%s1616 + $0x4] sm:$0xf]
        %v1619 = vld [vmem:[%s1616 + $0x8] sm:$0xf]
        %v1620 = vld [vmem:[%s1616 + $0xc] sm:$0xf]
        %v1621 = vld [vmem:[%s1616 + $0x10] sm:$0xf]
        %v1622 = vld [vmem:[%s1616 + $0x14] sm:$0xf]
        %v1623 = vld [vmem:[%s1616 + $0x18] sm:$0xf]
        %v1624 = vld [vmem:[%s1616 + $0x1c] sm:$0xf]
        %v1625 = vld [vmem:[%s1616 + $0x20] sm:$0xf]
        %v1626 = vld [vmem:[%s1616 + $0x24] sm:$0xf]
        %v1627 = vld [vmem:[%s1616 + $0x28] sm:$0xf]
        %v1628 = vld [vmem:[%s1616 + $0x2c] sm:$0xf]
        %v1629 = vld [vmem:[%s1616 + $0x30] sm:$0xf]
        %v1630 = vld [vmem:[%s1616 + $0x34] sm:$0xf]
        %v1631 = vld [vmem:[%s1616 + $0x38] sm:$0xf]
        %v1632 = vld [vmem:[%s1616 + $0x3c] sm:$0xf]
        %v1633 = vld [vmem:[%s1616 + $0x40] sm:$0xf]
        %v1634 = vld [vmem:[%s1616 + $0x44] sm:$0xf]
        %v1635 = vld [vmem:[%s1616 + $0x48] sm:$0xf]
        %v1636 = vld [vmem:[%s1616 + $0x4c] sm:$0xf]
        %v1637 = vld [vmem:[%s1616 + $0x50] sm:$0xf]
        %v1638 = vld [vmem:[%s1616 + $0x54] sm:$0xf]
        %v1639 = vld [vmem:[%s1616 + $0x58] sm:$0xf]
        %v1640 = vld [vmem:[%s1616 + $0x5c] sm:$0xf]
        %v1641 = vld [vmem:[%s1616 + $0x60] sm:$0xf]
        %v1642 = vld [vmem:[%s1616 + $0x64] sm:$0xf]
        %v1643 = vld [vmem:[%s1616 + $0x68] sm:$0xf]
        %v1644 = vld [vmem:[%s1616 + $0x6c] sm:$0xf]
        %v1645 = vld [vmem:[%s1616 + $0x70] sm:$0xf]
        %v1646 = vld [vmem:[%s1616 + $0x74] sm:$0xf]
        %v1647 = vld [vmem:[%s1616 + $0x78] sm:$0xf]
        %v1648 = vld [vmem:[%s1616 + $0x7c] sm:$0xf]
        %v1649 = vld [vmem:[%s1616 + $0x80] sm:$0xf]
        %v1650 = vld [vmem:[%s1616 + $0x84] sm:$0xf]
        %v1651 = vld [vmem:[%s1616 + $0x88] sm:$0xf]
        %v1652 = vld [vmem:[%s1616 + $0x8c] sm:$0xf]
        %v1653 = vld [vmem:[%s1616 + $0x90] sm:$0xf]
        %v1654 = vld [vmem:[%s1616 + $0x94] sm:$0xf]
        %v1655 = vld [vmem:[%s1616 + $0x98] sm:$0xf]
        %v1656 = vld [vmem:[%s1616 + $0x9c] sm:$0xf]
        %v1657 = vld [vmem:[%s1616 + $0xa0] sm:$0xf]
        %v1658 = vld [vmem:[%s1616 + $0xa4] sm:$0xf]
        %v1659 = vld [vmem:[%s1616 + $0xa8] sm:$0xf]
        %v1660 = vld [vmem:[%s1616 + $0xac] sm:$0xf]
        %v1661 = vld [vmem:[%s1616 + $0xb0] sm:$0xf]
        %v1662 = vld [vmem:[%s1616 + $0xb4] sm:$0xf]
        %v1663 = vld [vmem:[%s1616 + $0xb8] sm:$0xf]
        %v1664 = vld [vmem:[%s1616 + $0xbc] sm:$0xf]
        %v1713 = vunpack.c.l.b16 %v1617
        %v1714 = vunpack.c.l.b16 %v1618
        %v1715 = vunpack.c.l.b16 %v1619
        %v1716 = vunpack.c.l.b16 %v1620
        %v1717 = vunpack.c.l.b16 %v1621
        %v1718 = vunpack.c.l.b16 %v1622
        %v1719 = vunpack.c.l.b16 %v1623
        %v1720 = vunpack.c.l.b16 %v1624
        %v1721 = vunpack.c.l.b16 %v1625
        %v1722 = vunpack.c.l.b16 %v1626
        %v1723 = vunpack.c.l.b16 %v1627
        %v1724 = vunpack.c.l.b16 %v1628
        %v1725 = vunpack.c.l.b16 %v1629
        %v1726 = vunpack.c.l.b16 %v1630
        %v1727 = vunpack.c.l.b16 %v1631
        %v1728 = vunpack.c.l.b16 %v1632
        %v1729 = vunpack.c.l.b16 %v1633
        %v1730 = vunpack.c.l.b16 %v1634
        %v1731 = vunpack.c.l.b16 %v1635
        %v1732 = vunpack.c.l.b16 %v1636
        %v1733 = vunpack.c.l.b16 %v1637
        %v1734 = vunpack.c.l.b16 %v1638
        %v1735 = vunpack.c.l.b16 %v1639
        %v1736 = vunpack.c.l.b16 %v1640
        %v1737 = vunpack.c.l.b16 %v1641
        %v1738 = vunpack.c.l.b16 %v1642
        %v1739 = vunpack.c.l.b16 %v1643
        %v1740 = vunpack.c.l.b16 %v1644
        %v1741 = vunpack.c.l.b16 %v1645
        %v1742 = vunpack.c.l.b16 %v1646
        %v1743 = vunpack.c.l.b16 %v1647
        %v1744 = vunpack.c.l.b16 %v1648
        %v1745 = vunpack.c.l.b16 %v1649
        %v1746 = vunpack.c.l.b16 %v1650
        %v1747 = vunpack.c.l.b16 %v1651
        %v1748 = vunpack.c.l.b16 %v1652
        %v1749 = vunpack.c.l.b16 %v1653
        %v1750 = vunpack.c.l.b16 %v1654
        %v1751 = vunpack.c.l.b16 %v1655
        %v1752 = vunpack.c.l.b16 %v1656
        %v1753 = vunpack.c.l.b16 %v1657
        %v1754 = vunpack.c.l.b16 %v1658
        %v1755 = vunpack.c.l.b16 %v1659
        %v1756 = vunpack.c.l.b16 %v1660
        %v1757 = vunpack.c.l.b16 %v1661
        %v1758 = vunpack.c.l.b16 %v1662
        %v1759 = vunpack.c.l.b16 %v1663
        %v1760 = vunpack.c.l.b16 %v1664
        %v1761 = vpack.c.b16 %v1714, %v1713
        %v1762 = vpack.c.b16 %v1716, %v1715
        %v1763 = vpack.c.b16 %v1718, %v1717
        %v1764 = vpack.c.b16 %v1720, %v1719
        %v1765 = vpack.c.b16 %v1722, %v1721
        %v1766 = vpack.c.b16 %v1724, %v1723
        %v1767 = vpack.c.b16 %v1726, %v1725
        %v1768 = vpack.c.b16 %v1728, %v1727
        %v1769 = vpack.c.b16 %v1730, %v1729
        %v1770 = vpack.c.b16 %v1732, %v1731
        %v1771 = vpack.c.b16 %v1734, %v1733
        %v1772 = vpack.c.b16 %v1736, %v1735
        %v1773 = vpack.c.b16 %v1738, %v1737
        %v1774 = vpack.c.b16 %v1740, %v1739
        %v1775 = vpack.c.b16 %v1742, %v1741
        %v1776 = vpack.c.b16 %v1744, %v1743
        %v1777 = vpack.c.b16 %v1746, %v1745
        %v1778 = vpack.c.b16 %v1748, %v1747
        %v1779 = vpack.c.b16 %v1750, %v1749
        %v1780 = vpack.c.b16 %v1752, %v1751
        %v1781 = vpack.c.b16 %v1754, %v1753
        %v1782 = vpack.c.b16 %v1756, %v1755
        %v1783 = vpack.c.b16 %v1758, %v1757
        %v1784 = vpack.c.b16 %v1760, %v1759
        %1809 = vmatprep.subr.bf16.mxu0 0
        %1810 = vmatpush1.bf16.msra.mxu0 %v1761
        %1811 = vmatprep.subr.bf16.mxu0 0
        %1812 = vmatpush1.bf16.msra.mxu0 %v1762
        %1813 = vmatprep.subr.bf16.mxu0 0
        %1814 = vmatpush1.bf16.msra.mxu0 %v1763
        %1815 = vmatprep.subr.bf16.mxu0 0
        %1816 = vmatpush1.bf16.msra.mxu0 %v1764
        %1817 = vmatprep.subr.bf16.mxu0 0
        %1818 = vmatpush1.bf16.msra.mxu0 %v1765
        %1819 = vmatprep.subr.bf16.mxu0 0
        %1820 = vmatpush1.bf16.msra.mxu0 %v1766
        %1821 = vmatprep.subr.bf16.mxu0 0
        %1822 = vmatpush1.bf16.msra.mxu0 %v1767
        %1823 = vmatprep.subr.bf16.mxu0 0
        %1824 = vmatpush1.bf16.msra.mxu0 %v1768
        %1825 = vmatprep.subr.bf16.mxu0 0
        %1826 = vmatpush1.bf16.msra.mxu0 %v1769
        %1827 = vmatprep.subr.bf16.mxu0 0
        %1828 = vmatpush1.bf16.msra.mxu0 %v1770
        %1829 = vmatprep.subr.bf16.mxu0 0
        %1830 = vmatpush1.bf16.msra.mxu0 %v1771
        %1831 = vmatprep.subr.bf16.mxu0 0
        %1832 = vmatpush1.bf16.msra.mxu0 %v1772
        %1833 = vmatprep.subr.bf16.mxu0 0
        %1834 = vmatpush1.bf16.msra.mxu0 %v1773
        %1835 = vmatprep.subr.bf16.mxu0 0
        %1836 = vmatpush1.bf16.msra.mxu0 %v1774
        %1837 = vmatprep.subr.bf16.mxu0 0
        %1838 = vmatpush1.bf16.msra.mxu0 %v1775
        %1839 = vmatprep.subr.bf16.mxu0 0
        %1840 = vmatpush1.bf16.msra.mxu0 %v1776
        %1841 = vmatprep.mubr.bf16.mxu0 %v1587
        %1842 = vmatmul.mubr.bf16.gmra.mrb[0].mxu0 %v1586
        %v1843 = vpop.f32.mrb[0].mxu0
        %v1844 = vadd.f32 0.0, %v1843
        %v1845 = vpop.f32.mrb[0].mxu0
        %v1846 = vpop.f32.mrb[0].mxu0
        %v1847 = vadd.f32 0.0, %v1846
        %v1848 = vpop.f32.mrb[0].mxu0
        %1849 = vmatprep.mubr.bf16.mxu0 %v1590
        %1850 = vmatmul.mubr.bf16.gmra.mrb[0].mxu0 %v1589
        %v1851 = vpop.f32.mrb[0].mxu0
        %v1852 = vadd.f32 0.0, %v1851
        %v1853 = vpop.f32.mrb[0].mxu0
        %v1854 = vpop.f32.mrb[0].mxu0
        %v1855 = vadd.f32 0.0, %v1854
        %v1856 = vpop.f32.mrb[0].mxu0
        %1857 = vmatprep.mubr.bf16.mxu0 %v1593
        %1858 = vmatmul.mubr.bf16.gmra.mrb[0].mxu0 %v1592
        %v1859 = vpop.f32.mrb[0].mxu0
        %v1860 = vadd.f32 0.0, %v1859
        %v1861 = vpop.f32.mrb[0].mxu0
        %v1862 = vpop.f32.mrb[0].mxu0
        %v1863 = vadd.f32 0.0, %v1862
        %v1864 = vpop.f32.mrb[0].mxu0
        %1865 = vmatprep.mubr.bf16.mxu0 %v1596
        %1866 = vmatmul.mubr.bf16.gmra.mrb[0].mxu0 %v1595
        %v1867 = vpop.f32.mrb[0].mxu0
        %v1868 = vadd.f32 0.0, %v1867
        %v1869 = vpop.f32.mrb[0].mxu0
        %v1870 = vpop.f32.mrb[0].mxu0
        %v1871 = vadd.f32 0.0, %v1870
        %v1872 = vpop.f32.mrb[0].mxu0
        %1873 = vmatprep.mubr.bf16.mxu0 %v1599
        %1874 = vmatmul.mubr.bf16.gmra.mrb[0].mxu0 %v1598
        %v1875 = vpop.f32.mrb[0].mxu0
        %v1876 = vadd.f32 0.0, %v1875
        %v1877 = vpop.f32.mrb[0].mxu0
        %v1878 = vpop.f32.mrb[0].mxu0
        %v1879 = vadd.f32 0.0, %v1878
        %v1880 = vpop.f32.mrb[0].mxu0
        %1881 = vmatprep.mubr.bf16.mxu0 %v1602
        %1882 = vmatmul.mubr.bf16.gmra.mrb[0].mxu0 %v1601
        %v1883 = vpop.f32.mrb[0].mxu0
        %v1884 = vadd.f32 0.0, %v1883
        %v1885 = vpop.f32.mrb[0].mxu0
        %v1886 = vpop.f32.mrb[0].mxu0
        %v1887 = vadd.f32 0.0, %v1886
        %v1888 = vpop.f32.mrb[0].mxu0
        %1889 = vmatprep.mubr.bf16.mxu0 %v1605
        %1890 = vmatmul.mubr.bf16.gmra.mrb[0].mxu0 %v1604
        %v1891 = vpop.f32.mrb[0].mxu0
        %v1892 = vadd.f32 0.0, %v1891
        %v1893 = vpop.f32.mrb[0].mxu0
        %v1894 = vpop.f32.mrb[0].mxu0
        %v1895 = vadd.f32 0.0, %v1894
        %v1896 = vpop.f32.mrb[0].mxu0
        %1897 = vmatprep.mubr.bf16.mxu0 %v1608
        %1898 = vmatmul.mubr.bf16.gmra.mrb[0].mxu0 %v1607
        %v1899 = vpop.f32.mrb[0].mxu0
        %v1900 = vadd.f32 0.0, %v1899
        %v1901 = vpop.f32.mrb[0].mxu0
        %v1902 = vpop.f32.mrb[0].mxu0
        %v1903 = vadd.f32 0.0, %v1902
        %v1904 = vpop.f32.mrb[0].mxu0
        %1905 = vmatprep.mubr.bf16.mxu0 %v1611
        %1906 = vmatmul.mubr.bf16.gmra.mrb[0].mxu0 %v1610
        %v1907 = vpop.f32.mrb[0].mxu0
        %v1908 = vadd.f32 0.0, %v1907
        %v1909 = vpop.f32.mrb[0].mxu0
        %v1910 = vpop.f32.mrb[0].mxu0
        %v1911 = vadd.f32 0.0, %v1910
        %v1912 = vpop.f32.mrb[0].mxu0
        %1913 = vmatprep.mubr.bf16.mxu0 %v1614
        %1914 = vmatmul.mubr.bf16.gmra.mrb[0].mxu0 %v1613
        %v1915 = vpop.f32.mrb[0].mxu0
        %v1916 = vadd.f32 0.0, %v1915
        %v1917 = vpop.f32.mrb[0].mxu0
        %v1918 = vpop.f32.mrb[0].mxu0
        %v1919 = vadd.f32 0.0, %v1918
        %v1920 = vpop.f32.mrb[0].mxu0
        %1921 = vdwg.mxu0
        %1922 = vmatprep.subr.bf16.mxu0 0
        %1923 = vmatpush1.bf16.msra.mxu0 %v1777
        %1924 = vmatprep.subr.bf16.mxu0 0
        %1925 = vmatpush1.bf16.msra.mxu0 %v1778
        %1926 = vmatprep.subr.bf16.mxu0 0
        %1927 = vmatpush1.bf16.msra.mxu0 %v1779
        %1928 = vmatprep.subr.bf16.mxu0 0
        %1929 = vmatpush1.bf16.msra.mxu0 %v1780
        %1930 = vmatprep.subr.bf16.mxu0 0
        %1931 = vmatpush1.bf16.msra.mxu0 %v1781
        %1932 = vmatprep.subr.bf16.mxu0 0
        %1933 = vmatpush1.bf16.msra.mxu0 %v1782
        %1934 = vmatprep.subr.bf16.mxu0 0
        %1935 = vmatpush1.bf16.msra.mxu0 %v1783
        %1936 = vmatprep.subr.bf16.mxu0 0
        %1937 = vmatpush1.bf16.msra.mxu0 %v1784
        %1938 = vmatprep.subr.bf16.mxu0 0
        %1939 = vmatpush1.bf16.msra.mxu0 0
        %1940 = vmatprep.subr.bf16.mxu0 0
        %1941 = vmatpush1.bf16.msra.mxu0 0
        %1942 = vmatprep.subr.bf16.mxu0 0
        %1943 = vmatpush1.bf16.msra.mxu0 0
        %1944 = vmatprep.subr.bf16.mxu0 0
        %1945 = vmatpush1.bf16.msra.mxu0 0
        %1946 = vmatprep.subr.bf16.mxu0 0
        %1947 = vmatpush1.bf16.msra.mxu0 0
        %1948 = vmatprep.subr.bf16.mxu0 0
        %1949 = vmatpush1.bf16.msra.mxu0 0
        %1950 = vmatprep.subr.bf16.mxu0 0
        %1951 = vmatpush1.bf16.msra.mxu0 0
        %1952 = vmatprep.subr.bf16.mxu0 0
        %1953 = vmatpush1.bf16.msra.mxu0 0
        %1954 = vmatprep.mubr.bf16.mxu0 0
        %1955 = vmatmul.mubr.bf16.gmra.mrb[0].mxu0 %v1588
        %v1956 = vpop.f32.mrb[0].mxu0
        %v1957 = vadd.f32 %v1844, %v1956
        %v1958 = vpop.f32.mrb[0].mxu0
        %v1959 = vpop.f32.mrb[0].mxu0
        %v1960 = vadd.f32 %v1847, %v1959
        %v1961 = vpop.f32.mrb[0].mxu0
        %1962 = vmatprep.mubr.bf16.mxu0 0
        %1963 = vmatmul.mubr.bf16.gmra.mrb[0].mxu0 %v1591
        %v1964 = vpop.f32.mrb[0].mxu0
        %v1965 = vadd.f32 %v1852, %v1964
        %v1966 = vpop.f32.mrb[0].mxu0
        %v1967 = vpop.f32.mrb[0].mxu0
        %v1968 = vadd.f32 %v1855, %v1967
        %v1969 = vpop.f32.mrb[0].mxu0
        %1970 = vmatprep.mubr.bf16.mxu0 0
        %1971 = vmatmul.mubr.bf16.gmra.mrb[0].mxu0 %v1594
        %v1972 = vpop.f32.mrb[0].mxu0
        %v1973 = vadd.f32 %v1860, %v1972
        %v1974 = vpop.f32.mrb[0].mxu0
        %v1975 = vpop.f32.mrb[0].mxu0
        %v1976 = vadd.f32 %v1863, %v1975
        %v1977 = vpop.f32.mrb[0].mxu0
        %1978 = vmatprep.mubr.bf16.mxu0 0
        %1979 = vmatmul.mubr.bf16.gmra.mrb[0].mxu0 %v1597
        %v1980 = vpop.f32.mrb[0].mxu0
        %v1981 = vadd.f32 %v1868, %v1980
        %v1982 = vpop.f32.mrb[0].mxu0
        %v1983 = vpop.f32.mrb[0].mxu0
        %v1984 = vadd.f32 %v1871, %v1983
        %v1985 = vpop.f32.mrb[0].mxu0
        %1986 = vmatprep.mubr.bf16.mxu0 0
        %1987 = vmatmul.mubr.bf16.gmra.mrb[0].mxu0 %v1600
        %v1988 = vpop.f32.mrb[0].mxu0
        %v1989 = vadd.f32 %v1876, %v1988
        %v1990 = vpop.f32.mrb[0].mxu0
        %v1991 = vpop.f32.mrb[0].mxu0
        %v1992 = vadd.f32 %v1879, %v1991
        %v1993 = vpop.f32.mrb[0].mxu0
        %1994 = vmatprep.mubr.bf16.mxu0 0
        %1995 = vmatmul.mubr.bf16.gmra.mrb[0].mxu0 %v1603
        %v1996 = vpop.f32.mrb[0].mxu0
        %v1997 = vadd.f32 %v1884, %v1996
        %v1998 = vpop.f32.mrb[0].mxu0
        %v1999 = vpop.f32.mrb[0].mxu0
        %v2000 = vadd.f32 %v1887, %v1999
        %v2001 = vpop.f32.mrb[0].mxu0
        %2002 = vmatprep.mubr.bf16.mxu0 0
        %2003 = vmatmul.mubr.bf16.gmra.mrb[0].mxu0 %v1606
        %v2004 = vpop.f32.mrb[0].mxu0
        %v2005 = vadd.f32 %v1892, %v2004
        %v2006 = vpop.f32.mrb[0].mxu0
        %v2007 = vpop.f32.mrb[0].mxu0
        %v2008 = vadd.f32 %v1895, %v2007
        %v2009 = vpop.f32.mrb[0].mxu0
        %2010 = vmatprep.mubr.bf16.mxu0 0
        %2011 = vmatmul.mubr.bf16.gmra.mrb[0].mxu0 %v1609
        %v2012 = vpop.f32.mrb[0].mxu0
        %v2013 = vadd.f32 %v1900, %v2012
        %v2014 = vpop.f32.mrb[0].mxu0
        %v2015 = vpop.f32.mrb[0].mxu0
        %v2016 = vadd.f32 %v1903, %v2015
        %v2017 = vpop.f32.mrb[0].mxu0
        %2018 = vmatprep.mubr.bf16.mxu0 0
        %2019 = vmatmul.mubr.bf16.gmra.mrb[0].mxu0 %v1612
        %v2020 = vpop.f32.mrb[0].mxu0
        %v2021 = vadd.f32 %v1908, %v2020
        %v2022 = vpop.f32.mrb[0].mxu0
        %v2023 = vpop.f32.mrb[0].mxu0
        %v2024 = vadd.f32 %v1911, %v2023
        %v2025 = vpop.f32.mrb[0].mxu0
        %2026 = vmatprep.mubr.bf16.mxu0 0
        %2027 = vmatmul.mubr.bf16.gmra.mrb[0].mxu0 %v1615
        %v2028 = vpop.f32.mrb[0].mxu0
        %v2029 = vadd.f32 %v1916, %v2028
        %v2030 = vpop.f32.mrb[0].mxu0
        %v2031 = vpop.f32.mrb[0].mxu0
        %v2032 = vadd.f32 %v1919, %v2031
        %v2033 = vpop.f32.mrb[0].mxu0
        %2034 = vdwg.mxu0
        %v2035 = vadd.f32 %v1507, %v1957
        %v2036 = vadd.f32 %v1510, %v1960
        %v2037 = vadd.f32 %v1515, %v1965
        %v2038 = vadd.f32 %v1518, %v1968
        %v2039 = vadd.f32 %v1523, %v1973
        %v2040 = vadd.f32 %v1526, %v1976
        %v2041 = vadd.f32 %v1531, %v1981
        %v2042 = vadd.f32 %v1534, %v1984
        %v2043 = vadd.f32 %v1539, %v1989
        %v2044 = vadd.f32 %v1542, %v1992
        %v2045 = vadd.f32 %v1547, %v1997
        %v2046 = vadd.f32 %v1550, %v2000
        %v2047 = vadd.f32 %v1555, %v2005
        %v2048 = vadd.f32 %v1558, %v2008
        %v2049 = vadd.f32 %v1563, %v2013
        %v2050 = vadd.f32 %v1566, %v2016
        %v2051 = vadd.f32 %v1571, %v2021
        %v2052 = vadd.f32 %v1574, %v2024
        %v2053 = vadd.f32 %v1579, %v2029
        %v2054 = vadd.f32 %v1582, %v2032
        %v2055 = vld [vmem:[%s3] sm:$0x1]
        %v2057 = vlaneseq
        %v2058 = vshrl.u32 %v2057, 7
        %v2059 = vsub.s32 0, %v2058
        %v2060 = vrot.slane %v2055, %v2059
        %v2062 = vadd.f32 %v2035, %v2060
        %v2063 = vadd.f32 %v2036, %v2060
        %v2064 = vadd.f32 %v2037, %v2060
        %v2065 = vadd.f32 %v2038, %v2060
        %v2066 = vadd.f32 %v2039, %v2060
        %v2067 = vadd.f32 %v2040, %v2060
        %v2068 = vadd.f32 %v2041, %v2060
        %v2069 = vadd.f32 %v2042, %v2060
        %v2070 = vadd.f32 %v2043, %v2060
        %v2071 = vadd.f32 %v2044, %v2060
        %v2072 = vadd.f32 %v2045, %v2060
        %v2073 = vadd.f32 %v2046, %v2060
        %v2074 = vadd.f32 %v2047, %v2060
        %v2075 = vadd.f32 %v2048, %v2060
        %v2076 = vadd.f32 %v2049, %v2060
        %v2077 = vadd.f32 %v2050, %v2060
        %v2078 = vadd.f32 %v2051, %v2060
        %v2079 = vadd.f32 %v2052, %v2060
        %v2080 = vadd.f32 %v2053, %v2060
        %v2081 = vadd.f32 %v2054, %v2060
        %v2082 = vmax.f32 %v2062, 0.0
        %v2083 = vmax.f32 %v2063, 0.0
        %v2084 = vmax.f32 %v2064, 0.0
        %v2085 = vmax.f32 %v2065, 0.0
        %v2086 = vmax.f32 %v2066, 0.0
        %v2087 = vmax.f32 %v2067, 0.0
        %v2088 = vmax.f32 %v2068, 0.0
        %v2089 = vmax.f32 %v2069, 0.0
        %v2090 = vmax.f32 %v2070, 0.0
        %v2091 = vmax.f32 %v2071, 0.0
        %v2092 = vmax.f32 %v2072, 0.0
        %v2093 = vmax.f32 %v2073, 0.0
        %v2094 = vmax.f32 %v2074, 0.0
        %v2095 = vmax.f32 %v2075, 0.0
        %v2096 = vmax.f32 %v2076, 0.0
        %v2097 = vmax.f32 %v2077, 0.0
        %v2098 = vmax.f32 %v2078, 0.0
        %v2099 = vmax.f32 %v2079, 0.0
        %v2100 = vmax.f32 %v2080, 0.0
        %v2101 = vmax.f32 %v2081, 0.0
        %v2102 = vpack.c.bf16 %v2083, %v2082
        %v2103 = vpack.c.bf16 %v2085, %v2084
        %v2104 = vpack.c.bf16 %v2087, %v2086
        %v2105 = vpack.c.bf16 %v2089, %v2088
        %v2106 = vpack.c.bf16 %v2091, %v2090
        %v2107 = vpack.c.bf16 %v2093, %v2092
        %v2108 = vpack.c.bf16 %v2095, %v2094
        %v2109 = vpack.c.bf16 %v2097, %v2096
        %v2110 = vpack.c.bf16 %v2099, %v2098
        %v2111 = vpack.c.bf16 %v2101, %v2100
        %2112 = vst [vmem:[#allocation3 + $0x8] sm:$0xff] %v2102
        %2113 = vst [vmem:[#allocation3 + $0x20] sm:$0xff] %v2103
        %2114 = vst [vmem:[#allocation3 + $0x38] sm:$0xff] %v2104
        %2115 = vst [vmem:[#allocation3 + $0x50] sm:$0xff] %v2105
        %2116 = vst [vmem:[#allocation3 + $0x68] sm:$0xff] %v2106
        %2117 = vst [vmem:[#allocation3 + $0x80] sm:$0xff] %v2107
        %2118 = vst [vmem:[#allocation3 + $0x98] sm:$0xff] %v2108
        %2119 = vst [vmem:[#allocation3 + $0xb0] sm:$0xff] %v2109
        %2120 = vst [vmem:[#allocation3 + $0xc8] sm:$0xff] %v2110
        %2121 = vst [vmem:[#allocation3 + $0xe0] sm:$0xff] %v2111
        %v2123 = vshrl.u32 %v2102, 16
        %v2125 = vrot.slane %v2123, 7
        %v2126 = vshll.u32 %v2102, 16
        %v2128 = vor.u32 %v2125, %v2126
        %v2130 = vshrl.u32 %v2103, 16
        %v2132 = vrot.slane %v2130, 7
        %v2133 = vshll.u32 %v2103, 16
        %v2135 = vor.u32 %v2132, %v2133
        %v2137 = vshrl.u32 %v2104, 16
        %v2139 = vrot.slane %v2137, 7
        %v2140 = vshll.u32 %v2104, 16
        %v2142 = vor.u32 %v2139, %v2140
        %v2144 = vshrl.u32 %v2105, 16
        %v2146 = vrot.slane %v2144, 7
        %v2147 = vshll.u32 %v2105, 16
        %v2149 = vor.u32 %v2146, %v2147
        %v2151 = vshrl.u32 %v2106, 16
        %v2153 = vrot.slane %v2151, 7
        %v2154 = vshll.u32 %v2106, 16
        %v2156 = vor.u32 %v2153, %v2154
        %v2158 = vshrl.u32 %v2107, 16
        %v2160 = vrot.slane %v2158, 7
        %v2161 = vshll.u32 %v2107, 16
        %v2163 = vor.u32 %v2160, %v2161
        %v2165 = vshrl.u32 %v2108, 16
        %v2167 = vrot.slane %v2165, 7
        %v2168 = vshll.u32 %v2108, 16
        %v2170 = vor.u32 %v2167, %v2168
        %v2172 = vshrl.u32 %v2109, 16
        %v2174 = vrot.slane %v2172, 7
        %v2175 = vshll.u32 %v2109, 16
        %v2177 = vor.u32 %v2174, %v2175
        %v2179 = vshrl.u32 %v2110, 16
        %v2181 = vrot.slane %v2179, 7
        %v2182 = vshll.u32 %v2110, 16
        %v2184 = vor.u32 %v2181, %v2182
        %v2186 = vshrl.u32 %v2111, 16
        %v2188 = vrot.slane %v2186, 7
        %v2189 = vshll.u32 %v2111, 16
        %v2191 = vor.u32 %v2188, %v2189
        %v2202 = vld [vmem:[#allocation3] sm:$0xff]
        %v2203 = vsel %vm498, %v2128, %v2202
        %2204 = vst [vmem:[#allocation3] sm:$0xff] %v2203
        %v2205 = vld [vmem:[#allocation3 + $0x18] sm:$0xff]
        %v2206 = vsel %vm498, %v2135, %v2205
        %2207 = vst [vmem:[#allocation3 + $0x18] sm:$0xff] %v2206
        %v2208 = vld [vmem:[#allocation3 + $0x30] sm:$0xff]
        %v2209 = vsel %vm498, %v2142, %v2208
        %2210 = vst [vmem:[#allocation3 + $0x30] sm:$0xff] %v2209
        %v2211 = vld [vmem:[#allocation3 + $0x48] sm:$0xff]
        %v2212 = vsel %vm498, %v2149, %v2211
        %2213 = vst [vmem:[#allocation3 + $0x48] sm:$0xff] %v2212
        %v2214 = vld [vmem:[#allocation3 + $0x60] sm:$0xff]
        %v2215 = vsel %vm498, %v2156, %v2214
        %2216 = vst [vmem:[#allocation3 + $0x60] sm:$0xff] %v2215
        %v2217 = vld [vmem:[#allocation3 + $0x78] sm:$0xff]
        %v2218 = vsel %vm498, %v2163, %v2217
        %2219 = vst [vmem:[#allocation3 + $0x78] sm:$0xff] %v2218
        %v2220 = vld [vmem:[#allocation3 + $0x90] sm:$0xff]
        %v2221 = vsel %vm498, %v2170, %v2220
        %2222 = vst [vmem:[#allocation3 + $0x90] sm:$0xff] %v2221
        %v2223 = vld [vmem:[#allocation3 + $0xa8] sm:$0xff]
        %v2224 = vsel %vm498, %v2177, %v2223
        %2225 = vst [vmem:[#allocation3 + $0xa8] sm:$0xff] %v2224
        %v2226 = vld [vmem:[#allocation3 + $0xc0] sm:$0xff]
        %v2227 = vsel %vm498, %v2184, %v2226
        %2228 = vst [vmem:[#allocation3 + $0xc0] sm:$0xff] %v2227
        %v2229 = vld [vmem:[#allocation3 + $0xd8] sm:$0xff]
        %v2230 = vsel %vm498, %v2191, %v2229
        %2231 = vst [vmem:[#allocation3 + $0xd8] sm:$0xff] %v2230
        %v2232 = vld [vmem:[#allocation3] sm:$0x1]
        %v2233 = vsel %vm537, 0, %v2232
        %2234 = vst [vmem:[#allocation3] sm:$0x1] %v2233
        %v2235 = vld [vmem:[#allocation3 + $0x18] sm:$0x1]
        %v2236 = vsel %vm537, 0, %v2235
        %2237 = vst [vmem:[#allocation3 + $0x18] sm:$0x1] %v2236
        %v2238 = vld [vmem:[#allocation3 + $0x30] sm:$0x1]
        %v2239 = vsel %vm537, 0, %v2238
        %2240 = vst [vmem:[#allocation3 + $0x30] sm:$0x1] %v2239
        %v2241 = vld [vmem:[#allocation3 + $0x48] sm:$0x1]
        %v2242 = vsel %vm537, 0, %v2241
        %2243 = vst [vmem:[#allocation3 + $0x48] sm:$0x1] %v2242
        %v2244 = vld [vmem:[#allocation3 + $0x60] sm:$0x1]
        %v2245 = vsel %vm537, 0, %v2244
        %2246 = vst [vmem:[#allocation3 + $0x60] sm:$0x1] %v2245
        %v2247 = vld [vmem:[#allocation3 + $0x78] sm:$0x1]
        %v2248 = vsel %vm537, 0, %v2247
        %2249 = vst [vmem:[#allocation3 + $0x78] sm:$0x1] %v2248
        %v2250 = vld [vmem:[#allocation3 + $0x90] sm:$0x1]
        %v2251 = vsel %vm537, 0, %v2250
        %2252 = vst [vmem:[#allocation3 + $0x90] sm:$0x1] %v2251
        %v2253 = vld [vmem:[#allocation3 + $0xa8] sm:$0x1]
        %v2254 = vsel %vm537, 0, %v2253
        %2255 = vst [vmem:[#allocation3 + $0xa8] sm:$0x1] %v2254
        %v2256 = vld [vmem:[#allocation3 + $0xc0] sm:$0x1]
        %v2257 = vsel %vm537, 0, %v2256
        %2258 = vst [vmem:[#allocation3 + $0xc0] sm:$0x1] %v2257
        %v2259 = vld [vmem:[#allocation3 + $0xd8] sm:$0x1]
        %v2260 = vsel %vm537, 0, %v2259
        %2261 = vst [vmem:[#allocation3 + $0xd8] sm:$0x1] %v2260
        %v2262 = vrot.slane %v2126, 1
        %v2263 = vor.u32 %v2123, %v2262
        %v2264 = vrot.slane %v2133, 1
        %v2265 = vor.u32 %v2130, %v2264
        %v2266 = vrot.slane %v2140, 1
        %v2267 = vor.u32 %v2137, %v2266
        %v2268 = vrot.slane %v2147, 1
        %v2269 = vor.u32 %v2144, %v2268
        %v2270 = vrot.slane %v2154, 1
        %v2271 = vor.u32 %v2151, %v2270
        %v2272 = vrot.slane %v2161, 1
        %v2273 = vor.u32 %v2158, %v2272
        %v2274 = vrot.slane %v2168, 1
        %v2275 = vor.u32 %v2165, %v2274
        %v2276 = vrot.slane %v2175, 1
        %v2277 = vor.u32 %v2172, %v2276
        %v2278 = vrot.slane %v2182, 1
        %v2279 = vor.u32 %v2179, %v2278
        %v2280 = vrot.slane %v2189, 1
        %v2281 = vor.u32 %v2186, %v2280
        %v2292 = vld [vmem:[#allocation3 + $0x10] sm:$0xff]
        %v2293 = vsel %vm611, %v2263, %v2292
        %2294 = vst [vmem:[#allocation3 + $0x10] sm:$0xff] %v2293
        %v2295 = vld [vmem:[#allocation3 + $0x28] sm:$0xff]
        %v2296 = vsel %vm611, %v2265, %v2295
        %2297 = vst [vmem:[#allocation3 + $0x28] sm:$0xff] %v2296
        %v2298 = vld [vmem:[#allocation3 + $0x40] sm:$0xff]
        %v2299 = vsel %vm611, %v2267, %v2298
        %2300 = vst [vmem:[#allocation3 + $0x40] sm:$0xff] %v2299
        %v2301 = vld [vmem:[#allocation3 + $0x58] sm:$0xff]
        %v2302 = vsel %vm611, %v2269, %v2301
        %2303 = vst [vmem:[#allocation3 + $0x58] sm:$0xff] %v2302
        %v2304 = vld [vmem:[#allocation3 + $0x70] sm:$0xff]
        %v2305 = vsel %vm611, %v2271, %v2304
        %2306 = vst [vmem:[#allocation3 + $0x70] sm:$0xff] %v2305
        %v2307 = vld [vmem:[#allocation3 + $0x88] sm:$0xff]
        %v2308 = vsel %vm611, %v2273, %v2307
        %2309 = vst [vmem:[#allocation3 + $0x88] sm:$0xff] %v2308
        %v2310 = vld [vmem:[#allocation3 + $0xa0] sm:$0xff]
        %v2311 = vsel %vm611, %v2275, %v2310
        %2312 = vst [vmem:[#allocation3 + $0xa0] sm:$0xff] %v2311
        %v2313 = vld [vmem:[#allocation3 + $0xb8] sm:$0xff]
        %v2314 = vsel %vm611, %v2277, %v2313
        %2315 = vst [vmem:[#allocation3 + $0xb8] sm:$0xff] %v2314
        %v2316 = vld [vmem:[#allocation3 + $0xd0] sm:$0xff]
        %v2317 = vsel %vm611, %v2279, %v2316
        %2318 = vst [vmem:[#allocation3 + $0xd0] sm:$0xff] %v2317
        %v2319 = vld [vmem:[#allocation3 + $0xe8] sm:$0xff]
        %v2320 = vsel %vm611, %v2281, %v2319
        %2321 = vst [vmem:[#allocation3 + $0xe8] sm:$0xff] %v2320
        %v2322 = vld [vmem:[#allocation3 + $0x10] sm:$0x80]
        %v2323 = vsel %vm650, 0, %v2322
        %2324 = vst [vmem:[#allocation3 + $0x10] sm:$0x80] %v2323
        %v2325 = vld [vmem:[#allocation3 + $0x28] sm:$0x80]
        %v2326 = vsel %vm650, 0, %v2325
        %2327 = vst [vmem:[#allocation3 + $0x28] sm:$0x80] %v2326
        %v2328 = vld [vmem:[#allocation3 + $0x40] sm:$0x80]
        %v2329 = vsel %vm650, 0, %v2328
        %2330 = vst [vmem:[#allocation3 + $0x40] sm:$0x80] %v2329
        %v2331 = vld [vmem:[#allocation3 + $0x58] sm:$0x80]
        %v2332 = vsel %vm650, 0, %v2331
        %2333 = vst [vmem:[#allocation3 + $0x58] sm:$0x80] %v2332
        %v2334 = vld [vmem:[#allocation3 + $0x70] sm:$0x80]
        %v2335 = vsel %vm650, 0, %v2334
        %2336 = vst [vmem:[#allocation3 + $0x70] sm:$0x80] %v2335
        %v2337 = vld [vmem:[#allocation3 + $0x88] sm:$0x80]
        %v2338 = vsel %vm650, 0, %v2337
        %2339 = vst [vmem:[#allocation3 + $0x88] sm:$0x80] %v2338
        %v2340 = vld [vmem:[#allocation3 + $0xa0] sm:$0x80]
        %v2341 = vsel %vm650, 0, %v2340
        %2342 = vst [vmem:[#allocation3 + $0xa0] sm:$0x80] %v2341
        %v2343 = vld [vmem:[#allocation3 + $0xb8] sm:$0x80]
        %v2344 = vsel %vm650, 0, %v2343
        %2345 = vst [vmem:[#allocation3 + $0xb8] sm:$0x80] %v2344
        %v2346 = vld [vmem:[#allocation3 + $0xd0] sm:$0x80]
        %v2347 = vsel %vm650, 0, %v2346
        %2348 = vst [vmem:[#allocation3 + $0xd0] sm:$0x80] %v2347
        %v2349 = vld [vmem:[#allocation3 + $0xe8] sm:$0x80]
        %v2350 = vsel %vm650, 0, %v2349
        %2351 = vst [vmem:[#allocation3 + $0xe8] sm:$0x80] %v2350
        %p2352 = scmp.eq.s32.totalorder %s28, 0
        // Predicated region
        $region53: #{tpu_custom_call.1} parent=39 // pred_check
          %p2353 = pneg %p2352
        $region54: #{tpu_custom_call.1} parent=39 // pred_check_branch
          %2355 = sbr.rel (%p2353) target = $region56
        $region55: #{tpu_custom_call.1} parent=39 // pred_region
          %2356 = vst [vmem:[#allocation3] sm:$0xff] 0
          %2357 = vst [vmem:[#allocation3 + $0x8] sm:$0xff] 0
          %2358 = vst [vmem:[#allocation3 + $0x10] sm:$0xff] 0
        $region56: #{tpu_custom_call.1} parent=39 // pred_fallthru
          _
        %p2359 = scmp.eq.s32.totalorder %s28, 1
        // Predicated region
        $region57: #{tpu_custom_call.1} parent=39 // pred_check
          %p2360 = pneg %p2359
        $region58: #{tpu_custom_call.1} parent=39 // pred_check_branch
          %2362 = sbr.rel (%p2360) target = $region60
        $region59: #{tpu_custom_call.1} parent=39 // pred_region
          %s2363 = scalar_lea.vmem [#allocation3], 216
          %2364 = vst [vmem:[%s2363] sm:$0xff] 0
          %2365 = vst [vmem:[%s2363 + $0x8] sm:$0xff] 0
          %2366 = vst [vmem:[%s2363 + $0x10] sm:$0xff] 0
        $region60: #{tpu_custom_call.1} parent=39 // pred_fallthru
          _
        %v2367 = vld [vmem:[#allocation3] sm:$0xff]
        %v2368 = vld [vmem:[#allocation3 + $0x8] sm:$0xff]
        %v2369 = vld [vmem:[#allocation3 + $0x10] sm:$0xff]
        %v2370 = vld [vmem:[#allocation3 + $0x18] sm:$0xff]
        %v2371 = vld [vmem:[#allocation3 + $0x20] sm:$0xff]
        %v2372 = vld [vmem:[#allocation3 + $0x28] sm:$0xff]
        %v2373 = vld [vmem:[#allocation3 + $0x30] sm:$0xff]
        %v2374 = vld [vmem:[#allocation3 + $0x38] sm:$0xff]
        %v2375 = vld [vmem:[#allocation3 + $0x40] sm:$0xff]
        %v2376 = vld [vmem:[#allocation3 + $0x48] sm:$0xff]
        %v2377 = vld [vmem:[#allocation3 + $0x50] sm:$0xff]
        %v2378 = vld [vmem:[#allocation3 + $0x58] sm:$0xff]
        %v2379 = vld [vmem:[#allocation3 + $0x60] sm:$0xff]
        %v2380 = vld [vmem:[#allocation3 + $0x68] sm:$0xff]
        %v2381 = vld [vmem:[#allocation3 + $0x70] sm:$0xff]
        %v2382 = vld [vmem:[#allocation3 + $0x78] sm:$0xff]
        %v2383 = vld [vmem:[#allocation3 + $0x80] sm:$0xff]
        %v2384 = vld [vmem:[#allocation3 + $0x88] sm:$0xff]
        %v2385 = vld [vmem:[#allocation3 + $0x90] sm:$0xff]
        %v2386 = vld [vmem:[#allocation3 + $0x98] sm:$0xff]
        %v2387 = vld [vmem:[#allocation3 + $0xa0] sm:$0xff]
        %v2388 = vld [vmem:[#allocation3 + $0xa8] sm:$0xff]
        %v2389 = vld [vmem:[#allocation3 + $0xb0] sm:$0xff]
        %v2390 = vld [vmem:[#allocation3 + $0xb8] sm:$0xff]
        %v2391 = vld [vmem:[#allocation9] sm:$0xf]
        %v2392 = vld [vmem:[#allocation9 + $0x4] sm:$0xf]
        %v2393 = vld [vmem:[#allocation9 + $0x8] sm:$0xf]
        %v2394 = vld [vmem:[#allocation9 + $0xc] sm:$0xf]
        %v2395 = vld [vmem:[#allocation9 + $0x10] sm:$0xf]
        %v2396 = vld [vmem:[#allocation9 + $0x14] sm:$0xf]
        %v2397 = vld [vmem:[#allocation9 + $0x18] sm:$0xf]
        %v2398 = vld [vmem:[#allocation9 + $0x1c] sm:$0xf]
        %v2399 = vld [vmem:[#allocation9 + $0x20] sm:$0xf]
        %v2400 = vld [vmem:[#allocation9 + $0x24] sm:$0xf]
        %v2401 = vld [vmem:[#allocation9 + $0x28] sm:$0xf]
        %v2402 = vld [vmem:[#allocation9 + $0x2c] sm:$0xf]
        %v2403 = vld [vmem:[#allocation9 + $0x30] sm:$0xf]
        %v2404 = vld [vmem:[#allocation9 + $0x34] sm:$0xf]
        %v2405 = vld [vmem:[#allocation9 + $0x38] sm:$0xf]
        %v2406 = vld [vmem:[#allocation9 + $0x3c] sm:$0xf]
        %v2407 = vld [vmem:[#allocation9 + $0x40] sm:$0xf]
        %v2408 = vld [vmem:[#allocation9 + $0x44] sm:$0xf]
        %v2409 = vld [vmem:[#allocation9 + $0x48] sm:$0xf]
        %v2410 = vld [vmem:[#allocation9 + $0x4c] sm:$0xf]
        %v2411 = vld [vmem:[#allocation9 + $0x50] sm:$0xf]
        %v2412 = vld [vmem:[#allocation9 + $0x54] sm:$0xf]
        %v2413 = vld [vmem:[#allocation9 + $0x58] sm:$0xf]
        %v2414 = vld [vmem:[#allocation9 + $0x5c] sm:$0xf]
        %v2415 = vld [vmem:[#allocation9 + $0x60] sm:$0xf]
        %v2416 = vld [vmem:[#allocation9 + $0x64] sm:$0xf]
        %v2417 = vld [vmem:[#allocation9 + $0x68] sm:$0xf]
        %v2418 = vld [vmem:[#allocation9 + $0x6c] sm:$0xf]
        %v2419 = vld [vmem:[#allocation9 + $0x70] sm:$0xf]
        %v2420 = vld [vmem:[#allocation9 + $0x74] sm:$0xf]
        %v2421 = vld [vmem:[#allocation9 + $0x78] sm:$0xf]
        %v2422 = vld [vmem:[#allocation9 + $0x7c] sm:$0xf]
        %v2423 = vld [vmem:[#allocation9 + $0x80] sm:$0xf]
        %v2424 = vld [vmem:[#allocation9 + $0x84] sm:$0xf]
        %v2425 = vld [vmem:[#allocation9 + $0x88] sm:$0xf]
        %v2426 = vld [vmem:[#allocation9 + $0x8c] sm:$0xf]
        %v2427 = vld [vmem:[#allocation9 + $0x90] sm:$0xf]
        %v2428 = vld [vmem:[#allocation9 + $0x94] sm:$0xf]
        %v2429 = vld [vmem:[#allocation9 + $0x98] sm:$0xf]
        %v2430 = vld [vmem:[#allocation9 + $0x9c] sm:$0xf]
        %v2431 = vld [vmem:[#allocation9 + $0xa0] sm:$0xf]
        %v2432 = vld [vmem:[#allocation9 + $0xa4] sm:$0xf]
        %v2433 = vld [vmem:[#allocation9 + $0xa8] sm:$0xf]
        %v2434 = vld [vmem:[#allocation9 + $0xac] sm:$0xf]
        %v2435 = vld [vmem:[#allocation9 + $0xb0] sm:$0xf]
        %v2436 = vld [vmem:[#allocation9 + $0xb4] sm:$0xf]
        %v2437 = vld [vmem:[#allocation9 + $0xb8] sm:$0xf]
        %v2438 = vld [vmem:[#allocation9 + $0xbc] sm:$0xf]
        %s2439 = scalar_lea.vmem [#allocation3], 24
        %v2440 = vld [vmem:[%s2439] sm:$0xff]
        %v2441 = vld [vmem:[%s2439 + $0x8] sm:$0xff]
        %v2442 = vld [vmem:[%s2439 + $0x10] sm:$0xff]
        %v2443 = vld [vmem:[%s2439 + $0x18] sm:$0xff]
        %v2444 = vld [vmem:[%s2439 + $0x20] sm:$0xff]
        %v2445 = vld [vmem:[%s2439 + $0x28] sm:$0xff]
        %v2446 = vld [vmem:[%s2439 + $0x30] sm:$0xff]
        %v2447 = vld [vmem:[%s2439 + $0x38] sm:$0xff]
        %v2448 = vld [vmem:[%s2439 + $0x40] sm:$0xff]
        %v2449 = vld [vmem:[%s2439 + $0x48] sm:$0xff]
        %v2450 = vld [vmem:[%s2439 + $0x50] sm:$0xff]
        %v2451 = vld [vmem:[%s2439 + $0x58] sm:$0xff]
        %v2452 = vld [vmem:[%s2439 + $0x60] sm:$0xff]
        %v2453 = vld [vmem:[%s2439 + $0x68] sm:$0xff]
        %v2454 = vld [vmem:[%s2439 + $0x70] sm:$0xff]
        %v2455 = vld [vmem:[%s2439 + $0x78] sm:$0xff]
        %v2456 = vld [vmem:[%s2439 + $0x80] sm:$0xff]
        %v2457 = vld [vmem:[%s2439 + $0x88] sm:$0xff]
        %v2458 = vld [vmem:[%s2439 + $0x90] sm:$0xff]
        %v2459 = vld [vmem:[%s2439 + $0x98] sm:$0xff]
        %v2460 = vld [vmem:[%s2439 + $0xa0] sm:$0xff]
        %v2461 = vld [vmem:[%s2439 + $0xa8] sm:$0xff]
        %v2462 = vld [vmem:[%s2439 + $0xb0] sm:$0xff]
        %v2463 = vld [vmem:[%s2439 + $0xb8] sm:$0xff]
        %s2464 = scalar_lea.vmem [#allocation9], 192
        %v2465 = vld [vmem:[%s2464] sm:$0xf]
        %v2466 = vld [vmem:[%s2464 + $0x4] sm:$0xf]
        %v2467 = vld [vmem:[%s2464 + $0x8] sm:$0xf]
        %v2468 = vld [vmem:[%s2464 + $0xc] sm:$0xf]
        %v2469 = vld [vmem:[%s2464 + $0x10] sm:$0xf]
        %v2470 = vld [vmem:[%s2464 + $0x14] sm:$0xf]
        %v2471 = vld [vmem:[%s2464 + $0x18] sm:$0xf]
        %v2472 = vld [vmem:[%s2464 + $0x1c] sm:$0xf]
        %v2473 = vld [vmem:[%s2464 + $0x20] sm:$0xf]
        %v2474 = vld [vmem:[%s2464 + $0x24] sm:$0xf]
        %v2475 = vld [vmem:[%s2464 + $0x28] sm:$0xf]
        %v2476 = vld [vmem:[%s2464 + $0x2c] sm:$0xf]
        %v2477 = vld [vmem:[%s2464 + $0x30] sm:$0xf]
        %v2478 = vld [vmem:[%s2464 + $0x34] sm:$0xf]
        %v2479 = vld [vmem:[%s2464 + $0x38] sm:$0xf]
        %v2480 = vld [vmem:[%s2464 + $0x3c] sm:$0xf]
        %v2481 = vld [vmem:[%s2464 + $0x40] sm:$0xf]
        %v2482 = vld [vmem:[%s2464 + $0x44] sm:$0xf]
        %v2483 = vld [vmem:[%s2464 + $0x48] sm:$0xf]
        %v2484 = vld [vmem:[%s2464 + $0x4c] sm:$0xf]
        %v2485 = vld [vmem:[%s2464 + $0x50] sm:$0xf]
        %v2486 = vld [vmem:[%s2464 + $0x54] sm:$0xf]
        %v2487 = vld [vmem:[%s2464 + $0x58] sm:$0xf]
        %v2488 = vld [vmem:[%s2464 + $0x5c] sm:$0xf]
        %v2489 = vld [vmem:[%s2464 + $0x60] sm:$0xf]
        %v2490 = vld [vmem:[%s2464 + $0x64] sm:$0xf]
        %v2491 = vld [vmem:[%s2464 + $0x68] sm:$0xf]
        %v2492 = vld [vmem:[%s2464 + $0x6c] sm:$0xf]
        %v2493 = vld [vmem:[%s2464 + $0x70] sm:$0xf]
        %v2494 = vld [vmem:[%s2464 + $0x74] sm:$0xf]
        %v2495 = vld [vmem:[%s2464 + $0x78] sm:$0xf]
        %v2496 = vld [vmem:[%s2464 + $0x7c] sm:$0xf]
        %v2497 = vld [vmem:[%s2464 + $0x80] sm:$0xf]
        %v2498 = vld [vmem:[%s2464 + $0x84] sm:$0xf]
        %v2499 = vld [vmem:[%s2464 + $0x88] sm:$0xf]
        %v2500 = vld [vmem:[%s2464 + $0x8c] sm:$0xf]
        %v2501 = vld [vmem:[%s2464 + $0x90] sm:$0xf]
        %v2502 = vld [vmem:[%s2464 + $0x94] sm:$0xf]
        %v2503 = vld [vmem:[%s2464 + $0x98] sm:$0xf]
        %v2504 = vld [vmem:[%s2464 + $0x9c] sm:$0xf]
        %v2505 = vld [vmem:[%s2464 + $0xa0] sm:$0xf]
        %v2506 = vld [vmem:[%s2464 + $0xa4] sm:$0xf]
        %v2507 = vld [vmem:[%s2464 + $0xa8] sm:$0xf]
        %v2508 = vld [vmem:[%s2464 + $0xac] sm:$0xf]
        %v2509 = vld [vmem:[%s2464 + $0xb0] sm:$0xf]
        %v2510 = vld [vmem:[%s2464 + $0xb4] sm:$0xf]
        %v2511 = vld [vmem:[%s2464 + $0xb8] sm:$0xf]
        %v2512 = vld [vmem:[%s2464 + $0xbc] sm:$0xf]
        %v2561 = vunpack.c.l.b16 %v2465
        %v2562 = vunpack.c.l.b16 %v2466
        %v2563 = vunpack.c.l.b16 %v2467
        %v2564 = vunpack.c.l.b16 %v2468
        %v2565 = vunpack.c.l.b16 %v2469
        %v2566 = vunpack.c.l.b16 %v2470
        %v2567 = vunpack.c.l.b16 %v2471
        %v2568 = vunpack.c.l.b16 %v2472
        %v2569 = vunpack.c.l.b16 %v2473
        %v2570 = vunpack.c.l.b16 %v2474
        %v2571 = vunpack.c.l.b16 %v2475
        %v2572 = vunpack.c.l.b16 %v2476
        %v2573 = vunpack.c.l.b16 %v2477
        %v2574 = vunpack.c.l.b16 %v2478
        %v2575 = vunpack.c.l.b16 %v2479
        %v2576 = vunpack.c.l.b16 %v2480
        %v2577 = vunpack.c.l.b16 %v2481
        %v2578 = vunpack.c.l.b16 %v2482
        %v2579 = vunpack.c.l.b16 %v2483
        %v2580 = vunpack.c.l.b16 %v2484
        %v2581 = vunpack.c.l.b16 %v2485
        %v2582 = vunpack.c.l.b16 %v2486
        %v2583 = vunpack.c.l.b16 %v2487
        %v2584 = vunpack.c.l.b16 %v2488
        %v2585 = vunpack.c.l.b16 %v2489
        %v2586 = vunpack.c.l.b16 %v2490
        %v2587 = vunpack.c.l.b16 %v2491
        %v2588 = vunpack.c.l.b16 %v2492
        %v2589 = vunpack.c.l.b16 %v2493
        %v2590 = vunpack.c.l.b16 %v2494
        %v2591 = vunpack.c.l.b16 %v2495
        %v2592 = vunpack.c.l.b16 %v2496
        %v2593 = vunpack.c.l.b16 %v2497
        %v2594 = vunpack.c.l.b16 %v2498
        %v2595 = vunpack.c.l.b16 %v2499
        %v2596 = vunpack.c.l.b16 %v2500
        %v2597 = vunpack.c.l.b16 %v2501
        %v2598 = vunpack.c.l.b16 %v2502
        %v2599 = vunpack.c.l.b16 %v2503
        %v2600 = vunpack.c.l.b16 %v2504
        %v2601 = vunpack.c.l.b16 %v2505
        %v2602 = vunpack.c.l.b16 %v2506
        %v2603 = vunpack.c.l.b16 %v2507
        %v2604 = vunpack.c.l.b16 %v2508
        %v2605 = vunpack.c.l.b16 %v2509
        %v2606 = vunpack.c.l.b16 %v2510
        %v2607 = vunpack.c.l.b16 %v2511
        %v2608 = vunpack.c.l.b16 %v2512
        %v2609 = vpack.c.b16 %v2562, %v2561
        %v2610 = vpack.c.b16 %v2564, %v2563
        %v2611 = vpack.c.b16 %v2566, %v2565
        %v2612 = vpack.c.b16 %v2568, %v2567
        %v2613 = vpack.c.b16 %v2570, %v2569
        %v2614 = vpack.c.b16 %v2572, %v2571
        %v2615 = vpack.c.b16 %v2574, %v2573
        %v2616 = vpack.c.b16 %v2576, %v2575
        %v2617 = vpack.c.b16 %v2578, %v2577
        %v2618 = vpack.c.b16 %v2580, %v2579
        %v2619 = vpack.c.b16 %v2582, %v2581
        %v2620 = vpack.c.b16 %v2584, %v2583
        %v2621 = vpack.c.b16 %v2586, %v2585
        %v2622 = vpack.c.b16 %v2588, %v2587
        %v2623 = vpack.c.b16 %v2590, %v2589
        %v2624 = vpack.c.b16 %v2592, %v2591
        %v2625 = vpack.c.b16 %v2594, %v2593
        %v2626 = vpack.c.b16 %v2596, %v2595
        %v2627 = vpack.c.b16 %v2598, %v2597
        %v2628 = vpack.c.b16 %v2600, %v2599
        %v2629 = vpack.c.b16 %v2602, %v2601
        %v2630 = vpack.c.b16 %v2604, %v2603
        %v2631 = vpack.c.b16 %v2606, %v2605
        %v2632 = vpack.c.b16 %v2608, %v2607
        %2657 = vmatprep.subr.bf16.mxu0 0
        %2658 = vmatpush1.bf16.msra.mxu0 %v2609
        %2659 = vmatprep.subr.bf16.mxu0 0
        %2660 = vmatpush1.bf16.msra.mxu0 %v2610
        %2661 = vmatprep.subr.bf16.mxu0 0
        %2662 = vmatpush1.bf16.msra.mxu0 %v2611
        %2663 = vmatprep.subr.bf16.mxu0 0
        %2664 = vmatpush1.bf16.msra.mxu0 %v2612
        %2665 = vmatprep.subr.bf16.mxu0 0
        %2666 = vmatpush1.bf16.msra.mxu0 %v2613
        %2667 = vmatprep.subr.bf16.mxu0 0
        %2668 = vmatpush1.bf16.msra.mxu0 %v2614
        %2669 = vmatprep.subr.bf16.mxu0 0
        %2670 = vmatpush1.bf16.msra.mxu0 %v2615
        %2671 = vmatprep.subr.bf16.mxu0 0
        %2672 = vmatpush1.bf16.msra.mxu0 %v2616
        %2673 = vmatprep.subr.bf16.mxu0 0
        %2674 = vmatpush1.bf16.msra.mxu0 %v2617
        %2675 = vmatprep.subr.bf16.mxu0 0
        %2676 = vmatpush1.bf16.msra.mxu0 %v2618
        %2677 = vmatprep.subr.bf16.mxu0 0
        %2678 = vmatpush1.bf16.msra.mxu0 %v2619
        %2679 = vmatprep.subr.bf16.mxu0 0
        %2680 = vmatpush1.bf16.msra.mxu0 %v2620
        %2681 = vmatprep.subr.bf16.mxu0 0
        %2682 = vmatpush1.bf16.msra.mxu0 %v2621
        %2683 = vmatprep.subr.bf16.mxu0 0
        %2684 = vmatpush1.bf16.msra.mxu0 %v2622
        %2685 = vmatprep.subr.bf16.mxu0 0
        %2686 = vmatpush1.bf16.msra.mxu0 %v2623
        %2687 = vmatprep.subr.bf16.mxu0 0
        %2688 = vmatpush1.bf16.msra.mxu0 %v2624
        %2689 = vmatprep.mubr.bf16.mxu0 %v2441
        %2690 = vmatmul.mubr.bf16.gmra.mrb[0].mxu0 %v2440
        %v2691 = vpop.f32.mrb[0].mxu0
        %v2692 = vadd.f32 0.0, %v2691
        %v2693 = vpop.f32.mrb[0].mxu0
        %v2694 = vpop.f32.mrb[0].mxu0
        %v2695 = vadd.f32 0.0, %v2694
        %v2696 = vpop.f32.mrb[0].mxu0
        %2697 = vmatprep.mubr.bf16.mxu0 %v2444
        %2698 = vmatmul.mubr.bf16.gmra.mrb[0].mxu0 %v2443
        %v2699 = vpop.f32.mrb[0].mxu0
        %v2700 = vadd.f32 0.0, %v2699
        %v2701 = vpop.f32.mrb[0].mxu0
        %v2702 = vpop.f32.mrb[0].mxu0
        %v2703 = vadd.f32 0.0, %v2702
        %v2704 = vpop.f32.mrb[0].mxu0
        %2705 = vmatprep.mubr.bf16.mxu0 %v2447
        %2706 = vmatmul.mubr.bf16.gmra.mrb[0].mxu0 %v2446
        %v2707 = vpop.f32.mrb[0].mxu0
        %v2708 = vadd.f32 0.0, %v2707
        %v2709 = vpop.f32.mrb[0].mxu0
        %v2710 = vpop.f32.mrb[0].mxu0
        %v2711 = vadd.f32 0.0, %v2710
        %v2712 = vpop.f32.mrb[0].mxu0
        %2713 = vmatprep.mubr.bf16.mxu0 %v2450
        %2714 = vmatmul.mubr.bf16.gmra.mrb[0].mxu0 %v2449
        %v2715 = vpop.f32.mrb[0].mxu0
        %v2716 = vadd.f32 0.0, %v2715
        %v2717 = vpop.f32.mrb[0].mxu0
        %v2718 = vpop.f32.mrb[0].mxu0
        %v2719 = vadd.f32 0.0, %v2718
        %v2720 = vpop.f32.mrb[0].mxu0
        %2721 = vmatprep.mubr.bf16.mxu0 %v2453
        %2722 = vmatmul.mubr.bf16.gmra.mrb[0].mxu0 %v2452
        %v2723 = vpop.f32.mrb[0].mxu0
        %v2724 = vadd.f32 0.0, %v2723
        %v2725 = vpop.f32.mrb[0].mxu0
        %v2726 = vpop.f32.mrb[0].mxu0
        %v2727 = vadd.f32 0.0, %v2726
        %v2728 = vpop.f32.mrb[0].mxu0
        %2729 = vmatprep.mubr.bf16.mxu0 %v2456
        %2730 = vmatmul.mubr.bf16.gmra.mrb[0].mxu0 %v2455
        %v2731 = vpop.f32.mrb[0].mxu0
        %v2732 = vadd.f32 0.0, %v2731
        %v2733 = vpop.f32.mrb[0].mxu0
        %v2734 = vpop.f32.mrb[0].mxu0
        %v2735 = vadd.f32 0.0, %v2734
        %v2736 = vpop.f32.mrb[0].mxu0
        %2737 = vmatprep.mubr.bf16.mxu0 %v2459
        %2738 = vmatmul.mubr.bf16.gmra.mrb[0].mxu0 %v2458
        %v2739 = vpop.f32.mrb[0].mxu0
        %v2740 = vadd.f32 0.0, %v2739
        %v2741 = vpop.f32.mrb[0].mxu0
        %v2742 = vpop.f32.mrb[0].mxu0
        %v2743 = vadd.f32 0.0, %v2742
        %v2744 = vpop.f32.mrb[0].mxu0
        %2745 = vmatprep.mubr.bf16.mxu0 %v2462
        %2746 = vmatmul.mubr.bf16.gmra.mrb[0].mxu0 %v2461
        %v2747 = vpop.f32.mrb[0].mxu0
        %v2748 = vadd.f32 0.0, %v2747
        %v2749 = vpop.f32.mrb[0].mxu0
        %v2750 = vpop.f32.mrb[0].mxu0
        %v2751 = vadd.f32 0.0, %v2750
        %v2752 = vpop.f32.mrb[0].mxu0
        %2753 = vdwg.mxu0
        %2754 = vmatprep.subr.bf16.mxu0 0
        %2755 = vmatpush1.bf16.msra.mxu0 %v2625
        %2756 = vmatprep.subr.bf16.mxu0 0
        %2757 = vmatpush1.bf16.msra.mxu0 %v2626
        %2758 = vmatprep.subr.bf16.mxu0 0
        %2759 = vmatpush1.bf16.msra.mxu0 %v2627
        %2760 = vmatprep.subr.bf16.mxu0 0
        %2761 = vmatpush1.bf16.msra.mxu0 %v2628
        %2762 = vmatprep.subr.bf16.mxu0 0
        %2763 = vmatpush1.bf16.msra.mxu0 %v2629
        %2764 = vmatprep.subr.bf16.mxu0 0
        %2765 = vmatpush1.bf16.msra.mxu0 %v2630
        %2766 = vmatprep.subr.bf16.mxu0 0
        %2767 = vmatpush1.bf16.msra.mxu0 %v2631
        %2768 = vmatprep.subr.bf16.mxu0 0
        %2769 = vmatpush1.bf16.msra.mxu0 %v2632
        %2770 = vmatprep.subr.bf16.mxu0 0
        %2771 = vmatpush1.bf16.msra.mxu0 0
        %2772 = vmatprep.subr.bf16.mxu0 0
        %2773 = vmatpush1.bf16.msra.mxu0 0
        %2774 = vmatprep.subr.bf16.mxu0 0
        %2775 = vmatpush1.bf16.msra.mxu0 0
        %2776 = vmatprep.subr.bf16.mxu0 0
        %2777 = vmatpush1.bf16.msra.mxu0 0
        %2778 = vmatprep.subr.bf16.mxu0 0
        %2779 = vmatpush1.bf16.msra.mxu0 0
        %2780 = vmatprep.subr.bf16.mxu0 0
        %2781 = vmatpush1.bf16.msra.mxu0 0
        %2782 = vmatprep.subr.bf16.mxu0 0
        %2783 = vmatpush1.bf16.msra.mxu0 0
        %2784 = vmatprep.subr.bf16.mxu0 0
        %2785 = vmatpush1.bf16.msra.mxu0 0
        %2786 = vmatprep.mubr.bf16.mxu0 0
        %2787 = vmatmul.mubr.bf16.gmra.mrb[0].mxu0 %v2442
        %v2788 = vpop.f32.mrb[0].mxu0
        %v2789 = vadd.f32 %v2692, %v2788
        %v2790 = vpop.f32.mrb[0].mxu0
        %v2791 = vpop.f32.mrb[0].mxu0
        %v2792 = vadd.f32 %v2695, %v2791
        %v2793 = vpop.f32.mrb[0].mxu0
        %2794 = vmatprep.mubr.bf16.mxu0 0
        %2795 = vmatmul.mubr.bf16.gmra.mrb[0].mxu0 %v2445
        %v2796 = vpop.f32.mrb[0].mxu0
        %v2797 = vadd.f32 %v2700, %v2796
        %v2798 = vpop.f32.mrb[0].mxu0
        %v2799 = vpop.f32.mrb[0].mxu0
        %v2800 = vadd.f32 %v2703, %v2799
        %v2801 = vpop.f32.mrb[0].mxu0
        %2802 = vmatprep.mubr.bf16.mxu0 0
        %2803 = vmatmul.mubr.bf16.gmra.mrb[0].mxu0 %v2448
        %v2804 = vpop.f32.mrb[0].mxu0
        %v2805 = vadd.f32 %v2708, %v2804
        %v2806 = vpop.f32.mrb[0].mxu0
        %v2807 = vpop.f32.mrb[0].mxu0
        %v2808 = vadd.f32 %v2711, %v2807
        %v2809 = vpop.f32.mrb[0].mxu0
        %2810 = vmatprep.mubr.bf16.mxu0 0
        %2811 = vmatmul.mubr.bf16.gmra.mrb[0].mxu0 %v2451
        %v2812 = vpop.f32.mrb[0].mxu0
        %v2813 = vadd.f32 %v2716, %v2812
        %v2814 = vpop.f32.mrb[0].mxu0
        %v2815 = vpop.f32.mrb[0].mxu0
        %v2816 = vadd.f32 %v2719, %v2815
        %v2817 = vpop.f32.mrb[0].mxu0
        %2818 = vmatprep.mubr.bf16.mxu0 0
        %2819 = vmatmul.mubr.bf16.gmra.mrb[0].mxu0 %v2454
        %v2820 = vpop.f32.mrb[0].mxu0
        %v2821 = vadd.f32 %v2724, %v2820
        %v2822 = vpop.f32.mrb[0].mxu0
        %v2823 = vpop.f32.mrb[0].mxu0
        %v2824 = vadd.f32 %v2727, %v2823
        %v2825 = vpop.f32.mrb[0].mxu0
        %2826 = vmatprep.mubr.bf16.mxu0 0
        %2827 = vmatmul.mubr.bf16.gmra.mrb[0].mxu0 %v2457
        %v2828 = vpop.f32.mrb[0].mxu0
        %v2829 = vadd.f32 %v2732, %v2828
        %v2830 = vpop.f32.mrb[0].mxu0
        %v2831 = vpop.f32.mrb[0].mxu0
        %v2832 = vadd.f32 %v2735, %v2831
        %v2833 = vpop.f32.mrb[0].mxu0
        %2834 = vmatprep.mubr.bf16.mxu0 0
        %2835 = vmatmul.mubr.bf16.gmra.mrb[0].mxu0 %v2460
        %v2836 = vpop.f32.mrb[0].mxu0
        %v2837 = vadd.f32 %v2740, %v2836
        %v2838 = vpop.f32.mrb[0].mxu0
        %v2839 = vpop.f32.mrb[0].mxu0
        %v2840 = vadd.f32 %v2743, %v2839
        %v2841 = vpop.f32.mrb[0].mxu0
        %2842 = vmatprep.mubr.bf16.mxu0 0
        %2843 = vmatmul.mubr.bf16.gmra.mrb[0].mxu0 %v2463
        %v2844 = vpop.f32.mrb[0].mxu0
        %v2845 = vadd.f32 %v2748, %v2844
        %v2846 = vpop.f32.mrb[0].mxu0
        %v2847 = vpop.f32.mrb[0].mxu0
        %v2848 = vadd.f32 %v2751, %v2847
        %v2849 = vpop.f32.mrb[0].mxu0
        %2850 = vdwg.mxu0
        %v2899 = vunpack.c.l.b16 %v2391
        %v2900 = vunpack.c.l.b16 %v2392
        %v2901 = vunpack.c.l.b16 %v2393
        %v2902 = vunpack.c.l.b16 %v2394
        %v2903 = vunpack.c.l.b16 %v2395
        %v2904 = vunpack.c.l.b16 %v2396
        %v2905 = vunpack.c.l.b16 %v2397
        %v2906 = vunpack.c.l.b16 %v2398
        %v2907 = vunpack.c.l.b16 %v2399
        %v2908 = vunpack.c.l.b16 %v2400
        %v2909 = vunpack.c.l.b16 %v2401
        %v2910 = vunpack.c.l.b16 %v2402
        %v2911 = vunpack.c.l.b16 %v2403
        %v2912 = vunpack.c.l.b16 %v2404
        %v2913 = vunpack.c.l.b16 %v2405
        %v2914 = vunpack.c.l.b16 %v2406
        %v2915 = vunpack.c.l.b16 %v2407
        %v2916 = vunpack.c.l.b16 %v2408
        %v2917 = vunpack.c.l.b16 %v2409
        %v2918 = vunpack.c.l.b16 %v2410
        %v2919 = vunpack.c.l.b16 %v2411
        %v2920 = vunpack.c.l.b16 %v2412
        %v2921 = vunpack.c.l.b16 %v2413
        %v2922 = vunpack.c.l.b16 %v2414
        %v2923 = vunpack.c.l.b16 %v2415
        %v2924 = vunpack.c.l.b16 %v2416
        %v2925 = vunpack.c.l.b16 %v2417
        %v2926 = vunpack.c.l.b16 %v2418
        %v2927 = vunpack.c.l.b16 %v2419
        %v2928 = vunpack.c.l.b16 %v2420
        %v2929 = vunpack.c.l.b16 %v2421
        %v2930 = vunpack.c.l.b16 %v2422
        %v2931 = vunpack.c.l.b16 %v2423
        %v2932 = vunpack.c.l.b16 %v2424
        %v2933 = vunpack.c.l.b16 %v2425
        %v2934 = vunpack.c.l.b16 %v2426
        %v2935 = vunpack.c.l.b16 %v2427
        %v2936 = vunpack.c.l.b16 %v2428
        %v2937 = vunpack.c.l.b16 %v2429
        %v2938 = vunpack.c.l.b16 %v2430
        %v2939 = vunpack.c.l.b16 %v2431
        %v2940 = vunpack.c.l.b16 %v2432
        %v2941 = vunpack.c.l.b16 %v2433
        %v2942 = vunpack.c.l.b16 %v2434
        %v2943 = vunpack.c.l.b16 %v2435
        %v2944 = vunpack.c.l.b16 %v2436
        %v2945 = vunpack.c.l.b16 %v2437
        %v2946 = vunpack.c.l.b16 %v2438
        %v2947 = vpack.c.b16 %v2900, %v2899
        %v2948 = vpack.c.b16 %v2902, %v2901
        %v2949 = vpack.c.b16 %v2904, %v2903
        %v2950 = vpack.c.b16 %v2906, %v2905
        %v2951 = vpack.c.b16 %v2908, %v2907
        %v2952 = vpack.c.b16 %v2910, %v2909
        %v2953 = vpack.c.b16 %v2912, %v2911
        %v2954 = vpack.c.b16 %v2914, %v2913
        %v2955 = vpack.c.b16 %v2916, %v2915
        %v2956 = vpack.c.b16 %v2918, %v2917
        %v2957 = vpack.c.b16 %v2920, %v2919
        %v2958 = vpack.c.b16 %v2922, %v2921
        %v2959 = vpack.c.b16 %v2924, %v2923
        %v2960 = vpack.c.b16 %v2926, %v2925
        %v2961 = vpack.c.b16 %v2928, %v2927
        %v2962 = vpack.c.b16 %v2930, %v2929
        %v2963 = vpack.c.b16 %v2932, %v2931
        %v2964 = vpack.c.b16 %v2934, %v2933
        %v2965 = vpack.c.b16 %v2936, %v2935
        %v2966 = vpack.c.b16 %v2938, %v2937
        %v2967 = vpack.c.b16 %v2940, %v2939
        %v2968 = vpack.c.b16 %v2942, %v2941
        %v2969 = vpack.c.b16 %v2944, %v2943
        %v2970 = vpack.c.b16 %v2946, %v2945
        %2995 = vmatprep.subr.bf16.mxu0 0
        %2996 = vmatpush1.bf16.msra.mxu0 %v2947
        %2997 = vmatprep.subr.bf16.mxu0 0
        %2998 = vmatpush1.bf16.msra.mxu0 %v2948
        %2999 = vmatprep.subr.bf16.mxu0 0
        %3000 = vmatpush1.bf16.msra.mxu0 %v2949
        %3001 = vmatprep.subr.bf16.mxu0 0
        %3002 = vmatpush1.bf16.msra.mxu0 %v2950
        %3003 = vmatprep.subr.bf16.mxu0 0
        %3004 = vmatpush1.bf16.msra.mxu0 %v2951
        %3005 = vmatprep.subr.bf16.mxu0 0
        %3006 = vmatpush1.bf16.msra.mxu0 %v2952
        %3007 = vmatprep.subr.bf16.mxu0 0
        %3008 = vmatpush1.bf16.msra.mxu0 %v2953
        %3009 = vmatprep.subr.bf16.mxu0 0
        %3010 = vmatpush1.bf16.msra.mxu0 %v2954
        %3011 = vmatprep.subr.bf16.mxu0 0
        %3012 = vmatpush1.bf16.msra.mxu0 %v2955
        %3013 = vmatprep.subr.bf16.mxu0 0
        %3014 = vmatpush1.bf16.msra.mxu0 %v2956
        %3015 = vmatprep.subr.bf16.mxu0 0
        %3016 = vmatpush1.bf16.msra.mxu0 %v2957
        %3017 = vmatprep.subr.bf16.mxu0 0
        %3018 = vmatpush1.bf16.msra.mxu0 %v2958
        %3019 = vmatprep.subr.bf16.mxu0 0
        %3020 = vmatpush1.bf16.msra.mxu0 %v2959
        %3021 = vmatprep.subr.bf16.mxu0 0
        %3022 = vmatpush1.bf16.msra.mxu0 %v2960
        %3023 = vmatprep.subr.bf16.mxu0 0
        %3024 = vmatpush1.bf16.msra.mxu0 %v2961
        %3025 = vmatprep.subr.bf16.mxu0 0
        %3026 = vmatpush1.bf16.msra.mxu0 %v2962
        %3027 = vmatprep.mubr.bf16.mxu0 %v2368
        %3028 = vmatmul.mubr.bf16.gmra.mrb[0].mxu0 %v2367
        %v3029 = vpop.f32.mrb[0].mxu0
        %v3030 = vadd.f32 %v2789, %v3029
        %v3031 = vpop.f32.mrb[0].mxu0
        %v3032 = vpop.f32.mrb[0].mxu0
        %v3033 = vadd.f32 %v2792, %v3032
        %v3034 = vpop.f32.mrb[0].mxu0
        %3035 = vmatprep.mubr.bf16.mxu0 %v2371
        %3036 = vmatmul.mubr.bf16.gmra.mrb[0].mxu0 %v2370
        %v3037 = vpop.f32.mrb[0].mxu0
        %v3038 = vadd.f32 %v2797, %v3037
        %v3039 = vpop.f32.mrb[0].mxu0
        %v3040 = vpop.f32.mrb[0].mxu0
        %v3041 = vadd.f32 %v2800, %v3040
        %v3042 = vpop.f32.mrb[0].mxu0
        %3043 = vmatprep.mubr.bf16.mxu0 %v2374
        %3044 = vmatmul.mubr.bf16.gmra.mrb[0].mxu0 %v2373
        %v3045 = vpop.f32.mrb[0].mxu0
        %v3046 = vadd.f32 %v2805, %v3045
        %v3047 = vpop.f32.mrb[0].mxu0
        %v3048 = vpop.f32.mrb[0].mxu0
        %v3049 = vadd.f32 %v2808, %v3048
        %v3050 = vpop.f32.mrb[0].mxu0
        %3051 = vmatprep.mubr.bf16.mxu0 %v2377
        %3052 = vmatmul.mubr.bf16.gmra.mrb[0].mxu0 %v2376
        %v3053 = vpop.f32.mrb[0].mxu0
        %v3054 = vadd.f32 %v2813, %v3053
        %v3055 = vpop.f32.mrb[0].mxu0
        %v3056 = vpop.f32.mrb[0].mxu0
        %v3057 = vadd.f32 %v2816, %v3056
        %v3058 = vpop.f32.mrb[0].mxu0
        %3059 = vmatprep.mubr.bf16.mxu0 %v2380
        %3060 = vmatmul.mubr.bf16.gmra.mrb[0].mxu0 %v2379
        %v3061 = vpop.f32.mrb[0].mxu0
        %v3062 = vadd.f32 %v2821, %v3061
        %v3063 = vpop.f32.mrb[0].mxu0
        %v3064 = vpop.f32.mrb[0].mxu0
        %v3065 = vadd.f32 %v2824, %v3064
        %v3066 = vpop.f32.mrb[0].mxu0
        %3067 = vmatprep.mubr.bf16.mxu0 %v2383
        %3068 = vmatmul.mubr.bf16.gmra.mrb[0].mxu0 %v2382
        %v3069 = vpop.f32.mrb[0].mxu0
        %v3070 = vadd.f32 %v2829, %v3069
        %v3071 = vpop.f32.mrb[0].mxu0
        %v3072 = vpop.f32.mrb[0].mxu0
        %v3073 = vadd.f32 %v2832, %v3072
        %v3074 = vpop.f32.mrb[0].mxu0
        %3075 = vmatprep.mubr.bf16.mxu0 %v2386
        %3076 = vmatmul.mubr.bf16.gmra.mrb[0].mxu0 %v2385
        %v3077 = vpop.f32.mrb[0].mxu0
        %v3078 = vadd.f32 %v2837, %v3077
        %v3079 = vpop.f32.mrb[0].mxu0
        %v3080 = vpop.f32.mrb[0].mxu0
        %v3081 = vadd.f32 %v2840, %v3080
        %v3082 = vpop.f32.mrb[0].mxu0
        %3083 = vmatprep.mubr.bf16.mxu0 %v2389
        %3084 = vmatmul.mubr.bf16.gmra.mrb[0].mxu0 %v2388
        %v3085 = vpop.f32.mrb[0].mxu0
        %v3086 = vadd.f32 %v2845, %v3085
        %v3087 = vpop.f32.mrb[0].mxu0
        %v3088 = vpop.f32.mrb[0].mxu0
        %v3089 = vadd.f32 %v2848, %v3088
        %v3090 = vpop.f32.mrb[0].mxu0
        %3091 = vdwg.mxu0
        %3092 = vmatprep.subr.bf16.mxu0 0
        %3093 = vmatpush1.bf16.msra.mxu0 %v2963
        %3094 = vmatprep.subr.bf16.mxu0 0
        %3095 = vmatpush1.bf16.msra.mxu0 %v2964
        %3096 = vmatprep.subr.bf16.mxu0 0
        %3097 = vmatpush1.bf16.msra.mxu0 %v2965
        %3098 = vmatprep.subr.bf16.mxu0 0
        %3099 = vmatpush1.bf16.msra.mxu0 %v2966
        %3100 = vmatprep.subr.bf16.mxu0 0
        %3101 = vmatpush1.bf16.msra.mxu0 %v2967
        %3102 = vmatprep.subr.bf16.mxu0 0
        %3103 = vmatpush1.bf16.msra.mxu0 %v2968
        %3104 = vmatprep.subr.bf16.mxu0 0
        %3105 = vmatpush1.bf16.msra.mxu0 %v2969
        %3106 = vmatprep.subr.bf16.mxu0 0
        %3107 = vmatpush1.bf16.msra.mxu0 %v2970
        %3108 = vmatprep.subr.bf16.mxu0 0
        %3109 = vmatpush1.bf16.msra.mxu0 0
        %3110 = vmatprep.subr.bf16.mxu0 0
        %3111 = vmatpush1.bf16.msra.mxu0 0
        %3112 = vmatprep.subr.bf16.mxu0 0
        %3113 = vmatpush1.bf16.msra.mxu0 0
        %3114 = vmatprep.subr.bf16.mxu0 0
        %3115 = vmatpush1.bf16.msra.mxu0 0
        %3116 = vmatprep.subr.bf16.mxu0 0
        %3117 = vmatpush1.bf16.msra.mxu0 0
        %3118 = vmatprep.subr.bf16.mxu0 0
        %3119 = vmatpush1.bf16.msra.mxu0 0
        %3120 = vmatprep.subr.bf16.mxu0 0
        %3121 = vmatpush1.bf16.msra.mxu0 0
        %3122 = vmatprep.subr.bf16.mxu0 0
        %3123 = vmatpush1.bf16.msra.mxu0 0
        %3124 = vmatprep.mubr.bf16.mxu0 0
        %3125 = vmatmul.mubr.bf16.gmra.mrb[0].mxu0 %v2369
        %v3126 = vpop.f32.mrb[0].mxu0
        %v3127 = vadd.f32 %v3030, %v3126
        %v3128 = vpop.f32.mrb[0].mxu0
        %v3129 = vpop.f32.mrb[0].mxu0
        %v3130 = vadd.f32 %v3033, %v3129
        %v3131 = vpop.f32.mrb[0].mxu0
        %3132 = vmatprep.mubr.bf16.mxu0 0
        %3133 = vmatmul.mubr.bf16.gmra.mrb[0].mxu0 %v2372
        %v3134 = vpop.f32.mrb[0].mxu0
        %v3135 = vadd.f32 %v3038, %v3134
        %v3136 = vpop.f32.mrb[0].mxu0
        %v3137 = vpop.f32.mrb[0].mxu0
        %v3138 = vadd.f32 %v3041, %v3137
        %v3139 = vpop.f32.mrb[0].mxu0
        %3140 = vmatprep.mubr.bf16.mxu0 0
        %3141 = vmatmul.mubr.bf16.gmra.mrb[0].mxu0 %v2375
        %v3142 = vpop.f32.mrb[0].mxu0
        %v3143 = vadd.f32 %v3046, %v3142
        %v3144 = vpop.f32.mrb[0].mxu0
        %v3145 = vpop.f32.mrb[0].mxu0
        %v3146 = vadd.f32 %v3049, %v3145
        %v3147 = vpop.f32.mrb[0].mxu0
        %3148 = vmatprep.mubr.bf16.mxu0 0
        %3149 = vmatmul.mubr.bf16.gmra.mrb[0].mxu0 %v2378
        %v3150 = vpop.f32.mrb[0].mxu0
        %v3151 = vadd.f32 %v3054, %v3150
        %v3152 = vpop.f32.mrb[0].mxu0
        %v3153 = vpop.f32.mrb[0].mxu0
        %v3154 = vadd.f32 %v3057, %v3153
        %v3155 = vpop.f32.mrb[0].mxu0
        %3156 = vmatprep.mubr.bf16.mxu0 0
        %3157 = vmatmul.mubr.bf16.gmra.mrb[0].mxu0 %v2381
        %v3158 = vpop.f32.mrb[0].mxu0
        %v3159 = vadd.f32 %v3062, %v3158
        %v3160 = vpop.f32.mrb[0].mxu0
        %v3161 = vpop.f32.mrb[0].mxu0
        %v3162 = vadd.f32 %v3065, %v3161
        %v3163 = vpop.f32.mrb[0].mxu0
        %3164 = vmatprep.mubr.bf16.mxu0 0
        %3165 = vmatmul.mubr.bf16.gmra.mrb[0].mxu0 %v2384
        %v3166 = vpop.f32.mrb[0].mxu0
        %v3167 = vadd.f32 %v3070, %v3166
        %v3168 = vpop.f32.mrb[0].mxu0
        %v3169 = vpop.f32.mrb[0].mxu0
        %v3170 = vadd.f32 %v3073, %v3169
        %v3171 = vpop.f32.mrb[0].mxu0
        %3172 = vmatprep.mubr.bf16.mxu0 0
        %3173 = vmatmul.mubr.bf16.gmra.mrb[0].mxu0 %v2387
        %v3174 = vpop.f32.mrb[0].mxu0
        %v3175 = vadd.f32 %v3078, %v3174
        %v3176 = vpop.f32.mrb[0].mxu0
        %v3177 = vpop.f32.mrb[0].mxu0
        %v3178 = vadd.f32 %v3081, %v3177
        %v3179 = vpop.f32.mrb[0].mxu0
        %3180 = vmatprep.mubr.bf16.mxu0 0
        %3181 = vmatmul.mubr.bf16.gmra.mrb[0].mxu0 %v2390
        %v3182 = vpop.f32.mrb[0].mxu0
        %v3183 = vadd.f32 %v3086, %v3182
        %v3184 = vpop.f32.mrb[0].mxu0
        %v3185 = vpop.f32.mrb[0].mxu0
        %v3186 = vadd.f32 %v3089, %v3185
        %v3187 = vpop.f32.mrb[0].mxu0
        %3188 = vdwg.mxu0
        %s3189 = scalar_lea.vmem [#allocation3], 48
        %v3190 = vld [vmem:[%s3189] sm:$0xff]
        %v3191 = vld [vmem:[%s3189 + $0x8] sm:$0xff]
        %v3192 = vld [vmem:[%s3189 + $0x10] sm:$0xff]
        %v3193 = vld [vmem:[%s3189 + $0x18] sm:$0xff]
        %v3194 = vld [vmem:[%s3189 + $0x20] sm:$0xff]
        %v3195 = vld [vmem:[%s3189 + $0x28] sm:$0xff]
        %v3196 = vld [vmem:[%s3189 + $0x30] sm:$0xff]
        %v3197 = vld [vmem:[%s3189 + $0x38] sm:$0xff]
        %v3198 = vld [vmem:[%s3189 + $0x40] sm:$0xff]
        %v3199 = vld [vmem:[%s3189 + $0x48] sm:$0xff]
        %v3200 = vld [vmem:[%s3189 + $0x50] sm:$0xff]
        %v3201 = vld [vmem:[%s3189 + $0x58] sm:$0xff]
        %v3202 = vld [vmem:[%s3189 + $0x60] sm:$0xff]
        %v3203 = vld [vmem:[%s3189 + $0x68] sm:$0xff]
        %v3204 = vld [vmem:[%s3189 + $0x70] sm:$0xff]
        %v3205 = vld [vmem:[%s3189 + $0x78] sm:$0xff]
        %v3206 = vld [vmem:[%s3189 + $0x80] sm:$0xff]
        %v3207 = vld [vmem:[%s3189 + $0x88] sm:$0xff]
        %v3208 = vld [vmem:[%s3189 + $0x90] sm:$0xff]
        %v3209 = vld [vmem:[%s3189 + $0x98] sm:$0xff]
        %v3210 = vld [vmem:[%s3189 + $0xa0] sm:$0xff]
        %v3211 = vld [vmem:[%s3189 + $0xa8] sm:$0xff]
        %v3212 = vld [vmem:[%s3189 + $0xb0] sm:$0xff]
        %v3213 = vld [vmem:[%s3189 + $0xb8] sm:$0xff]
        %s3214 = scalar_lea.vmem [#allocation9], 384
        %v3215 = vld [vmem:[%s3214] sm:$0xf]
        %v3216 = vld [vmem:[%s3214 + $0x4] sm:$0xf]
        %v3217 = vld [vmem:[%s3214 + $0x8] sm:$0xf]
        %v3218 = vld [vmem:[%s3214 + $0xc] sm:$0xf]
        %v3219 = vld [vmem:[%s3214 + $0x10] sm:$0xf]
        %v3220 = vld [vmem:[%s3214 + $0x14] sm:$0xf]
        %v3221 = vld [vmem:[%s3214 + $0x18] sm:$0xf]
        %v3222 = vld [vmem:[%s3214 + $0x1c] sm:$0xf]
        %v3223 = vld [vmem:[%s3214 + $0x20] sm:$0xf]
        %v3224 = vld [vmem:[%s3214 + $0x24] sm:$0xf]
        %v3225 = vld [vmem:[%s3214 + $0x28] sm:$0xf]
        %v3226 = vld [vmem:[%s3214 + $0x2c] sm:$0xf]
        %v3227 = vld [vmem:[%s3214 + $0x30] sm:$0xf]
        %v3228 = vld [vmem:[%s3214 + $0x34] sm:$0xf]
        %v3229 = vld [vmem:[%s3214 + $0x38] sm:$0xf]
        %v3230 = vld [vmem:[%s3214 + $0x3c] sm:$0xf]
        %v3231 = vld [vmem:[%s3214 + $0x40] sm:$0xf]
        %v3232 = vld [vmem:[%s3214 + $0x44] sm:$0xf]
        %v3233 = vld [vmem:[%s3214 + $0x48] sm:$0xf]
        %v3234 = vld [vmem:[%s3214 + $0x4c] sm:$0xf]
        %v3235 = vld [vmem:[%s3214 + $0x50] sm:$0xf]
        %v3236 = vld [vmem:[%s3214 + $0x54] sm:$0xf]
        %v3237 = vld [vmem:[%s3214 + $0x58] sm:$0xf]
        %v3238 = vld [vmem:[%s3214 + $0x5c] sm:$0xf]
        %v3239 = vld [vmem:[%s3214 + $0x60] sm:$0xf]
        %v3240 = vld [vmem:[%s3214 + $0x64] sm:$0xf]
        %v3241 = vld [vmem:[%s3214 + $0x68] sm:$0xf]
        %v3242 = vld [vmem:[%s3214 + $0x6c] sm:$0xf]
        %v3243 = vld [vmem:[%s3214 + $0x70] sm:$0xf]
        %v3244 = vld [vmem:[%s3214 + $0x74] sm:$0xf]
        %v3245 = vld [vmem:[%s3214 + $0x78] sm:$0xf]
        %v3246 = vld [vmem:[%s3214 + $0x7c] sm:$0xf]
        %v3247 = vld [vmem:[%s3214 + $0x80] sm:$0xf]
        %v3248 = vld [vmem:[%s3214 + $0x84] sm:$0xf]
        %v3249 = vld [vmem:[%s3214 + $0x88] sm:$0xf]
        %v3250 = vld [vmem:[%s3214 + $0x8c] sm:$0xf]
        %v3251 = vld [vmem:[%s3214 + $0x90] sm:$0xf]
        %v3252 = vld [vmem:[%s3214 + $0x94] sm:$0xf]
        %v3253 = vld [vmem:[%s3214 + $0x98] sm:$0xf]
        %v3254 = vld [vmem:[%s3214 + $0x9c] sm:$0xf]
        %v3255 = vld [vmem:[%s3214 + $0xa0] sm:$0xf]
        %v3256 = vld [vmem:[%s3214 + $0xa4] sm:$0xf]
        %v3257 = vld [vmem:[%s3214 + $0xa8] sm:$0xf]
        %v3258 = vld [vmem:[%s3214 + $0xac] sm:$0xf]
        %v3259 = vld [vmem:[%s3214 + $0xb0] sm:$0xf]
        %v3260 = vld [vmem:[%s3214 + $0xb4] sm:$0xf]
        %v3261 = vld [vmem:[%s3214 + $0xb8] sm:$0xf]
        %v3262 = vld [vmem:[%s3214 + $0xbc] sm:$0xf]
        %v3311 = vunpack.c.l.b16 %v3215
        %v3312 = vunpack.c.l.b16 %v3216
        %v3313 = vunpack.c.l.b16 %v3217
        %v3314 = vunpack.c.l.b16 %v3218
        %v3315 = vunpack.c.l.b16 %v3219
        %v3316 = vunpack.c.l.b16 %v3220
        %v3317 = vunpack.c.l.b16 %v3221
        %v3318 = vunpack.c.l.b16 %v3222
        %v3319 = vunpack.c.l.b16 %v3223
        %v3320 = vunpack.c.l.b16 %v3224
        %v3321 = vunpack.c.l.b16 %v3225
        %v3322 = vunpack.c.l.b16 %v3226
        %v3323 = vunpack.c.l.b16 %v3227
        %v3324 = vunpack.c.l.b16 %v3228
        %v3325 = vunpack.c.l.b16 %v3229
        %v3326 = vunpack.c.l.b16 %v3230
        %v3327 = vunpack.c.l.b16 %v3231
        %v3328 = vunpack.c.l.b16 %v3232
        %v3329 = vunpack.c.l.b16 %v3233
        %v3330 = vunpack.c.l.b16 %v3234
        %v3331 = vunpack.c.l.b16 %v3235
        %v3332 = vunpack.c.l.b16 %v3236
        %v3333 = vunpack.c.l.b16 %v3237
        %v3334 = vunpack.c.l.b16 %v3238
        %v3335 = vunpack.c.l.b16 %v3239
        %v3336 = vunpack.c.l.b16 %v3240
        %v3337 = vunpack.c.l.b16 %v3241
        %v3338 = vunpack.c.l.b16 %v3242
        %v3339 = vunpack.c.l.b16 %v3243
        %v3340 = vunpack.c.l.b16 %v3244
        %v3341 = vunpack.c.l.b16 %v3245
        %v3342 = vunpack.c.l.b16 %v3246
        %v3343 = vunpack.c.l.b16 %v3247
        %v3344 = vunpack.c.l.b16 %v3248
        %v3345 = vunpack.c.l.b16 %v3249
        %v3346 = vunpack.c.l.b16 %v3250
        %v3347 = vunpack.c.l.b16 %v3251
        %v3348 = vunpack.c.l.b16 %v3252
        %v3349 = vunpack.c.l.b16 %v3253
        %v3350 = vunpack.c.l.b16 %v3254
        %v3351 = vunpack.c.l.b16 %v3255
        %v3352 = vunpack.c.l.b16 %v3256
        %v3353 = vunpack.c.l.b16 %v3257
        %v3354 = vunpack.c.l.b16 %v3258
        %v3355 = vunpack.c.l.b16 %v3259
        %v3356 = vunpack.c.l.b16 %v3260
        %v3357 = vunpack.c.l.b16 %v3261
        %v3358 = vunpack.c.l.b16 %v3262
        %v3359 = vpack.c.b16 %v3312, %v3311
        %v3360 = vpack.c.b16 %v3314, %v3313
        %v3361 = vpack.c.b16 %v3316, %v3315
        %v3362 = vpack.c.b16 %v3318, %v3317
        %v3363 = vpack.c.b16 %v3320, %v3319
        %v3364 = vpack.c.b16 %v3322, %v3321
        %v3365 = vpack.c.b16 %v3324, %v3323
        %v3366 = vpack.c.b16 %v3326, %v3325
        %v3367 = vpack.c.b16 %v3328, %v3327
        %v3368 = vpack.c.b16 %v3330, %v3329
        %v3369 = vpack.c.b16 %v3332, %v3331
        %v3370 = vpack.c.b16 %v3334, %v3333
        %v3371 = vpack.c.b16 %v3336, %v3335
        %v3372 = vpack.c.b16 %v3338, %v3337
        %v3373 = vpack.c.b16 %v3340, %v3339
        %v3374 = vpack.c.b16 %v3342, %v3341
        %v3375 = vpack.c.b16 %v3344, %v3343
        %v3376 = vpack.c.b16 %v3346, %v3345
        %v3377 = vpack.c.b16 %v3348, %v3347
        %v3378 = vpack.c.b16 %v3350, %v3349
        %v3379 = vpack.c.b16 %v3352, %v3351
        %v3380 = vpack.c.b16 %v3354, %v3353
        %v3381 = vpack.c.b16 %v3356, %v3355
        %v3382 = vpack.c.b16 %v3358, %v3357
        %3407 = vmatprep.subr.bf16.mxu0 0
        %3408 = vmatpush1.bf16.msra.mxu0 %v3359
        %3409 = vmatprep.subr.bf16.mxu0 0
        %3410 = vmatpush1.bf16.msra.mxu0 %v3360
        %3411 = vmatprep.subr.bf16.mxu0 0
        %3412 = vmatpush1.bf16.msra.mxu0 %v3361
        %3413 = vmatprep.subr.bf16.mxu0 0
        %3414 = vmatpush1.bf16.msra.mxu0 %v3362
        %3415 = vmatprep.subr.bf16.mxu0 0
        %3416 = vmatpush1.bf16.msra.mxu0 %v3363
        %3417 = vmatprep.subr.bf16.mxu0 0
        %3418 = vmatpush1.bf16.msra.mxu0 %v3364
        %3419 = vmatprep.subr.bf16.mxu0 0
        %3420 = vmatpush1.bf16.msra.mxu0 %v3365
        %3421 = vmatprep.subr.bf16.mxu0 0
        %3422 = vmatpush1.bf16.msra.mxu0 %v3366
        %3423 = vmatprep.subr.bf16.mxu0 0
        %3424 = vmatpush1.bf16.msra.mxu0 %v3367
        %3425 = vmatprep.subr.bf16.mxu0 0
        %3426 = vmatpush1.bf16.msra.mxu0 %v3368
        %3427 = vmatprep.subr.bf16.mxu0 0
        %3428 = vmatpush1.bf16.msra.mxu0 %v3369
        %3429 = vmatprep.subr.bf16.mxu0 0
        %3430 = vmatpush1.bf16.msra.mxu0 %v3370
        %3431 = vmatprep.subr.bf16.mxu0 0
        %3432 = vmatpush1.bf16.msra.mxu0 %v3371
        %3433 = vmatprep.subr.bf16.mxu0 0
        %3434 = vmatpush1.bf16.msra.mxu0 %v3372
        %3435 = vmatprep.subr.bf16.mxu0 0
        %3436 = vmatpush1.bf16.msra.mxu0 %v3373
        %3437 = vmatprep.subr.bf16.mxu0 0
        %3438 = vmatpush1.bf16.msra.mxu0 %v3374
        %3439 = vmatprep.mubr.bf16.mxu0 %v3191
        %3440 = vmatmul.mubr.bf16.gmra.mrb[0].mxu0 %v3190
        %v3441 = vpop.f32.mrb[0].mxu0
        %v3442 = vadd.f32 0.0, %v3441
        %v3443 = vpop.f32.mrb[0].mxu0
        %v3444 = vpop.f32.mrb[0].mxu0
        %v3445 = vadd.f32 0.0, %v3444
        %v3446 = vpop.f32.mrb[0].mxu0
        %3447 = vmatprep.mubr.bf16.mxu0 %v3194
        %3448 = vmatmul.mubr.bf16.gmra.mrb[0].mxu0 %v3193
        %v3449 = vpop.f32.mrb[0].mxu0
        %v3450 = vadd.f32 0.0, %v3449
        %v3451 = vpop.f32.mrb[0].mxu0
        %v3452 = vpop.f32.mrb[0].mxu0
        %v3453 = vadd.f32 0.0, %v3452
        %v3454 = vpop.f32.mrb[0].mxu0
        %3455 = vmatprep.mubr.bf16.mxu0 %v3197
        %3456 = vmatmul.mubr.bf16.gmra.mrb[0].mxu0 %v3196
        %v3457 = vpop.f32.mrb[0].mxu0
        %v3458 = vadd.f32 0.0, %v3457
        %v3459 = vpop.f32.mrb[0].mxu0
        %v3460 = vpop.f32.mrb[0].mxu0
        %v3461 = vadd.f32 0.0, %v3460
        %v3462 = vpop.f32.mrb[0].mxu0
        %3463 = vmatprep.mubr.bf16.mxu0 %v3200
        %3464 = vmatmul.mubr.bf16.gmra.mrb[0].mxu0 %v3199
        %v3465 = vpop.f32.mrb[0].mxu0
        %v3466 = vadd.f32 0.0, %v3465
        %v3467 = vpop.f32.mrb[0].mxu0
        %v3468 = vpop.f32.mrb[0].mxu0
        %v3469 = vadd.f32 0.0, %v3468
        %v3470 = vpop.f32.mrb[0].mxu0
        %3471 = vmatprep.mubr.bf16.mxu0 %v3203
        %3472 = vmatmul.mubr.bf16.gmra.mrb[0].mxu0 %v3202
        %v3473 = vpop.f32.mrb[0].mxu0
        %v3474 = vadd.f32 0.0, %v3473
        %v3475 = vpop.f32.mrb[0].mxu0
        %v3476 = vpop.f32.mrb[0].mxu0
        %v3477 = vadd.f32 0.0, %v3476
        %v3478 = vpop.f32.mrb[0].mxu0
        %3479 = vmatprep.mubr.bf16.mxu0 %v3206
        %3480 = vmatmul.mubr.bf16.gmra.mrb[0].mxu0 %v3205
        %v3481 = vpop.f32.mrb[0].mxu0
        %v3482 = vadd.f32 0.0, %v3481
        %v3483 = vpop.f32.mrb[0].mxu0
        %v3484 = vpop.f32.mrb[0].mxu0
        %v3485 = vadd.f32 0.0, %v3484
        %v3486 = vpop.f32.mrb[0].mxu0
        %3487 = vmatprep.mubr.bf16.mxu0 %v3209
        %3488 = vmatmul.mubr.bf16.gmra.mrb[0].mxu0 %v3208
        %v3489 = vpop.f32.mrb[0].mxu0
        %v3490 = vadd.f32 0.0, %v3489
        %v3491 = vpop.f32.mrb[0].mxu0
        %v3492 = vpop.f32.mrb[0].mxu0
        %v3493 = vadd.f32 0.0, %v3492
        %v3494 = vpop.f32.mrb[0].mxu0
        %3495 = vmatprep.mubr.bf16.mxu0 %v3212
        %3496 = vmatmul.mubr.bf16.gmra.mrb[0].mxu0 %v3211
        %v3497 = vpop.f32.mrb[0].mxu0
        %v3498 = vadd.f32 0.0, %v3497
        %v3499 = vpop.f32.mrb[0].mxu0
        %v3500 = vpop.f32.mrb[0].mxu0
        %v3501 = vadd.f32 0.0, %v3500
        %v3502 = vpop.f32.mrb[0].mxu0
        %3503 = vdwg.mxu0
        %3504 = vmatprep.subr.bf16.mxu0 0
        %3505 = vmatpush1.bf16.msra.mxu0 %v3375
        %3506 = vmatprep.subr.bf16.mxu0 0
        %3507 = vmatpush1.bf16.msra.mxu0 %v3376
        %3508 = vmatprep.subr.bf16.mxu0 0
        %3509 = vmatpush1.bf16.msra.mxu0 %v3377
        %3510 = vmatprep.subr.bf16.mxu0 0
        %3511 = vmatpush1.bf16.msra.mxu0 %v3378
        %3512 = vmatprep.subr.bf16.mxu0 0
        %3513 = vmatpush1.bf16.msra.mxu0 %v3379
        %3514 = vmatprep.subr.bf16.mxu0 0
        %3515 = vmatpush1.bf16.msra.mxu0 %v3380
        %3516 = vmatprep.subr.bf16.mxu0 0
        %3517 = vmatpush1.bf16.msra.mxu0 %v3381
        %3518 = vmatprep.subr.bf16.mxu0 0
        %3519 = vmatpush1.bf16.msra.mxu0 %v3382
        %3520 = vmatprep.subr.bf16.mxu0 0
        %3521 = vmatpush1.bf16.msra.mxu0 0
        %3522 = vmatprep.subr.bf16.mxu0 0
        %3523 = vmatpush1.bf16.msra.mxu0 0
        %3524 = vmatprep.subr.bf16.mxu0 0
        %3525 = vmatpush1.bf16.msra.mxu0 0
        %3526 = vmatprep.subr.bf16.mxu0 0
        %3527 = vmatpush1.bf16.msra.mxu0 0
        %3528 = vmatprep.subr.bf16.mxu0 0
        %3529 = vmatpush1.bf16.msra.mxu0 0
        %3530 = vmatprep.subr.bf16.mxu0 0
        %3531 = vmatpush1.bf16.msra.mxu0 0
        %3532 = vmatprep.subr.bf16.mxu0 0
        %3533 = vmatpush1.bf16.msra.mxu0 0
        %3534 = vmatprep.subr.bf16.mxu0 0
        %3535 = vmatpush1.bf16.msra.mxu0 0
        %3536 = vmatprep.mubr.bf16.mxu0 0
        %3537 = vmatmul.mubr.bf16.gmra.mrb[0].mxu0 %v3192
        %v3538 = vpop.f32.mrb[0].mxu0
        %v3539 = vadd.f32 %v3442, %v3538
        %v3540 = vpop.f32.mrb[0].mxu0
        %v3541 = vpop.f32.mrb[0].mxu0
        %v3542 = vadd.f32 %v3445, %v3541
        %v3543 = vpop.f32.mrb[0].mxu0
        %3544 = vmatprep.mubr.bf16.mxu0 0
        %3545 = vmatmul.mubr.bf16.gmra.mrb[0].mxu0 %v3195
        %v3546 = vpop.f32.mrb[0].mxu0
        %v3547 = vadd.f32 %v3450, %v3546
        %v3548 = vpop.f32.mrb[0].mxu0
        %v3549 = vpop.f32.mrb[0].mxu0
        %v3550 = vadd.f32 %v3453, %v3549
        %v3551 = vpop.f32.mrb[0].mxu0
        %3552 = vmatprep.mubr.bf16.mxu0 0
        %3553 = vmatmul.mubr.bf16.gmra.mrb[0].mxu0 %v3198
        %v3554 = vpop.f32.mrb[0].mxu0
        %v3555 = vadd.f32 %v3458, %v3554
        %v3556 = vpop.f32.mrb[0].mxu0
        %v3557 = vpop.f32.mrb[0].mxu0
        %v3558 = vadd.f32 %v3461, %v3557
        %v3559 = vpop.f32.mrb[0].mxu0
        %3560 = vmatprep.mubr.bf16.mxu0 0
        %3561 = vmatmul.mubr.bf16.gmra.mrb[0].mxu0 %v3201
        %v3562 = vpop.f32.mrb[0].mxu0
        %v3563 = vadd.f32 %v3466, %v3562
        %v3564 = vpop.f32.mrb[0].mxu0
        %v3565 = vpop.f32.mrb[0].mxu0
        %v3566 = vadd.f32 %v3469, %v3565
        %v3567 = vpop.f32.mrb[0].mxu0
        %3568 = vmatprep.mubr.bf16.mxu0 0
        %3569 = vmatmul.mubr.bf16.gmra.mrb[0].mxu0 %v3204
        %v3570 = vpop.f32.mrb[0].mxu0
        %v3571 = vadd.f32 %v3474, %v3570
        %v3572 = vpop.f32.mrb[0].mxu0
        %v3573 = vpop.f32.mrb[0].mxu0
        %v3574 = vadd.f32 %v3477, %v3573
        %v3575 = vpop.f32.mrb[0].mxu0
        %3576 = vmatprep.mubr.bf16.mxu0 0
        %3577 = vmatmul.mubr.bf16.gmra.mrb[0].mxu0 %v3207
        %v3578 = vpop.f32.mrb[0].mxu0
        %v3579 = vadd.f32 %v3482, %v3578
        %v3580 = vpop.f32.mrb[0].mxu0
        %v3581 = vpop.f32.mrb[0].mxu0
        %v3582 = vadd.f32 %v3485, %v3581
        %v3583 = vpop.f32.mrb[0].mxu0
        %3584 = vmatprep.mubr.bf16.mxu0 0
        %3585 = vmatmul.mubr.bf16.gmra.mrb[0].mxu0 %v3210
        %v3586 = vpop.f32.mrb[0].mxu0
        %v3587 = vadd.f32 %v3490, %v3586
        %v3588 = vpop.f32.mrb[0].mxu0
        %v3589 = vpop.f32.mrb[0].mxu0
        %v3590 = vadd.f32 %v3493, %v3589
        %v3591 = vpop.f32.mrb[0].mxu0
        %3592 = vmatprep.mubr.bf16.mxu0 0
        %3593 = vmatmul.mubr.bf16.gmra.mrb[0].mxu0 %v3213
        %v3594 = vpop.f32.mrb[0].mxu0
        %v3595 = vadd.f32 %v3498, %v3594
        %v3596 = vpop.f32.mrb[0].mxu0
        %v3597 = vpop.f32.mrb[0].mxu0
        %v3598 = vadd.f32 %v3501, %v3597
        %v3599 = vpop.f32.mrb[0].mxu0
        %3600 = vdwg.mxu0
        %v3601 = vadd.f32 %v3127, %v3539
        %v3602 = vadd.f32 %v3130, %v3542
        %v3603 = vadd.f32 %v3135, %v3547
        %v3604 = vadd.f32 %v3138, %v3550
        %v3605 = vadd.f32 %v3143, %v3555
        %v3606 = vadd.f32 %v3146, %v3558
        %v3607 = vadd.f32 %v3151, %v3563
        %v3608 = vadd.f32 %v3154, %v3566
        %v3609 = vadd.f32 %v3159, %v3571
        %v3610 = vadd.f32 %v3162, %v3574
        %v3611 = vadd.f32 %v3167, %v3579
        %v3612 = vadd.f32 %v3170, %v3582
        %v3613 = vadd.f32 %v3175, %v3587
        %v3614 = vadd.f32 %v3178, %v3590
        %v3615 = vadd.f32 %v3183, %v3595
        %v3616 = vadd.f32 %v3186, %v3598
        %v3617 = vunpack.c.l.bf16 %v296
        %v3618 = vunpack.c.l.bf16 %v297
        %v3619 = vunpack.c.l.bf16 %v298
        %v3620 = vunpack.c.l.bf16 %v299
        %v3621 = vunpack.c.l.bf16 %v300
        %v3622 = vunpack.c.l.bf16 %v301
        %v3623 = vunpack.c.l.bf16 %v302
        %v3624 = vunpack.c.l.bf16 %v303
        %v3625 = vunpack.c.l.bf16 %v304
        %v3626 = vunpack.c.l.bf16 %v305
        %v3627 = vunpack.c.l.bf16 %v306
        %v3628 = vunpack.c.l.bf16 %v307
        %v3629 = vunpack.c.l.bf16 %v308
        %v3630 = vunpack.c.l.bf16 %v309
        %v3631 = vunpack.c.l.bf16 %v310
        %v3632 = vunpack.c.l.bf16 %v311
        %v3633 = vld [vmem:[%s4] sm:$0x1]
        %v3635 = vlaneseq
        %v3636 = vshrl.u32 %v3635, 7
        %v3637 = vsub.s32 0, %v3636
        %v3638 = vrot.slane %v3633, %v3637
        %v3640 = vadd.f32 %v3601, %v3638
        %v3641 = vadd.f32 %v3602, %v3638
        %v3642 = vadd.f32 %v3603, %v3638
        %v3643 = vadd.f32 %v3604, %v3638
        %v3644 = vadd.f32 %v3605, %v3638
        %v3645 = vadd.f32 %v3606, %v3638
        %v3646 = vadd.f32 %v3607, %v3638
        %v3647 = vadd.f32 %v3608, %v3638
        %v3648 = vadd.f32 %v3609, %v3638
        %v3649 = vadd.f32 %v3610, %v3638
        %v3650 = vadd.f32 %v3611, %v3638
        %v3651 = vadd.f32 %v3612, %v3638
        %v3652 = vadd.f32 %v3613, %v3638
        %v3653 = vadd.f32 %v3614, %v3638
        %v3654 = vadd.f32 %v3615, %v3638
        %v3655 = vadd.f32 %v3616, %v3638
        %v3656 = vadd.f32 %v3640, %v3617
        %v3657 = vadd.f32 %v3641, %v3618
        %v3658 = vadd.f32 %v3642, %v3619
        %v3659 = vadd.f32 %v3643, %v3620
        %v3660 = vadd.f32 %v3644, %v3621
        %v3661 = vadd.f32 %v3645, %v3622
        %v3662 = vadd.f32 %v3646, %v3623
        %v3663 = vadd.f32 %v3647, %v3624
        %v3664 = vadd.f32 %v3648, %v3625
        %v3665 = vadd.f32 %v3649, %v3626
        %v3666 = vadd.f32 %v3650, %v3627
        %v3667 = vadd.f32 %v3651, %v3628
        %v3668 = vadd.f32 %v3652, %v3629
        %v3669 = vadd.f32 %v3653, %v3630
        %v3670 = vadd.f32 %v3654, %v3631
        %v3671 = vadd.f32 %v3655, %v3632
        %v3672 = vmax.f32 %v3656, 0.0
        %v3673 = vmax.f32 %v3657, 0.0
        %v3674 = vmax.f32 %v3658, 0.0
        %v3675 = vmax.f32 %v3659, 0.0
        %v3676 = vmax.f32 %v3660, 0.0
        %v3677 = vmax.f32 %v3661, 0.0
        %v3678 = vmax.f32 %v3662, 0.0
        %v3679 = vmax.f32 %v3663, 0.0
        %v3680 = vmax.f32 %v3664, 0.0
        %v3681 = vmax.f32 %v3665, 0.0
        %v3682 = vmax.f32 %v3666, 0.0
        %v3683 = vmax.f32 %v3667, 0.0
        %v3684 = vmax.f32 %v3668, 0.0
        %v3685 = vmax.f32 %v3669, 0.0
        %v3686 = vmax.f32 %v3670, 0.0
        %v3687 = vmax.f32 %v3671, 0.0
        %v3688 = vpack.c.bf16 %v3673, %v3672
        %v3689 = vpack.c.bf16 %v3675, %v3674
        %v3690 = vpack.c.bf16 %v3677, %v3676
        %v3691 = vpack.c.bf16 %v3679, %v3678
        %v3692 = vpack.c.bf16 %v3681, %v3680
        %v3693 = vpack.c.bf16 %v3683, %v3682
        %v3694 = vpack.c.bf16 %v3685, %v3684
        %v3695 = vpack.c.bf16 %v3687, %v3686
        %v3704 = vunpack.c.l.b16 %v3688
        %v3705 = vunpack.c.h.b16 %v3688
        %v3706 = vunpack.c.l.b16 %v3689
        %v3707 = vunpack.c.h.b16 %v3689
        %v3708 = vunpack.c.l.b16 %v3690
        %v3709 = vunpack.c.h.b16 %v3690
        %v3710 = vunpack.c.l.b16 %v3691
        %v3711 = vunpack.c.h.b16 %v3691
        %v3712 = vunpack.c.l.b16 %v3692
        %v3713 = vunpack.c.h.b16 %v3692
        %v3714 = vunpack.c.l.b16 %v3693
        %v3715 = vunpack.c.h.b16 %v3693
        %v3716 = vunpack.c.l.b16 %v3694
        %v3717 = vunpack.c.h.b16 %v3694
        %v3718 = vunpack.c.l.b16 %v3695
        %v3719 = vunpack.c.h.b16 %v3695
        %v3720 = vpack.c.b16 %v3704, %v3704
        %v3721 = vpack.c.b16 %v3705, %v3705
        %v3722 = vpack.c.b16 %v3706, %v3706
        %v3723 = vpack.c.b16 %v3707, %v3707
        %v3724 = vpack.c.b16 %v3708, %v3708
        %v3725 = vpack.c.b16 %v3709, %v3709
        %v3726 = vpack.c.b16 %v3710, %v3710
        %v3727 = vpack.c.b16 %v3711, %v3711
        %v3728 = vpack.c.b16 %v3712, %v3712
        %v3729 = vpack.c.b16 %v3713, %v3713
        %v3730 = vpack.c.b16 %v3714, %v3714
        %v3731 = vpack.c.b16 %v3715, %v3715
        %v3732 = vpack.c.b16 %v3716, %v3716
        %v3733 = vpack.c.b16 %v3717, %v3717
        %v3734 = vpack.c.b16 %v3718, %v3718
        %v3735 = vpack.c.b16 %v3719, %v3719
        %3752 = vst [vmem:[%s285] sm:$0xf] %v3720
        %3753 = vst [vmem:[%s285 + $0x4] sm:$0xf] %v3721
        %3754 = vst [vmem:[%s285 + $0x8] sm:$0xf] %v3722
        %3755 = vst [vmem:[%s285 + $0xc] sm:$0xf] %v3723
        %3756 = vst [vmem:[%s285 + $0x10] sm:$0xf] %v3724
        %3757 = vst [vmem:[%s285 + $0x14] sm:$0xf] %v3725
        %3758 = vst [vmem:[%s285 + $0x18] sm:$0xf] %v3726
        %3759 = vst [vmem:[%s285 + $0x1c] sm:$0xf] %v3727
        %3760 = vst [vmem:[%s285 + $0x20] sm:$0xf] %v3728
        %3761 = vst [vmem:[%s285 + $0x24] sm:$0xf] %v3729
        %3762 = vst [vmem:[%s285 + $0x28] sm:$0xf] %v3730
        %3763 = vst [vmem:[%s285 + $0x2c] sm:$0xf] %v3731
        %3764 = vst [vmem:[%s285 + $0x30] sm:$0xf] %v3732
        %3765 = vst [vmem:[%s285 + $0x34] sm:$0xf] %v3733
        %3766 = vst [vmem:[%s285 + $0x38] sm:$0xf] %v3734
        %3767 = vst [vmem:[%s285 + $0x3c] sm:$0xf] %v3735
        %s3768 = sand.u32 %s155, 1
        %s3769 = scalar_lea.sflag [#allocation6], %s3768
        %s3770 = sand.u32 %s155, 1
        %s3771 = smul.addr %s3770, 64
        %s3772 = scalar_lea.vmem [#allocation10], %s3771
        // Predicated region
        $region61: #{tpu_custom_call.1} parent=39 // pred_check
          %p3773 = pneg %p165
        $region62: #{tpu_custom_call.1} parent=39 // pred_check_branch
          %3775 = sbr.rel (%p3773) target = $region64
        $region63: #{tpu_custom_call.1} parent=39 // pred_region
          %s3776 = smul.u32 8, %s28
          %s3778 = ssub.s32 1024, 1024
          %3779 = vsyncadd %s3769, %s3778
          %s3780 = smul.addr %s3776, 2
          %s3781 = smul.addr %s27, 32
          %s3782 = sadd.s32 %s3780, %s3781
          %s3783 = smul.addr %s3782, 64
          %s3784 = scalar_lea.hbm %s5, %s3783
          %s3785 = sshll.u32 %s3772, 4
          %s3786 = int_to_ptr.vmem [resolvable:$true] %s3785
          %3791 = dma.vmem_to_hbm [thread:$0]  %s3786, 1024, %s3784, %s3769, 64, 64, 4
        $region64: #{tpu_custom_call.1} parent=39 // pred_fallthru
          _
      $region40: #{tpu_custom_call.1} parent=5 // pred_fallthru
        _
      %p3792 = scmp.le.s32.totalorder 2, %s18
      // Predicated region
      $region65: #{tpu_custom_call.1} parent=5 // pred_check
        %p3793 = pneg %p3792
      $region66: #{tpu_custom_call.1} parent=5 // pred_check_branch
        %3795 = sbr.rel (%p3793) target = $region68
      $region67: #{tpu_custom_call.1} parent=5 // pred_region
        %s3796 = ssub.s32 %s18, 2
        // Predicated region
        $region69: #{tpu_custom_call.1} parent=67 // pred_check
          %p3797 = pneg %p171
        $region70: #{tpu_custom_call.1} parent=67 // pred_check_branch
          %3799 = sbr.rel (%p3797) target = $region72
        $region71: #{tpu_custom_call.1} parent=67 // pred_region
          %s3800 = sand.u32 %s156, 1
          %s3801 = scalar_lea.sflag [#allocation6], %s3800
          %s3802 = sand.u32 %s156, 1
          %s3803 = smul.addr %s3802, 64
          %s3804 = scalar_lea.vmem [#allocation10], %s3803
          %3805 = dma.done %s3801, 1024
        $region72: #{tpu_custom_call.1} parent=67 // pred_fallthru
          _
      $region68: #{tpu_custom_call.1} parent=5 // pred_fallthru
        _
    $region6: #{tpu_custom_call.1} parent=1 // loop_footer
      %s22 = sadd.s32 1, %s18
    $region7: #{tpu_custom_call.1} parent=1 // loop_footer_branch
      %17 = sbr.rel target = $region3
    $region8: #{tpu_custom_call.1} parent=1 // loop_exit
      _
    %3806 = vsyncpa [#allocation5], 1
    %s3807 = scalar_lea.sflag [#allocation5], 1
    %3808 = vsyncpa %s3807, 1
    %3809 = vsyncpa [#allocation8], 1
    %3810 = vsyncpa [#allocation6], 1
    %s3811 = scalar_lea.sflag [#allocation6], 1
    %3812 = vsyncpa %s3811, 1

</llo_original>
